<compile_context>
chip_gen: v7x
topology: tpu7x:2x2x1
jax: 0.10.0
libtpu: 0.0.40
codegen_flags: <defaults>
</compile_context>

<pallas_src>
import jax
import jax.numpy as jnp
from jax.experimental import pallas as pl
from jax.experimental.pallas import tpu as pltpu


NEG_INF = -1e30   # finite mask value for padded fc2 lanes (drops out of max / logsumexp)
H = 768           # BERT hidden size
HID = 512         # fc1 width
CLS = 2           # number of classes
NPAD = 128        # lane-dense fc2 / output width


# ----------------------------------------------------------------------------
# Fused head kernel:
#   pooler (768->768 dense + tanh) -> fc1 (768->512) + ReLU -> dropout(eval, identity)
#   -> fc2 (512->128 lane-padded) + bias-mask -> LogSoftmax over the 2 real classes
# ----------------------------------------------------------------------------
def head_kernel(x_ref, pw_ref, pb_ref, w1_ref, b1_ref, w2_ref, b2_ref, o_ref):
    x = x_ref[...]                                                       # [TB, 768] bf16
    # pooler: tanh(x @ pool_w + pool_b); f32 accumulation, tanh rides the EUP slot
    pooled = jnp.tanh(
        jnp.dot(x, pw_ref[...], preferred_element_type=jnp.float32) + pb_ref[...]
    )                                                                    # [TB, 768] f32
    # fc1 + ReLU (bf16 MXU operands, f32 accumulation + elementwise math)
    h = jnp.dot(pooled.astype(jnp.bfloat16), w1_ref[...],
                preferred_element_type=jnp.float32) + b1_ref[...]
    h = jnp.maximum(h, 0.0)                                              # [TB, 512] f32
    # dropout(p=0.1): eval-mode forward -> identity (matches PyTorch .eval())
    # fc2, lane-padded to 128 columns; padded lanes carry a -1e30 bias so they
    # contribute nothing to the max / logsumexp below.
    logits = jnp.dot(h.astype(jnp.bfloat16), w2_ref[...],
                     preferred_element_type=jnp.float32) + b2_ref[...]   # [TB, 128] f32
    # numerically stable LogSoftmax over the last axis
    m = jnp.max(logits, axis=-1, keepdims=True)
    z = logits - m
    lse = jnp.log(jnp.sum(jnp.exp(z), axis=-1, keepdims=True))
    o_ref[...] = z - lse                                                 # [TB, 128] f32


def _round_up(n, m):
    return ((n + m - 1) // m) * m


def _choose_tiling(batch, tb_cap=512):
    """Pick (TB, B_pad).

    TB is a multiple of 16 (bf16 packs 16 rows per vreg sublane group), capped at
    `tb_cap` to bound VMEM and amortize per-grid-step overhead, and chosen so the
    grid has >= 2 steps whenever B_pad >= 32 (so v7x megacore sharding engages).
    B_pad = TB * n_tiles minimizes padding waste (<= ~16 rows per tile).
    """
    b16 = _round_up(max(batch, 1), 16)
    if b16 < 32:
        return b16, b16                      # single tiny tile
    n_tiles = max(2, pl.cdiv(b16, tb_cap))   # >= 2 grid steps for megacore
    tb = _round_up(pl.cdiv(b16, n_tiles), 16)
    return tb, tb * n_tiles


# ----------------------------------------------------------------------------
# One-time parameter preparation (hoisted out of the per-call wrapper):
#   bf16 matmul weights, fc2 zero-padded to [512, 128], -1e30 pad-lane bias,
#   biases reshaped to [1, N] f32.
# ----------------------------------------------------------------------------
def prepare_head_params(pool_w, pool_b, w1, b1, w2, b2):
    w2p = jnp.zeros((HID, NPAD), jnp.bfloat16).at[:, :CLS].set(w2.astype(jnp.bfloat16))
    b2p = jnp.full((1, NPAD), NEG_INF, jnp.float32).at[0, :CLS].set(
        b2.astype(jnp.float32))
    return {
        "pool_w": pool_w.astype(jnp.bfloat16),            # [768, 768] bf16
        "pool_b": pool_b.reshape(1, H).astype(jnp.float32),
        "w1": w1.astype(jnp.bfloat16),                    # [768, 512] bf16
        "b1": b1.reshape(1, HID).astype(jnp.float32),
        "w2p": w2p,                                       # [512, 128] bf16 (lane-padded)
        "b2p": b2p,                                       # [1, 128] f32 (-1e30 mask)
    }


def bert_arch_head(x_padded, head, *, tb):
    """x_padded: [B_pad, 768] bf16 (B_pad % tb == 0) -> log-probs [B_pad, 128] f32."""
    b_pad = x_padded.shape[0]
    return pl.pallas_call(
        head_kernel,
        out_shape=jax.ShapeDtypeStruct((b_pad, NPAD), jnp.float32),
        grid_spec=pltpu.PrefetchScalarGridSpec(
            num_scalar_prefetch=0,
            grid=(b_pad // tb,),
            in_specs=[
                pl.BlockSpec((tb, H), lambda i: (i, 0)),      # activations (batch-tiled)
                pl.BlockSpec((H, H), lambda i: (0, 0)),       # pool_w  (bf16, invariant)
                pl.BlockSpec((1, H), lambda i: (0, 0)),       # pool_b  (f32)
                pl.BlockSpec((H, HID), lambda i: (0, 0)),     # w1      (bf16, invariant)
                pl.BlockSpec((1, HID), lambda i: (0, 0)),     # b1      (f32)
                pl.BlockSpec((HID, NPAD), lambda i: (0, 0)),  # w2      (bf16, lane-padded)
                pl.BlockSpec((1, NPAD), lambda i: (0, 0)),    # b2      (f32, -1e30 mask)
            ],
            out_specs=pl.BlockSpec((tb, NPAD), lambda i: (i, 0)),
        ),
        compiler_params=pltpu.CompilerParams(
            dimension_semantics=("parallel",),      # >=2 batch tiles -> both v7x TCs busy
            vmem_limit_bytes=32 * 1024 * 1024,      # ~11 MiB used at TB=512; fits all chips
        ),
    )(x_padded, head["pool_w"], head["pool_b"], head["w1"], head["b1"],
      head["w2p"], head["b2p"])


# ----------------------------------------------------------------------------
# Synthetic stand-in for the 12-layer codebert encoder producing the pre-pooler
# CLS features.  Emits bf16 directly and folds the batch pad into the same op
# (no extra f32 activation round-trip through HBM).
# TODO(synk): the pretrained microsoft/codebert-base transformer encoder has no
#             in-script equivalent; this is a deterministic synthetic stub.
# ----------------------------------------------------------------------------
def synthetic_bert_features(sent_id, mask, emb_table, b_pad):
    tok = jnp.take(emb_table, sent_id, axis=0)                 # [B, S, H]
    m = mask[..., None].astype(jnp.float32)                    # [B, S, 1]
    summed = jnp.sum(tok * m, axis=1)                          # [B, H]
    denom = jnp.maximum(jnp.sum(m, axis=1), 1.0)               # [B, 1]
    cls = (summed / denom).astype(jnp.bfloat16)                # [B, H] bf16
    b = cls.shape[0]
    if b_pad != b:
        cls = jnp.zeros((b_pad, H), jnp.bfloat16).at[:b].set(cls)
    return cls                                                 # [B_pad, H] bf16


def bert_arch_forward(sent_id, mask, emb_table, head_params):
    batch = sent_id.shape[0]
    tb, b_pad = _choose_tiling(batch)
    x = synthetic_bert_features(sent_id, mask, emb_table, b_pad)
    out = bert_arch_head(x, head_params, tb=tb)
    return out[:batch, :CLS]                                   # log-probs [B, 2] f32


if __name__ == "__main__":
    B, S, VOCAB = 2, 8, 64

    key = jax.random.PRNGKey(0)
    k_emb, k_pw, k_pb, k_w1, k_b1, k_w2, k_b2, k_ids = jax.random.split(key, 8)

    emb = jax.random.normal(k_emb, (VOCAB, H), jnp.float32) * 0.02
    pool_w = jax.random.normal(k_pw, (H, H), jnp.float32) * 0.02
    pool_b = jax.random.normal(k_pb, (H,), jnp.float32) * 0.02
    w1 = jax.random.normal(k_w1, (H, HID), jnp.float32) * 0.02
    b1 = jax.random.normal(k_b1, (HID,), jnp.float32) * 0.02
    w2 = jax.random.normal(k_w2, (HID, CLS), jnp.float32) * 0.02
    b2 = jax.random.normal(k_b2, (CLS,), jnp.float32) * 0.02

    # one-time parameter prep (bf16 casts / padding hoisted out of the forward path)
    head_params = prepare_head_params(pool_w, pool_b, w1, b1, w2, b2)

    sent_id = jax.random.randint(k_ids, (B, S), 0, VOCAB, dtype=jnp.int32)
    mask = jnp.ones((B, S), dtype=jnp.int32)

    forward = jax.jit(bert_arch_forward)
    out = forward(sent_id, mask, emb, head_params)
    jax.block_until_ready(out)

    # pure-JAX f32 reference of the same forward (loose tolerance: bf16 MXU operands)
    tok = jnp.take(emb, sent_id, axis=0)
    mm = mask[..., None].astype(jnp.float32)
    cls_ref = jnp.sum(tok * mm, axis=1) / jnp.maximum(jnp.sum(mm, axis=1), 1.0)
    pooled_ref = jnp.tanh(cls_ref @ pool_w + pool_b)
    h_ref = jnp.maximum(pooled_ref @ w1 + b1, 0.0)
    ref = jax.nn.log_softmax(h_ref @ w2 + b2, axis=-1)

    row_sums = jnp.sum(jnp.exp(out), axis=-1)
    assert out.shape == (B, CLS)
    assert bool(jnp.all(jnp.isfinite(out)))
    assert bool(jnp.all(jnp.abs(row_sums - 1.0) < 1e-4))
    assert bool(jnp.max(jnp.abs(out - ref)) < 2e-2)

    print("KERNEL_OK")
</pallas_src>

<mosaic_0001>
module attributes {stable_mosaic.version = 11 : i64} {
  func.func @head_kernel(%arg0: i32, %arg1: memref<16x768xbf16, #tpu.memory_space<vmem>>, %arg2: memref<768x768xbf16, #tpu.memory_space<vmem>>, %arg3: memref<1x768xf32, #tpu.memory_space<vmem>>, %arg4: memref<768x512xbf16, #tpu.memory_space<vmem>>, %arg5: memref<1x512xf32, #tpu.memory_space<vmem>>, %arg6: memref<512x128xbf16, #tpu.memory_space<vmem>>, %arg7: memref<1x128xf32, #tpu.memory_space<vmem>>, %arg8: memref<16x128xf32, #tpu.memory_space<vmem>>) attributes {dimension_semantics = [#tpu.dimension_semantics<parallel>], iteration_bounds = array<i64: 1>, scalar_prefetch = 0 : i64, scratch_operands = 0 : i64, tpu.core_type = #tpu.core_type<tc>, window_params = [{transform_indices = @transform_0, window_bounds = array<i64: 16, 768>}, {pipeline_mode = #tpu.pipeline_mode<synchronous>, transform_indices = @transform_1, window_bounds = array<i64: 768, 768>}, {pipeline_mode = #tpu.pipeline_mode<synchronous>, transform_indices = @transform_2, window_bounds = array<i64: 1, 768>}, {pipeline_mode = #tpu.pipeline_mode<synchronous>, transform_indices = @transform_3, window_bounds = array<i64: 768, 512>}, {pipeline_mode = #tpu.pipeline_mode<synchronous>, transform_indices = @transform_4, window_bounds = array<i64: 1, 512>}, {pipeline_mode = #tpu.pipeline_mode<synchronous>, transform_indices = @transform_5, window_bounds = array<i64: 512, 128>}, {pipeline_mode = #tpu.pipeline_mode<synchronous>, transform_indices = @transform_6, window_bounds = array<i64: 1, 128>}, {transform_indices = @transform_7, window_bounds = array<i64: 16, 128>}]} {
    %c0 = arith.constant 0 : index
    %c0_0 = arith.constant 0 : index
    %0 = vector.load %arg1[%c0, %c0_0] : memref<16x768xbf16, #tpu.memory_space<vmem>>, vector<16x768xbf16>
    %c0_1 = arith.constant 0 : index
    %c0_2 = arith.constant 0 : index
    %1 = vector.load %arg2[%c0_1, %c0_2] : memref<768x768xbf16, #tpu.memory_space<vmem>>, vector<768x768xbf16>
    %cst = arith.constant dense<0.000000e+00> : vector<16x768xf32>
    %2 = tpu.matmul %0, %1, %cst {dimension_numbers = #tpu.dot_dimension_numbers<[1], [0], [0], [1], [0, 0, 1, 1], [], []>} : vector<16x768xbf16>, vector<768x768xbf16>, vector<16x768xf32> -> vector<16x768xf32>
    %c0_3 = arith.constant 0 : index
    %c0_4 = arith.constant 0 : index
    %3 = vector.load %arg3[%c0_3, %c0_4] : memref<1x768xf32, #tpu.memory_space<vmem>>, vector<1x768xf32>
    %4 = vector.broadcast %3 : vector<1x768xf32> to vector<16x768xf32>
    %5 = arith.addf %2, %4 : vector<16x768xf32>
    %6 = math.tanh %5 : vector<16x768xf32>
    %7 = arith.truncf %6 : vector<16x768xf32> to vector<16x768xbf16>
    %c0_5 = arith.constant 0 : index
    %c0_6 = arith.constant 0 : index
    %8 = vector.load %arg4[%c0_5, %c0_6] : memref<768x512xbf16, #tpu.memory_space<vmem>>, vector<768x512xbf16>
    %cst_7 = arith.constant dense<0.000000e+00> : vector<16x512xf32>
    %9 = tpu.matmul %7, %8, %cst_7 {dimension_numbers = #tpu.dot_dimension_numbers<[1], [0], [0], [1], [0, 0, 1, 1], [], []>} : vector<16x768xbf16>, vector<768x512xbf16>, vector<16x512xf32> -> vector<16x512xf32>
    %c0_8 = arith.constant 0 : index
    %c0_9 = arith.constant 0 : index
    %10 = vector.load %arg5[%c0_8, %c0_9] : memref<1x512xf32, #tpu.memory_space<vmem>>, vector<1x512xf32>
    %11 = vector.broadcast %10 : vector<1x512xf32> to vector<16x512xf32>
    %12 = arith.addf %9, %11 : vector<16x512xf32>
    %cst_10 = arith.constant 0.000000e+00 : f32
    %13 = vector.broadcast %cst_10 : f32 to vector<16x512xf32>
    %14 = arith.maximumf %12, %13 : vector<16x512xf32>
    %15 = arith.truncf %14 : vector<16x512xf32> to vector<16x512xbf16>
    %c0_11 = arith.constant 0 : index
    %c0_12 = arith.constant 0 : index
    %16 = vector.load %arg6[%c0_11, %c0_12] : memref<512x128xbf16, #tpu.memory_space<vmem>>, vector<512x128xbf16>
    %cst_13 = arith.constant dense<0.000000e+00> : vector<16x128xf32>
    %17 = tpu.matmul %15, %16, %cst_13 {dimension_numbers = #tpu.dot_dimension_numbers<[1], [0], [0], [1], [0, 0, 1, 1], [], []>} : vector<16x512xbf16>, vector<512x128xbf16>, vector<16x128xf32> -> vector<16x128xf32>
    %c0_14 = arith.constant 0 : index
    %c0_15 = arith.constant 0 : index
    %18 = vector.load %arg7[%c0_14, %c0_15] : memref<1x128xf32, #tpu.memory_space<vmem>>, vector<1x128xf32>
    %19 = vector.broadcast %18 : vector<1x128xf32> to vector<16x128xf32>
    %20 = arith.addf %17, %19 : vector<16x128xf32>
    %cst_16 = arith.constant dense<0xFF800000> : vector<16xf32>
    %21 = vector.multi_reduction <maximumf>, %20, %cst_16 [1] : vector<16x128xf32> to vector<16xf32>
    %22 = vector.shape_cast %21 : vector<16xf32> to vector<16x1xf32>
    %23 = vector.broadcast %22 : vector<16x1xf32> to vector<16x128xf32>
    %24 = arith.subf %20, %23 : vector<16x128xf32>
    %25 = math.exp %24 : vector<16x128xf32>
    %cst_17 = arith.constant dense<0.000000e+00> : vector<16xf32>
    %26 = vector.multi_reduction <add>, %25, %cst_17 [1] : vector<16x128xf32> to vector<16xf32>
    %27 = vector.shape_cast %26 : vector<16xf32> to vector<16x1xf32>
    %28 = math.log %27 : vector<16x1xf32>
    %29 = vector.broadcast %28 : vector<16x1xf32> to vector<16x128xf32>
    %30 = arith.subf %24, %29 : vector<16x128xf32>
    %c0_18 = arith.constant 0 : index
    %c0_19 = arith.constant 0 : index
    %31 = vector.load %arg8[%c0_18, %c0_19] : memref<16x128xf32, #tpu.memory_space<vmem>>, vector<16x128xf32>
    tpu.vector_store %arg8[%c0_18, %c0_19], %30 {strides = array<i32>} : memref<16x128xf32, #tpu.memory_space<vmem>>, vector<16x128xf32>,
    return
  }
  func.func @transform_0(%arg0: i32) -> (i32, i32) {
    %c0_i32 = arith.constant 0 : i32
    %c0_i32_0 = arith.constant 0 : i32
    return %arg0, %c0_i32 : i32, i32
  }
  func.func @transform_1(%arg0: i32) -> (i32, i32) {
    %c0_i32 = arith.constant 0 : i32
    %c0_i32_0 = arith.constant 0 : i32
    %c0_i32_1 = arith.constant 0 : i32
    return %c0_i32, %c0_i32_0 : i32, i32
  }
  func.func @transform_2(%arg0: i32) -> (i32, i32) {
    %c0_i32 = arith.constant 0 : i32
    %c0_i32_0 = arith.constant 0 : i32
    %c0_i32_1 = arith.constant 0 : i32
    return %c0_i32, %c0_i32_0 : i32, i32
  }
  func.func @transform_3(%arg0: i32) -> (i32, i32) {
    %c0_i32 = arith.constant 0 : i32
    %c0_i32_0 = arith.constant 0 : i32
    %c0_i32_1 = arith.constant 0 : i32
    return %c0_i32, %c0_i32_0 : i32, i32
  }
  func.func @transform_4(%arg0: i32) -> (i32, i32) {
    %c0_i32 = arith.constant 0 : i32
    %c0_i32_0 = arith.constant 0 : i32
    %c0_i32_1 = arith.constant 0 : i32
    return %c0_i32, %c0_i32_0 : i32, i32
  }
  func.func @transform_5(%arg0: i32) -> (i32, i32) {
    %c0_i32 = arith.constant 0 : i32
    %c0_i32_0 = arith.constant 0 : i32
    %c0_i32_1 = arith.constant 0 : i32
    return %c0_i32, %c0_i32_0 : i32, i32
  }
  func.func @transform_6(%arg0: i32) -> (i32, i32) {
    %c0_i32 = arith.constant 0 : i32
    %c0_i32_0 = arith.constant 0 : i32
    %c0_i32_1 = arith.constant 0 : i32
    return %c0_i32, %c0_i32_0 : i32, i32
  }
  func.func @transform_7(%arg0: i32) -> (i32, i32) {
    %c0_i32 = arith.constant 0 : i32
    %c0_i32_0 = arith.constant 0 : i32
    return %arg0, %c0_i32 : i32, i32
  }
}

</mosaic_0001>

<llo_original>
// kernel: bert_arch_forward.1
$region0: #{bert_arch_forward.1}
  #allocation0 [shape = 'u32[]', space=smem, size = 0x4, offset = 0x4, fixed_abs, tag = 'smem constant byte address 0x4 - core index']
  #allocation1 [shape = 'u32[144,128]{1,0:T(1,128)}', space=vmem, size = 0x12000, scoped, tag = 'internal scratch']
  %s0 = inlined_call_operand.vmem [shape: bf16[16,768], index: 0, kind: input, shape index: {}]
  %s1 = inlined_call_operand.hbm [shape: bf16[768,768], index: 1, kind: input, shape index: {}]
  %s2 = inlined_call_operand.hbm [shape: f32[1,768], index: 2, kind: input, shape index: {}]
  %s3 = inlined_call_operand.hbm [shape: bf16[768,512], index: 3, kind: input, shape index: {}]
  %s4 = inlined_call_operand.hbm [shape: f32[1,512], index: 4, kind: input, shape index: {}]
  %s5 = inlined_call_operand.hbm [shape: bf16[512,128], index: 5, kind: input, shape index: {}]
  %s6 = inlined_call_operand.hbm [shape: f32[1,128], index: 6, kind: input, shape index: {}]
  %s7 = inlined_call_operand.vmem [shape: f32[16,128], index: 7, kind: output, shape index: {}]
  %s8 = sld [smem:[#allocation0]]
  $region62: #{bert_arch_forward.1} parent=0
    _
  %s10 = ssub.s32 1, %s8
  %s11 = scalar_select 0, %s10, %s8
  $region1: #{bert_arch_forward.1} parent=0
    #allocation2 [shape = 'u8[1179648]{0}', space=vmem, size = 0x120000, scoped, tag = 'input window, operand 1, single buffered']
    #allocation3 [shape = 's32[1]{0}', space=sflag, size = 0x4, scoped, tag = 'scoped memory for bert_arch_forward.1']
    #allocation4 [shape = 'u8[3072]{0}', space=vmem, size = 0xc00, scoped, tag = 'input window, operand 2, single buffered']
    #allocation5 [shape = 's32[1]{0}', space=sflag, size = 0x4, scoped, tag = 'scoped memory for bert_arch_forward.1']
    #allocation6 [shape = 'u8[786432]{0}', space=vmem, size = 0xc0000, scoped, tag = 'input window, operand 3, single buffered']
    #allocation7 [shape = 'u8[2048]{0}', space=vmem, size = 0x800, scoped, tag = 'input window, operand 4, single buffered']
    #allocation8 [shape = 's32[1]{0}', space=sflag, size = 0x4, scoped, tag = 'scoped memory for bert_arch_forward.1']
    #allocation9 [shape = 'u8[131072]{0}', space=vmem, size = 0x20000, scoped, tag = 'input window, operand 5, single buffered']
    #allocation10 [shape = 'u8[512]{0}', space=vmem, size = 0x400, scoped, tag = 'input window, operand 6, single buffered']
    #allocation11 [shape = 's32[1]{0}', space=sflag, size = 0x4, scoped, tag = 'scoped memory for bert_arch_forward.1']
    %12 = vsyncpa [#allocation3], 0
    %13 = vsyncpa [#allocation5], 0
    %14 = vsyncpa [#allocation8], 0
    %15 = vsyncpa [#allocation11], 0
    // Predicated region
    $region2: #{bert_arch_forward.1} parent=1 // pred_check
      _
    $region3: #{bert_arch_forward.1} parent=1 // pred_check_branch
      %17 = sbr.rel (0) target = $region5
    $region4: #{bert_arch_forward.1} parent=1 // pred_region
      _
    $region5: #{bert_arch_forward.1} parent=1 // pred_fallthru
      _
    // Predicated region
    $region6: #{bert_arch_forward.1} parent=1 // pred_check
      _
    $region7: #{bert_arch_forward.1} parent=1 // pred_check_branch
      %19 = sbr.rel (0) target = $region9
    $region8: #{bert_arch_forward.1} parent=1 // pred_region
      %s21 = ssub.s32 36864, 36864
      %22 = vsyncadd [#allocation3], %s21
      %s23 = sshll.u32 [#allocation2], 4
      %s24 = int_to_ptr.vmem [resolvable:$true] %s23
      %29 = dma.hbm_to_vmem [thread:$0]  %s1, 36864, %s24, [#allocation3], 384, 384, 24
    $region9: #{bert_arch_forward.1} parent=1 // pred_fallthru
      _
    // Predicated region
    $region10: #{bert_arch_forward.1} parent=1 // pred_check
      _
    $region11: #{bert_arch_forward.1} parent=1 // pred_check_branch
      %31 = sbr.rel (0) target = $region13
    $region12: #{bert_arch_forward.1} parent=1 // pred_region
      %s33 = ssub.s32 96, 96
      %34 = vsyncadd [#allocation5], %s33
      %s36 = sshll.u32 [#allocation4], 4
      %s37 = int_to_ptr.vmem [resolvable:$true] %s36
      %39 = dma.hbm_to_vmem [thread:$0]  %s2, 96, %s37, [#allocation5]
    $region13: #{bert_arch_forward.1} parent=1 // pred_fallthru
      _
    // Predicated region
    $region14: #{bert_arch_forward.1} parent=1 // pred_check
      _
    $region15: #{bert_arch_forward.1} parent=1 // pred_check_branch
      %41 = sbr.rel (0) target = $region17
    $region16: #{bert_arch_forward.1} parent=1 // pred_region
      %s43 = ssub.s32 24576, 24576
      %44 = vsyncadd [#allocation5], %s43
      %s45 = sshll.u32 [#allocation6], 4
      %s46 = int_to_ptr.vmem [resolvable:$true] %s45
      %51 = dma.hbm_to_vmem [thread:$0]  %s3, 24576, %s46, [#allocation5], 256, 256, 16
    $region17: #{bert_arch_forward.1} parent=1 // pred_fallthru
      _
    // Predicated region
    $region18: #{bert_arch_forward.1} parent=1 // pred_check
      _
    $region19: #{bert_arch_forward.1} parent=1 // pred_check_branch
      %53 = sbr.rel (0) target = $region21
    $region20: #{bert_arch_forward.1} parent=1 // pred_region
      %s55 = ssub.s32 64, 64
      %56 = vsyncadd [#allocation8], %s55
      %s58 = sshll.u32 [#allocation7], 4
      %s59 = int_to_ptr.vmem [resolvable:$true] %s58
      %61 = dma.hbm_to_vmem [thread:$0]  %s4, 64, %s59, [#allocation8]
    $region21: #{bert_arch_forward.1} parent=1 // pred_fallthru
      _
    // Predicated region
    $region22: #{bert_arch_forward.1} parent=1 // pred_check
      _
    $region23: #{bert_arch_forward.1} parent=1 // pred_check_branch
      %63 = sbr.rel (0) target = $region25
    $region24: #{bert_arch_forward.1} parent=1 // pred_region
      %s65 = ssub.s32 4096, 4096
      %66 = vsyncadd [#allocation8], %s65
      %s67 = sshll.u32 [#allocation9], 4
      %s68 = int_to_ptr.vmem [resolvable:$true] %s67
      %73 = dma.hbm_to_vmem [thread:$0]  %s5, 4096, %s68, [#allocation8], 64, 64, 4
    $region25: #{bert_arch_forward.1} parent=1 // pred_fallthru
      _
    // Predicated region
    $region26: #{bert_arch_forward.1} parent=1 // pred_check
      _
    $region27: #{bert_arch_forward.1} parent=1 // pred_check_branch
      %75 = sbr.rel (0) target = $region29
    $region28: #{bert_arch_forward.1} parent=1 // pred_region
      %s77 = ssub.s32 16, 16
      %78 = vsyncadd [#allocation11], %s77
      %s80 = sshll.u32 [#allocation10], 4
      %s81 = int_to_ptr.vmem [resolvable:$true] %s80
      %83 = dma.hbm_to_vmem [thread:$0]  %s6, 16, %s81, [#allocation11]
    $region29: #{bert_arch_forward.1} parent=1 // pred_fallthru
      _
    // Predicated region
    $region30: #{bert_arch_forward.1} parent=1 // pred_check
      _
    $region31: #{bert_arch_forward.1} parent=1 // pred_check_branch
      %85 = sbr.rel (0) target = $region33
    $region32: #{bert_arch_forward.1} parent=1 // pred_region
      %86 = dma.done [#allocation3], 36864
    $region33: #{bert_arch_forward.1} parent=1 // pred_fallthru
      _
    // Predicated region
    $region34: #{bert_arch_forward.1} parent=1 // pred_check
      _
    $region35: #{bert_arch_forward.1} parent=1 // pred_check_branch
      %88 = sbr.rel (0) target = $region37
    $region36: #{bert_arch_forward.1} parent=1 // pred_region
      %89 = dma.done [#allocation5], 96
    $region37: #{bert_arch_forward.1} parent=1 // pred_fallthru
      _
    // Predicated region
    $region38: #{bert_arch_forward.1} parent=1 // pred_check
      _
    $region39: #{bert_arch_forward.1} parent=1 // pred_check_branch
      %91 = sbr.rel (0) target = $region41
    $region40: #{bert_arch_forward.1} parent=1 // pred_region
      %92 = dma.done [#allocation5], 24576
    $region41: #{bert_arch_forward.1} parent=1 // pred_fallthru
      _
    // Predicated region
    $region42: #{bert_arch_forward.1} parent=1 // pred_check
      _
    $region43: #{bert_arch_forward.1} parent=1 // pred_check_branch
      %94 = sbr.rel (0) target = $region45
    $region44: #{bert_arch_forward.1} parent=1 // pred_region
      %95 = dma.done [#allocation8], 64
    $region45: #{bert_arch_forward.1} parent=1 // pred_fallthru
      _
    // Predicated region
    $region46: #{bert_arch_forward.1} parent=1 // pred_check
      _
    $region47: #{bert_arch_forward.1} parent=1 // pred_check_branch
      %97 = sbr.rel (0) target = $region49
    $region48: #{bert_arch_forward.1} parent=1 // pred_region
      %98 = dma.done [#allocation8], 4096
    $region49: #{bert_arch_forward.1} parent=1 // pred_fallthru
      _
    // Predicated region
    $region50: #{bert_arch_forward.1} parent=1 // pred_check
      _
    $region51: #{bert_arch_forward.1} parent=1 // pred_check_branch
      %100 = sbr.rel (0) target = $region53
    $region52: #{bert_arch_forward.1} parent=1 // pred_region
      %101 = dma.done [#allocation11], 16
    $region53: #{bert_arch_forward.1} parent=1 // pred_fallthru
      _
    %v103 = vld [vmem:[%s0] sm:$0xff]
    %v104 = vld [vmem:[%s0 + $0x8] sm:$0xff]
    %v105 = vld [vmem:[%s0 + $0x10] sm:$0xff]
    %v106 = vld [vmem:[%s0 + $0x18] sm:$0xff]
    %v107 = vld [vmem:[%s0 + $0x20] sm:$0xff]
    %v108 = vld [vmem:[%s0 + $0x28] sm:$0xff]
    %v109 = vld [vmem:[#allocation2] sm:$0xff]
    %v110 = vld [vmem:[#allocation2 + $0x8] sm:$0xff]
    %v111 = vld [vmem:[#allocation2 + $0x10] sm:$0xff]
    %v112 = vld [vmem:[#allocation2 + $0x18] sm:$0xff]
    %v113 = vld [vmem:[#allocation2 + $0x20] sm:$0xff]
    %v114 = vld [vmem:[#allocation2 + $0x28] sm:$0xff]
    %v115 = vld [vmem:[#allocation2 + $0x30] sm:$0xff]
    %v116 = vld [vmem:[#allocation2 + $0x38] sm:$0xff]
    %v117 = vld [vmem:[#allocation2 + $0x40] sm:$0xff]
    %v118 = vld [vmem:[#allocation2 + $0x48] sm:$0xff]
    %v119 = vld [vmem:[#allocation2 + $0x50] sm:$0xff]
    %v120 = vld [vmem:[#allocation2 + $0x58] sm:$0xff]
    %v121 = vld [vmem:[#allocation2 + $0x60] sm:$0xff]
    %v122 = vld [vmem:[#allocation2 + $0x68] sm:$0xff]
    %v123 = vld [vmem:[#allocation2 + $0x70] sm:$0xff]
    %v124 = vld [vmem:[#allocation2 + $0x78] sm:$0xff]
    %v125 = vld [vmem:[#allocation2 + $0x80] sm:$0xff]
    %v126 = vld [vmem:[#allocation2 + $0x88] sm:$0xff]
    %v127 = vld [vmem:[#allocation2 + $0x90] sm:$0xff]
    %v128 = vld [vmem:[#allocation2 + $0x98] sm:$0xff]
    %v129 = vld [vmem:[#allocation2 + $0xa0] sm:$0xff]
    %v130 = vld [vmem:[#allocation2 + $0xa8] sm:$0xff]
    %v131 = vld [vmem:[#allocation2 + $0xb0] sm:$0xff]
    %v132 = vld [vmem:[#allocation2 + $0xb8] sm:$0xff]
    %v133 = vld [vmem:[#allocation2 + $0xc0] sm:$0xff]
    %v134 = vld [vmem:[#allocation2 + $0xc8] sm:$0xff]
    %v135 = vld [vmem:[#allocation2 + $0xd0] sm:$0xff]
    %v136 = vld [vmem:[#allocation2 + $0xd8] sm:$0xff]
    %v137 = vld [vmem:[#allocation2 + $0xe0] sm:$0xff]
    %v138 = vld [vmem:[#allocation2 + $0xe8] sm:$0xff]
    %v139 = vld [vmem:[#allocation2 + $0xf0] sm:$0xff]
    %v140 = vld [vmem:[#allocation2 + $0xf8] sm:$0xff]
    %v141 = vld [vmem:[#allocation2 + $0x100] sm:$0xff]
    %v142 = vld [vmem:[#allocation2 + $0x108] sm:$0xff]
    %v143 = vld [vmem:[#allocation2 + $0x110] sm:$0xff]
    %v144 = vld [vmem:[#allocation2 + $0x118] sm:$0xff]
    %v145 = vld [vmem:[#allocation2 + $0x120] sm:$0xff]
    %v146 = vld [vmem:[#allocation2 + $0x128] sm:$0xff]
    %v147 = vld [vmem:[#allocation2 + $0x130] sm:$0xff]
    %v148 = vld [vmem:[#allocation2 + $0x138] sm:$0xff]
    %v149 = vld [vmem:[#allocation2 + $0x140] sm:$0xff]
    %v150 = vld [vmem:[#allocation2 + $0x148] sm:$0xff]
    %v151 = vld [vmem:[#allocation2 + $0x150] sm:$0xff]
    %v152 = vld [vmem:[#allocation2 + $0x158] sm:$0xff]
    %v153 = vld [vmem:[#allocation2 + $0x160] sm:$0xff]
    %v154 = vld [vmem:[#allocation2 + $0x168] sm:$0xff]
    %v155 = vld [vmem:[#allocation2 + $0x170] sm:$0xff]
    %v156 = vld [vmem:[#allocation2 + $0x178] sm:$0xff]
    %v157 = vld [vmem:[#allocation2 + $0x180] sm:$0xff]
    %v158 = vld [vmem:[#allocation2 + $0x188] sm:$0xff]
    %v159 = vld [vmem:[#allocation2 + $0x190] sm:$0xff]
    %v160 = vld [vmem:[#allocation2 + $0x198] sm:$0xff]
    %v161 = vld [vmem:[#allocation2 + $0x1a0] sm:$0xff]
    %v162 = vld [vmem:[#allocation2 + $0x1a8] sm:$0xff]
    %v163 = vld [vmem:[#allocation2 + $0x1b0] sm:$0xff]
    %v164 = vld [vmem:[#allocation2 + $0x1b8] sm:$0xff]
    %v165 = vld [vmem:[#allocation2 + $0x1c0] sm:$0xff]
    %v166 = vld [vmem:[#allocation2 + $0x1c8] sm:$0xff]
    %v167 = vld [vmem:[#allocation2 + $0x1d0] sm:$0xff]
    %v168 = vld [vmem:[#allocation2 + $0x1d8] sm:$0xff]
    %v169 = vld [vmem:[#allocation2 + $0x1e0] sm:$0xff]
    %v170 = vld [vmem:[#allocation2 + $0x1e8] sm:$0xff]
    %v171 = vld [vmem:[#allocation2 + $0x1f0] sm:$0xff]
    %v172 = vld [vmem:[#allocation2 + $0x1f8] sm:$0xff]
    %v173 = vld [vmem:[#allocation2 + $0x200] sm:$0xff]
    %v174 = vld [vmem:[#allocation2 + $0x208] sm:$0xff]
    %v175 = vld [vmem:[#allocation2 + $0x210] sm:$0xff]
    %v176 = vld [vmem:[#allocation2 + $0x218] sm:$0xff]
    %v177 = vld [vmem:[#allocation2 + $0x220] sm:$0xff]
    %v178 = vld [vmem:[#allocation2 + $0x228] sm:$0xff]
    %v179 = vld [vmem:[#allocation2 + $0x230] sm:$0xff]
    %v180 = vld [vmem:[#allocation2 + $0x238] sm:$0xff]
    %v181 = vld [vmem:[#allocation2 + $0x240] sm:$0xff]
    %v182 = vld [vmem:[#allocation2 + $0x248] sm:$0xff]
    %v183 = vld [vmem:[#allocation2 + $0x250] sm:$0xff]
    %v184 = vld [vmem:[#allocation2 + $0x258] sm:$0xff]
    %v185 = vld [vmem:[#allocation2 + $0x260] sm:$0xff]
    %v186 = vld [vmem:[#allocation2 + $0x268] sm:$0xff]
    %v187 = vld [vmem:[#allocation2 + $0x270] sm:$0xff]
    %v188 = vld [vmem:[#allocation2 + $0x278] sm:$0xff]
    %v189 = vld [vmem:[#allocation2 + $0x280] sm:$0xff]
    %v190 = vld [vmem:[#allocation2 + $0x288] sm:$0xff]
    %v191 = vld [vmem:[#allocation2 + $0x290] sm:$0xff]
    %v192 = vld [vmem:[#allocation2 + $0x298] sm:$0xff]
    %v193 = vld [vmem:[#allocation2 + $0x2a0] sm:$0xff]
    %v194 = vld [vmem:[#allocation2 + $0x2a8] sm:$0xff]
    %v195 = vld [vmem:[#allocation2 + $0x2b0] sm:$0xff]
    %v196 = vld [vmem:[#allocation2 + $0x2b8] sm:$0xff]
    %v197 = vld [vmem:[#allocation2 + $0x2c0] sm:$0xff]
    %v198 = vld [vmem:[#allocation2 + $0x2c8] sm:$0xff]
    %v199 = vld [vmem:[#allocation2 + $0x2d0] sm:$0xff]
    %v200 = vld [vmem:[#allocation2 + $0x2d8] sm:$0xff]
    %v201 = vld [vmem:[#allocation2 + $0x2e0] sm:$0xff]
    %v202 = vld [vmem:[#allocation2 + $0x2e8] sm:$0xff]
    %v203 = vld [vmem:[#allocation2 + $0x2f0] sm:$0xff]
    %v204 = vld [vmem:[#allocation2 + $0x2f8] sm:$0xff]
    %v205 = vld [vmem:[#allocation2 + $0x300] sm:$0xff]
    %v206 = vld [vmem:[#allocation2 + $0x308] sm:$0xff]
    %v207 = vld [vmem:[#allocation2 + $0x310] sm:$0xff]
    %v208 = vld [vmem:[#allocation2 + $0x318] sm:$0xff]
    %v209 = vld [vmem:[#allocation2 + $0x320] sm:$0xff]
    %v210 = vld [vmem:[#allocation2 + $0x328] sm:$0xff]
    %v211 = vld [vmem:[#allocation2 + $0x330] sm:$0xff]
    %v212 = vld [vmem:[#allocation2 + $0x338] sm:$0xff]
    %v213 = vld [vmem:[#allocation2 + $0x340] sm:$0xff]
    %v214 = vld [vmem:[#allocation2 + $0x348] sm:$0xff]
    %v215 = vld [vmem:[#allocation2 + $0x350] sm:$0xff]
    %v216 = vld [vmem:[#allocation2 + $0x358] sm:$0xff]
    %v217 = vld [vmem:[#allocation2 + $0x360] sm:$0xff]
    %v218 = vld [vmem:[#allocation2 + $0x368] sm:$0xff]
    %v219 = vld [vmem:[#allocation2 + $0x370] sm:$0xff]
    %v220 = vld [vmem:[#allocation2 + $0x378] sm:$0xff]
    %v221 = vld [vmem:[#allocation2 + $0x380] sm:$0xff]
    %v222 = vld [vmem:[#allocation2 + $0x388] sm:$0xff]
    %v223 = vld [vmem:[#allocation2 + $0x390] sm:$0xff]
    %v224 = vld [vmem:[#allocation2 + $0x398] sm:$0xff]
    %v225 = vld [vmem:[#allocation2 + $0x3a0] sm:$0xff]
    %v226 = vld [vmem:[#allocation2 + $0x3a8] sm:$0xff]
    %v227 = vld [vmem:[#allocation2 + $0x3b0] sm:$0xff]
    %v228 = vld [vmem:[#allocation2 + $0x3b8] sm:$0xff]
    %v229 = vld [vmem:[#allocation2 + $0x3c0] sm:$0xff]
    %v230 = vld [vmem:[#allocation2 + $0x3c8] sm:$0xff]
    %v231 = vld [vmem:[#allocation2 + $0x3d0] sm:$0xff]
    %v232 = vld [vmem:[#allocation2 + $0x3d8] sm:$0xff]
    %v233 = vld [vmem:[#allocation2 + $0x3e0] sm:$0xff]
    %v234 = vld [vmem:[#allocation2 + $0x3e8] sm:$0xff]
    %v235 = vld [vmem:[#allocation2 + $0x3f0] sm:$0xff]
    %v236 = vld [vmem:[#allocation2 + $0x3f8] sm:$0xff]
    %v237 = vld [vmem:[#allocation2 + $0x400] sm:$0xff]
    %v238 = vld [vmem:[#allocation2 + $0x408] sm:$0xff]
    %v239 = vld [vmem:[#allocation2 + $0x410] sm:$0xff]
    %v240 = vld [vmem:[#allocation2 + $0x418] sm:$0xff]
    %v241 = vld [vmem:[#allocation2 + $0x420] sm:$0xff]
    %v242 = vld [vmem:[#allocation2 + $0x428] sm:$0xff]
    %v243 = vld [vmem:[#allocation2 + $0x430] sm:$0xff]
    %v244 = vld [vmem:[#allocation2 + $0x438] sm:$0xff]
    %v245 = vld [vmem:[#allocation2 + $0x440] sm:$0xff]
    %v246 = vld [vmem:[#allocation2 + $0x448] sm:$0xff]
    %v247 = vld [vmem:[#allocation2 + $0x450] sm:$0xff]
    %v248 = vld [vmem:[#allocation2 + $0x458] sm:$0xff]
    %v249 = vld [vmem:[#allocation2 + $0x460] sm:$0xff]
    %v250 = vld [vmem:[#allocation2 + $0x468] sm:$0xff]
    %v251 = vld [vmem:[#allocation2 + $0x470] sm:$0xff]
    %v252 = vld [vmem:[#allocation2 + $0x478] sm:$0xff]
    %v253 = vld [vmem:[#allocation2 + $0x480] sm:$0xff]
    %v254 = vld [vmem:[#allocation2 + $0x488] sm:$0xff]
    %v255 = vld [vmem:[#allocation2 + $0x490] sm:$0xff]
    %v256 = vld [vmem:[#allocation2 + $0x498] sm:$0xff]
    %v257 = vld [vmem:[#allocation2 + $0x4a0] sm:$0xff]
    %v258 = vld [vmem:[#allocation2 + $0x4a8] sm:$0xff]
    %v259 = vld [vmem:[#allocation2 + $0x4b0] sm:$0xff]
    %v260 = vld [vmem:[#allocation2 + $0x4b8] sm:$0xff]
    %v261 = vld [vmem:[#allocation2 + $0x4c0] sm:$0xff]
    %v262 = vld [vmem:[#allocation2 + $0x4c8] sm:$0xff]
    %v263 = vld [vmem:[#allocation2 + $0x4d0] sm:$0xff]
    %v264 = vld [vmem:[#allocation2 + $0x4d8] sm:$0xff]
    %v265 = vld [vmem:[#allocation2 + $0x4e0] sm:$0xff]
    %v266 = vld [vmem:[#allocation2 + $0x4e8] sm:$0xff]
    %v267 = vld [vmem:[#allocation2 + $0x4f0] sm:$0xff]
    %v268 = vld [vmem:[#allocation2 + $0x4f8] sm:$0xff]
    %v269 = vld [vmem:[#allocation2 + $0x500] sm:$0xff]
    %v270 = vld [vmem:[#allocation2 + $0x508] sm:$0xff]
    %v271 = vld [vmem:[#allocation2 + $0x510] sm:$0xff]
    %v272 = vld [vmem:[#allocation2 + $0x518] sm:$0xff]
    %v273 = vld [vmem:[#allocation2 + $0x520] sm:$0xff]
    %v274 = vld [vmem:[#allocation2 + $0x528] sm:$0xff]
    %v275 = vld [vmem:[#allocation2 + $0x530] sm:$0xff]
    %v276 = vld [vmem:[#allocation2 + $0x538] sm:$0xff]
    %v277 = vld [vmem:[#allocation2 + $0x540] sm:$0xff]
    %v278 = vld [vmem:[#allocation2 + $0x548] sm:$0xff]
    %v279 = vld [vmem:[#allocation2 + $0x550] sm:$0xff]
    %v280 = vld [vmem:[#allocation2 + $0x558] sm:$0xff]
    %v281 = vld [vmem:[#allocation2 + $0x560] sm:$0xff]
    %v282 = vld [vmem:[#allocation2 + $0x568] sm:$0xff]
    %v283 = vld [vmem:[#allocation2 + $0x570] sm:$0xff]
    %v284 = vld [vmem:[#allocation2 + $0x578] sm:$0xff]
    %v285 = vld [vmem:[#allocation2 + $0x580] sm:$0xff]
    %v286 = vld [vmem:[#allocation2 + $0x588] sm:$0xff]
    %v287 = vld [vmem:[#allocation2 + $0x590] sm:$0xff]
    %v288 = vld [vmem:[#allocation2 + $0x598] sm:$0xff]
    %v289 = vld [vmem:[#allocation2 + $0x5a0] sm:$0xff]
    %v290 = vld [vmem:[#allocation2 + $0x5a8] sm:$0xff]
    %v291 = vld [vmem:[#allocation2 + $0x5b0] sm:$0xff]
    %v292 = vld [vmem:[#allocation2 + $0x5b8] sm:$0xff]
    %v293 = vld [vmem:[#allocation2 + $0x5c0] sm:$0xff]
    %v294 = vld [vmem:[#allocation2 + $0x5c8] sm:$0xff]
    %v295 = vld [vmem:[#allocation2 + $0x5d0] sm:$0xff]
    %v296 = vld [vmem:[#allocation2 + $0x5d8] sm:$0xff]
    %v297 = vld [vmem:[#allocation2 + $0x5e0] sm:$0xff]
    %v298 = vld [vmem:[#allocation2 + $0x5e8] sm:$0xff]
    %v299 = vld [vmem:[#allocation2 + $0x5f0] sm:$0xff]
    %v300 = vld [vmem:[#allocation2 + $0x5f8] sm:$0xff]
    %v301 = vld [vmem:[#allocation2 + $0x600] sm:$0xff]
    %v302 = vld [vmem:[#allocation2 + $0x608] sm:$0xff]
    %v303 = vld [vmem:[#allocation2 + $0x610] sm:$0xff]
    %v304 = vld [vmem:[#allocation2 + $0x618] sm:$0xff]
    %v305 = vld [vmem:[#allocation2 + $0x620] sm:$0xff]
    %v306 = vld [vmem:[#allocation2 + $0x628] sm:$0xff]
    %v307 = vld [vmem:[#allocation2 + $0x630] sm:$0xff]
    %v308 = vld [vmem:[#allocation2 + $0x638] sm:$0xff]
    %v309 = vld [vmem:[#allocation2 + $0x640] sm:$0xff]
    %v310 = vld [vmem:[#allocation2 + $0x648] sm:$0xff]
    %v311 = vld [vmem:[#allocation2 + $0x650] sm:$0xff]
    %v312 = vld [vmem:[#allocation2 + $0x658] sm:$0xff]
    %v313 = vld [vmem:[#allocation2 + $0x660] sm:$0xff]
    %v314 = vld [vmem:[#allocation2 + $0x668] sm:$0xff]
    %v315 = vld [vmem:[#allocation2 + $0x670] sm:$0xff]
    %v316 = vld [vmem:[#allocation2 + $0x678] sm:$0xff]
    %v317 = vld [vmem:[#allocation2 + $0x680] sm:$0xff]
    %v318 = vld [vmem:[#allocation2 + $0x688] sm:$0xff]
    %v319 = vld [vmem:[#allocation2 + $0x690] sm:$0xff]
    %v320 = vld [vmem:[#allocation2 + $0x698] sm:$0xff]
    %v321 = vld [vmem:[#allocation2 + $0x6a0] sm:$0xff]
    %v322 = vld [vmem:[#allocation2 + $0x6a8] sm:$0xff]
    %v323 = vld [vmem:[#allocation2 + $0x6b0] sm:$0xff]
    %v324 = vld [vmem:[#allocation2 + $0x6b8] sm:$0xff]
    %v325 = vld [vmem:[#allocation2 + $0x6c0] sm:$0xff]
    %v326 = vld [vmem:[#allocation2 + $0x6c8] sm:$0xff]
    %v327 = vld [vmem:[#allocation2 + $0x6d0] sm:$0xff]
    %v328 = vld [vmem:[#allocation2 + $0x6d8] sm:$0xff]
    %v329 = vld [vmem:[#allocation2 + $0x6e0] sm:$0xff]
    %v330 = vld [vmem:[#allocation2 + $0x6e8] sm:$0xff]
    %v331 = vld [vmem:[#allocation2 + $0x6f0] sm:$0xff]
    %v332 = vld [vmem:[#allocation2 + $0x6f8] sm:$0xff]
    %v333 = vld [vmem:[#allocation2 + $0x700] sm:$0xff]
    %v334 = vld [vmem:[#allocation2 + $0x708] sm:$0xff]
    %v335 = vld [vmem:[#allocation2 + $0x710] sm:$0xff]
    %v336 = vld [vmem:[#allocation2 + $0x718] sm:$0xff]
    %v337 = vld [vmem:[#allocation2 + $0x720] sm:$0xff]
    %v338 = vld [vmem:[#allocation2 + $0x728] sm:$0xff]
    %v339 = vld [vmem:[#allocation2 + $0x730] sm:$0xff]
    %v340 = vld [vmem:[#allocation2 + $0x738] sm:$0xff]
    %v341 = vld [vmem:[#allocation2 + $0x740] sm:$0xff]
    %v342 = vld [vmem:[#allocation2 + $0x748] sm:$0xff]
    %v343 = vld [vmem:[#allocation2 + $0x750] sm:$0xff]
    %v344 = vld [vmem:[#allocation2 + $0x758] sm:$0xff]
    %v345 = vld [vmem:[#allocation2 + $0x760] sm:$0xff]
    %v346 = vld [vmem:[#allocation2 + $0x768] sm:$0xff]
    %v347 = vld [vmem:[#allocation2 + $0x770] sm:$0xff]
    %v348 = vld [vmem:[#allocation2 + $0x778] sm:$0xff]
    %v349 = vld [vmem:[#allocation2 + $0x780] sm:$0xff]
    %v350 = vld [vmem:[#allocation2 + $0x788] sm:$0xff]
    %v351 = vld [vmem:[#allocation2 + $0x790] sm:$0xff]
    %v352 = vld [vmem:[#allocation2 + $0x798] sm:$0xff]
    %v353 = vld [vmem:[#allocation2 + $0x7a0] sm:$0xff]
    %v354 = vld [vmem:[#allocation2 + $0x7a8] sm:$0xff]
    %v355 = vld [vmem:[#allocation2 + $0x7b0] sm:$0xff]
    %v356 = vld [vmem:[#allocation2 + $0x7b8] sm:$0xff]
    %v357 = vld [vmem:[#allocation2 + $0x7c0] sm:$0xff]
    %v358 = vld [vmem:[#allocation2 + $0x7c8] sm:$0xff]
    %v359 = vld [vmem:[#allocation2 + $0x7d0] sm:$0xff]
    %v360 = vld [vmem:[#allocation2 + $0x7d8] sm:$0xff]
    %v361 = vld [vmem:[#allocation2 + $0x7e0] sm:$0xff]
    %v362 = vld [vmem:[#allocation2 + $0x7e8] sm:$0xff]
    %v363 = vld [vmem:[#allocation2 + $0x7f0] sm:$0xff]
    %v364 = vld [vmem:[#allocation2 + $0x7f8] sm:$0xff]
    %v365 = vld [vmem:[#allocation2 + $0x800] sm:$0xff]
    %v366 = vld [vmem:[#allocation2 + $0x808] sm:$0xff]
    %v367 = vld [vmem:[#allocation2 + $0x810] sm:$0xff]
    %v368 = vld [vmem:[#allocation2 + $0x818] sm:$0xff]
    %v369 = vld [vmem:[#allocation2 + $0x820] sm:$0xff]
    %v370 = vld [vmem:[#allocation2 + $0x828] sm:$0xff]
    %v371 = vld [vmem:[#allocation2 + $0x830] sm:$0xff]
    %v372 = vld [vmem:[#allocation2 + $0x838] sm:$0xff]
    %v373 = vld [vmem:[#allocation2 + $0x840] sm:$0xff]
    %v374 = vld [vmem:[#allocation2 + $0x848] sm:$0xff]
    %v375 = vld [vmem:[#allocation2 + $0x850] sm:$0xff]
    %v376 = vld [vmem:[#allocation2 + $0x858] sm:$0xff]
    %v377 = vld [vmem:[#allocation2 + $0x860] sm:$0xff]
    %v378 = vld [vmem:[#allocation2 + $0x868] sm:$0xff]
    %v379 = vld [vmem:[#allocation2 + $0x870] sm:$0xff]
    %v380 = vld [vmem:[#allocation2 + $0x878] sm:$0xff]
    %v381 = vld [vmem:[#allocation2 + $0x880] sm:$0xff]
    %v382 = vld [vmem:[#allocation2 + $0x888] sm:$0xff]
    %v383 = vld [vmem:[#allocation2 + $0x890] sm:$0xff]
    %v384 = vld [vmem:[#allocation2 + $0x898] sm:$0xff]
    %v385 = vld [vmem:[#allocation2 + $0x8a0] sm:$0xff]
    %v386 = vld [vmem:[#allocation2 + $0x8a8] sm:$0xff]
    %v387 = vld [vmem:[#allocation2 + $0x8b0] sm:$0xff]
    %v388 = vld [vmem:[#allocation2 + $0x8b8] sm:$0xff]
    %v389 = vld [vmem:[#allocation2 + $0x8c0] sm:$0xff]
    %v390 = vld [vmem:[#allocation2 + $0x8c8] sm:$0xff]
    %v391 = vld [vmem:[#allocation2 + $0x8d0] sm:$0xff]
    %v392 = vld [vmem:[#allocation2 + $0x8d8] sm:$0xff]
    %v393 = vld [vmem:[#allocation2 + $0x8e0] sm:$0xff]
    %v394 = vld [vmem:[#allocation2 + $0x8e8] sm:$0xff]
    %v395 = vld [vmem:[#allocation2 + $0x8f0] sm:$0xff]
    %v396 = vld [vmem:[#allocation2 + $0x8f8] sm:$0xff]
    %v397 = vld [vmem:[#allocation4] sm:$0x3f]
    %v399 = vlaneseq
    %v400 = vshrl.u32 %v399, 7
    %v401 = vsub.s32 0, %v400
    %v402 = vrot.slane %v397, %v401
    %v403 = vlaneseq
    %v404 = vshrl.u32 %v403, 7
    %v405 = vsub.s32 1, %v404
    %v406 = vrot.slane %v397, %v405
    %v407 = vlaneseq
    %v408 = vshrl.u32 %v407, 7
    %v409 = vsub.s32 2, %v408
    %v410 = vrot.slane %v397, %v409
    %v411 = vlaneseq
    %v412 = vshrl.u32 %v411, 7
    %v413 = vsub.s32 3, %v412
    %v414 = vrot.slane %v397, %v413
    %v415 = vlaneseq
    %v416 = vshrl.u32 %v415, 7
    %v417 = vsub.s32 4, %v416
    %v418 = vrot.slane %v397, %v417
    %v419 = vlaneseq
    %v420 = vshrl.u32 %v419, 7
    %v421 = vsub.s32 5, %v420
    %v422 = vrot.slane %v397, %v421
    %v435 = vunpack.c.l.b16 %v103
    %v436 = vunpack.c.h.b16 %v103
    %v437 = vunpack.c.l.b16 %v104
    %v438 = vunpack.c.h.b16 %v104
    %v439 = vunpack.c.l.b16 %v105
    %v440 = vunpack.c.h.b16 %v105
    %v441 = vunpack.c.l.b16 %v106
    %v442 = vunpack.c.h.b16 %v106
    %v443 = vunpack.c.l.b16 %v107
    %v444 = vunpack.c.h.b16 %v107
    %v445 = vunpack.c.l.b16 %v108
    %v446 = vunpack.c.h.b16 %v108
    %v447 = vpack.c.b16 %v441, %v435
    %v448 = vpack.c.b16 %v442, %v436
    %v449 = vpack.c.b16 %v443, %v437
    %v450 = vpack.c.b16 %v444, %v438
    %v451 = vpack.c.b16 %v445, %v439
    %v452 = vpack.c.b16 %v446, %v440
    %v747 = vunpack.c.l.b16 %v109
    %v748 = vunpack.c.h.b16 %v109
    %v749 = vunpack.c.l.b16 %v110
    %v750 = vunpack.c.h.b16 %v110
    %v751 = vunpack.c.l.b16 %v111
    %v752 = vunpack.c.h.b16 %v111
    %v753 = vunpack.c.l.b16 %v112
    %v754 = vunpack.c.h.b16 %v112
    %v755 = vunpack.c.l.b16 %v113
    %v756 = vunpack.c.h.b16 %v113
    %v757 = vunpack.c.l.b16 %v114
    %v758 = vunpack.c.h.b16 %v114
    %v759 = vunpack.c.l.b16 %v115
    %v760 = vunpack.c.h.b16 %v115
    %v761 = vunpack.c.l.b16 %v116
    %v762 = vunpack.c.h.b16 %v116
    %v763 = vunpack.c.l.b16 %v117
    %v764 = vunpack.c.h.b16 %v117
    %v765 = vunpack.c.l.b16 %v118
    %v766 = vunpack.c.h.b16 %v118
    %v767 = vunpack.c.l.b16 %v119
    %v768 = vunpack.c.h.b16 %v119
    %v769 = vunpack.c.l.b16 %v120
    %v770 = vunpack.c.h.b16 %v120
    %v771 = vunpack.c.l.b16 %v121
    %v772 = vunpack.c.h.b16 %v121
    %v773 = vunpack.c.l.b16 %v122
    %v774 = vunpack.c.h.b16 %v122
    %v775 = vunpack.c.l.b16 %v123
    %v776 = vunpack.c.h.b16 %v123
    %v777 = vunpack.c.l.b16 %v124
    %v778 = vunpack.c.h.b16 %v124
    %v779 = vunpack.c.l.b16 %v125
    %v780 = vunpack.c.h.b16 %v125
    %v781 = vunpack.c.l.b16 %v126
    %v782 = vunpack.c.h.b16 %v126
    %v783 = vunpack.c.l.b16 %v127
    %v784 = vunpack.c.h.b16 %v127
    %v785 = vunpack.c.l.b16 %v128
    %v786 = vunpack.c.h.b16 %v128
    %v787 = vunpack.c.l.b16 %v129
    %v788 = vunpack.c.h.b16 %v129
    %v789 = vunpack.c.l.b16 %v130
    %v790 = vunpack.c.h.b16 %v130
    %v791 = vunpack.c.l.b16 %v131
    %v792 = vunpack.c.h.b16 %v131
    %v793 = vunpack.c.l.b16 %v132
    %v794 = vunpack.c.h.b16 %v132
    %v795 = vunpack.c.l.b16 %v133
    %v796 = vunpack.c.h.b16 %v133
    %v797 = vunpack.c.l.b16 %v134
    %v798 = vunpack.c.h.b16 %v134
    %v799 = vunpack.c.l.b16 %v135
    %v800 = vunpack.c.h.b16 %v135
    %v801 = vunpack.c.l.b16 %v136
    %v802 = vunpack.c.h.b16 %v136
    %v803 = vunpack.c.l.b16 %v137
    %v804 = vunpack.c.h.b16 %v137
    %v805 = vunpack.c.l.b16 %v138
    %v806 = vunpack.c.h.b16 %v138
    %v807 = vunpack.c.l.b16 %v139
    %v808 = vunpack.c.h.b16 %v139
    %v809 = vunpack.c.l.b16 %v140
    %v810 = vunpack.c.h.b16 %v140
    %v811 = vunpack.c.l.b16 %v141
    %v812 = vunpack.c.h.b16 %v141
    %v813 = vunpack.c.l.b16 %v142
    %v814 = vunpack.c.h.b16 %v142
    %v815 = vunpack.c.l.b16 %v143
    %v816 = vunpack.c.h.b16 %v143
    %v817 = vunpack.c.l.b16 %v144
    %v818 = vunpack.c.h.b16 %v144
    %v819 = vunpack.c.l.b16 %v145
    %v820 = vunpack.c.h.b16 %v145
    %v821 = vunpack.c.l.b16 %v146
    %v822 = vunpack.c.h.b16 %v146
    %v823 = vunpack.c.l.b16 %v147
    %v824 = vunpack.c.h.b16 %v147
    %v825 = vunpack.c.l.b16 %v148
    %v826 = vunpack.c.h.b16 %v148
    %v827 = vunpack.c.l.b16 %v149
    %v828 = vunpack.c.h.b16 %v149
    %v829 = vunpack.c.l.b16 %v150
    %v830 = vunpack.c.h.b16 %v150
    %v831 = vunpack.c.l.b16 %v151
    %v832 = vunpack.c.h.b16 %v151
    %v833 = vunpack.c.l.b16 %v152
    %v834 = vunpack.c.h.b16 %v152
    %v835 = vunpack.c.l.b16 %v153
    %v836 = vunpack.c.h.b16 %v153
    %v837 = vunpack.c.l.b16 %v154
    %v838 = vunpack.c.h.b16 %v154
    %v839 = vunpack.c.l.b16 %v155
    %v840 = vunpack.c.h.b16 %v155
    %v841 = vunpack.c.l.b16 %v156
    %v842 = vunpack.c.h.b16 %v156
    %v843 = vunpack.c.l.b16 %v157
    %v844 = vunpack.c.h.b16 %v157
    %v845 = vunpack.c.l.b16 %v158
    %v846 = vunpack.c.h.b16 %v158
    %v847 = vunpack.c.l.b16 %v159
    %v848 = vunpack.c.h.b16 %v159
    %v849 = vunpack.c.l.b16 %v160
    %v850 = vunpack.c.h.b16 %v160
    %v851 = vunpack.c.l.b16 %v161
    %v852 = vunpack.c.h.b16 %v161
    %v853 = vunpack.c.l.b16 %v162
    %v854 = vunpack.c.h.b16 %v162
    %v855 = vunpack.c.l.b16 %v163
    %v856 = vunpack.c.h.b16 %v163
    %v857 = vunpack.c.l.b16 %v164
    %v858 = vunpack.c.h.b16 %v164
    %v859 = vunpack.c.l.b16 %v165
    %v860 = vunpack.c.h.b16 %v165
    %v861 = vunpack.c.l.b16 %v166
    %v862 = vunpack.c.h.b16 %v166
    %v863 = vunpack.c.l.b16 %v167
    %v864 = vunpack.c.h.b16 %v167
    %v865 = vunpack.c.l.b16 %v168
    %v866 = vunpack.c.h.b16 %v168
    %v867 = vunpack.c.l.b16 %v169
    %v868 = vunpack.c.h.b16 %v169
    %v869 = vunpack.c.l.b16 %v170
    %v870 = vunpack.c.h.b16 %v170
    %v871 = vunpack.c.l.b16 %v171
    %v872 = vunpack.c.h.b16 %v171
    %v873 = vunpack.c.l.b16 %v172
    %v874 = vunpack.c.h.b16 %v172
    %v875 = vunpack.c.l.b16 %v173
    %v876 = vunpack.c.h.b16 %v173
    %v877 = vunpack.c.l.b16 %v174
    %v878 = vunpack.c.h.b16 %v174
    %v879 = vunpack.c.l.b16 %v175
    %v880 = vunpack.c.h.b16 %v175
    %v881 = vunpack.c.l.b16 %v176
    %v882 = vunpack.c.h.b16 %v176
    %v883 = vunpack.c.l.b16 %v177
    %v884 = vunpack.c.h.b16 %v177
    %v885 = vunpack.c.l.b16 %v178
    %v886 = vunpack.c.h.b16 %v178
    %v887 = vunpack.c.l.b16 %v179
    %v888 = vunpack.c.h.b16 %v179
    %v889 = vunpack.c.l.b16 %v180
    %v890 = vunpack.c.h.b16 %v180
    %v891 = vunpack.c.l.b16 %v181
    %v892 = vunpack.c.h.b16 %v181
    %v893 = vunpack.c.l.b16 %v182
    %v894 = vunpack.c.h.b16 %v182
    %v895 = vunpack.c.l.b16 %v183
    %v896 = vunpack.c.h.b16 %v183
    %v897 = vunpack.c.l.b16 %v184
    %v898 = vunpack.c.h.b16 %v184
    %v899 = vunpack.c.l.b16 %v185
    %v900 = vunpack.c.h.b16 %v185
    %v901 = vunpack.c.l.b16 %v186
    %v902 = vunpack.c.h.b16 %v186
    %v903 = vunpack.c.l.b16 %v187
    %v904 = vunpack.c.h.b16 %v187
    %v905 = vunpack.c.l.b16 %v188
    %v906 = vunpack.c.h.b16 %v188
    %v907 = vunpack.c.l.b16 %v189
    %v908 = vunpack.c.h.b16 %v189
    %v909 = vunpack.c.l.b16 %v190
    %v910 = vunpack.c.h.b16 %v190
    %v911 = vunpack.c.l.b16 %v191
    %v912 = vunpack.c.h.b16 %v191
    %v913 = vunpack.c.l.b16 %v192
    %v914 = vunpack.c.h.b16 %v192
    %v915 = vunpack.c.l.b16 %v193
    %v916 = vunpack.c.h.b16 %v193
    %v917 = vunpack.c.l.b16 %v194
    %v918 = vunpack.c.h.b16 %v194
    %v919 = vunpack.c.l.b16 %v195
    %v920 = vunpack.c.h.b16 %v195
    %v921 = vunpack.c.l.b16 %v196
    %v922 = vunpack.c.h.b16 %v196
    %v923 = vunpack.c.l.b16 %v197
    %v924 = vunpack.c.h.b16 %v197
    %v925 = vunpack.c.l.b16 %v198
    %v926 = vunpack.c.h.b16 %v198
    %v927 = vunpack.c.l.b16 %v199
    %v928 = vunpack.c.h.b16 %v199
    %v929 = vunpack.c.l.b16 %v200
    %v930 = vunpack.c.h.b16 %v200
    %v931 = vunpack.c.l.b16 %v201
    %v932 = vunpack.c.h.b16 %v201
    %v933 = vunpack.c.l.b16 %v202
    %v934 = vunpack.c.h.b16 %v202
    %v935 = vunpack.c.l.b16 %v203
    %v936 = vunpack.c.h.b16 %v203
    %v937 = vunpack.c.l.b16 %v204
    %v938 = vunpack.c.h.b16 %v204
    %v939 = vunpack.c.l.b16 %v205
    %v940 = vunpack.c.h.b16 %v205
    %v941 = vunpack.c.l.b16 %v206
    %v942 = vunpack.c.h.b16 %v206
    %v943 = vunpack.c.l.b16 %v207
    %v944 = vunpack.c.h.b16 %v207
    %v945 = vunpack.c.l.b16 %v208
    %v946 = vunpack.c.h.b16 %v208
    %v947 = vunpack.c.l.b16 %v209
    %v948 = vunpack.c.h.b16 %v209
    %v949 = vunpack.c.l.b16 %v210
    %v950 = vunpack.c.h.b16 %v210
    %v951 = vunpack.c.l.b16 %v211
    %v952 = vunpack.c.h.b16 %v211
    %v953 = vunpack.c.l.b16 %v212
    %v954 = vunpack.c.h.b16 %v212
    %v955 = vunpack.c.l.b16 %v213
    %v956 = vunpack.c.h.b16 %v213
    %v957 = vunpack.c.l.b16 %v214
    %v958 = vunpack.c.h.b16 %v214
    %v959 = vunpack.c.l.b16 %v215
    %v960 = vunpack.c.h.b16 %v215
    %v961 = vunpack.c.l.b16 %v216
    %v962 = vunpack.c.h.b16 %v216
    %v963 = vunpack.c.l.b16 %v217
    %v964 = vunpack.c.h.b16 %v217
    %v965 = vunpack.c.l.b16 %v218
    %v966 = vunpack.c.h.b16 %v218
    %v967 = vunpack.c.l.b16 %v219
    %v968 = vunpack.c.h.b16 %v219
    %v969 = vunpack.c.l.b16 %v220
    %v970 = vunpack.c.h.b16 %v220
    %v971 = vunpack.c.l.b16 %v221
    %v972 = vunpack.c.h.b16 %v221
    %v973 = vunpack.c.l.b16 %v222
    %v974 = vunpack.c.h.b16 %v222
    %v975 = vunpack.c.l.b16 %v223
    %v976 = vunpack.c.h.b16 %v223
    %v977 = vunpack.c.l.b16 %v224
    %v978 = vunpack.c.h.b16 %v224
    %v979 = vunpack.c.l.b16 %v225
    %v980 = vunpack.c.h.b16 %v225
    %v981 = vunpack.c.l.b16 %v226
    %v982 = vunpack.c.h.b16 %v226
    %v983 = vunpack.c.l.b16 %v227
    %v984 = vunpack.c.h.b16 %v227
    %v985 = vunpack.c.l.b16 %v228
    %v986 = vunpack.c.h.b16 %v228
    %v987 = vunpack.c.l.b16 %v229
    %v988 = vunpack.c.h.b16 %v229
    %v989 = vunpack.c.l.b16 %v230
    %v990 = vunpack.c.h.b16 %v230
    %v991 = vunpack.c.l.b16 %v231
    %v992 = vunpack.c.h.b16 %v231
    %v993 = vunpack.c.l.b16 %v232
    %v994 = vunpack.c.h.b16 %v232
    %v995 = vunpack.c.l.b16 %v233
    %v996 = vunpack.c.h.b16 %v233
    %v997 = vunpack.c.l.b16 %v234
    %v998 = vunpack.c.h.b16 %v234
    %v999 = vunpack.c.l.b16 %v235
    %v1000 = vunpack.c.h.b16 %v235
    %v1001 = vunpack.c.l.b16 %v236
    %v1002 = vunpack.c.h.b16 %v236
    %v1003 = vunpack.c.l.b16 %v237
    %v1004 = vunpack.c.h.b16 %v237
    %v1005 = vunpack.c.l.b16 %v238
    %v1006 = vunpack.c.h.b16 %v238
    %v1007 = vunpack.c.l.b16 %v239
    %v1008 = vunpack.c.h.b16 %v239
    %v1009 = vunpack.c.l.b16 %v240
    %v1010 = vunpack.c.h.b16 %v240
    %v1011 = vunpack.c.l.b16 %v241
    %v1012 = vunpack.c.h.b16 %v241
    %v1013 = vunpack.c.l.b16 %v242
    %v1014 = vunpack.c.h.b16 %v242
    %v1015 = vunpack.c.l.b16 %v243
    %v1016 = vunpack.c.h.b16 %v243
    %v1017 = vunpack.c.l.b16 %v244
    %v1018 = vunpack.c.h.b16 %v244
    %v1019 = vunpack.c.l.b16 %v245
    %v1020 = vunpack.c.h.b16 %v245
    %v1021 = vunpack.c.l.b16 %v246
    %v1022 = vunpack.c.h.b16 %v246
    %v1023 = vunpack.c.l.b16 %v247
    %v1024 = vunpack.c.h.b16 %v247
    %v1025 = vunpack.c.l.b16 %v248
    %v1026 = vunpack.c.h.b16 %v248
    %v1027 = vunpack.c.l.b16 %v249
    %v1028 = vunpack.c.h.b16 %v249
    %v1029 = vunpack.c.l.b16 %v250
    %v1030 = vunpack.c.h.b16 %v250
    %v1031 = vunpack.c.l.b16 %v251
    %v1032 = vunpack.c.h.b16 %v251
    %v1033 = vunpack.c.l.b16 %v252
    %v1034 = vunpack.c.h.b16 %v252
    %v1035 = vunpack.c.l.b16 %v253
    %v1036 = vunpack.c.h.b16 %v253
    %v1037 = vunpack.c.l.b16 %v254
    %v1038 = vunpack.c.h.b16 %v254
    %v1039 = vunpack.c.l.b16 %v255
    %v1040 = vunpack.c.h.b16 %v255
    %v1041 = vunpack.c.l.b16 %v256
    %v1042 = vunpack.c.h.b16 %v256
    %v1043 = vunpack.c.l.b16 %v257
    %v1044 = vunpack.c.h.b16 %v257
    %v1045 = vunpack.c.l.b16 %v258
    %v1046 = vunpack.c.h.b16 %v258
    %v1047 = vunpack.c.l.b16 %v259
    %v1048 = vunpack.c.h.b16 %v259
    %v1049 = vunpack.c.l.b16 %v260
    %v1050 = vunpack.c.h.b16 %v260
    %v1051 = vunpack.c.l.b16 %v261
    %v1052 = vunpack.c.h.b16 %v261
    %v1053 = vunpack.c.l.b16 %v262
    %v1054 = vunpack.c.h.b16 %v262
    %v1055 = vunpack.c.l.b16 %v263
    %v1056 = vunpack.c.h.b16 %v263
    %v1057 = vunpack.c.l.b16 %v264
    %v1058 = vunpack.c.h.b16 %v264
    %v1059 = vunpack.c.l.b16 %v265
    %v1060 = vunpack.c.h.b16 %v265
    %v1061 = vunpack.c.l.b16 %v266
    %v1062 = vunpack.c.h.b16 %v266
    %v1063 = vunpack.c.l.b16 %v267
    %v1064 = vunpack.c.h.b16 %v267
    %v1065 = vunpack.c.l.b16 %v268
    %v1066 = vunpack.c.h.b16 %v268
    %v1067 = vunpack.c.l.b16 %v269
    %v1068 = vunpack.c.h.b16 %v269
    %v1069 = vunpack.c.l.b16 %v270
    %v1070 = vunpack.c.h.b16 %v270
    %v1071 = vunpack.c.l.b16 %v271
    %v1072 = vunpack.c.h.b16 %v271
    %v1073 = vunpack.c.l.b16 %v272
    %v1074 = vunpack.c.h.b16 %v272
    %v1075 = vunpack.c.l.b16 %v273
    %v1076 = vunpack.c.h.b16 %v273
    %v1077 = vunpack.c.l.b16 %v274
    %v1078 = vunpack.c.h.b16 %v274
    %v1079 = vunpack.c.l.b16 %v275
    %v1080 = vunpack.c.h.b16 %v275
    %v1081 = vunpack.c.l.b16 %v276
    %v1082 = vunpack.c.h.b16 %v276
    %v1083 = vunpack.c.l.b16 %v277
    %v1084 = vunpack.c.h.b16 %v277
    %v1085 = vunpack.c.l.b16 %v278
    %v1086 = vunpack.c.h.b16 %v278
    %v1087 = vunpack.c.l.b16 %v279
    %v1088 = vunpack.c.h.b16 %v279
    %v1089 = vunpack.c.l.b16 %v280
    %v1090 = vunpack.c.h.b16 %v280
    %v1091 = vunpack.c.l.b16 %v281
    %v1092 = vunpack.c.h.b16 %v281
    %v1093 = vunpack.c.l.b16 %v282
    %v1094 = vunpack.c.h.b16 %v282
    %v1095 = vunpack.c.l.b16 %v283
    %v1096 = vunpack.c.h.b16 %v283
    %v1097 = vunpack.c.l.b16 %v284
    %v1098 = vunpack.c.h.b16 %v284
    %v1099 = vunpack.c.l.b16 %v285
    %v1100 = vunpack.c.h.b16 %v285
    %v1101 = vunpack.c.l.b16 %v286
    %v1102 = vunpack.c.h.b16 %v286
    %v1103 = vunpack.c.l.b16 %v287
    %v1104 = vunpack.c.h.b16 %v287
    %v1105 = vunpack.c.l.b16 %v288
    %v1106 = vunpack.c.h.b16 %v288
    %v1107 = vunpack.c.l.b16 %v289
    %v1108 = vunpack.c.h.b16 %v289
    %v1109 = vunpack.c.l.b16 %v290
    %v1110 = vunpack.c.h.b16 %v290
    %v1111 = vunpack.c.l.b16 %v291
    %v1112 = vunpack.c.h.b16 %v291
    %v1113 = vunpack.c.l.b16 %v292
    %v1114 = vunpack.c.h.b16 %v292
    %v1115 = vunpack.c.l.b16 %v293
    %v1116 = vunpack.c.h.b16 %v293
    %v1117 = vunpack.c.l.b16 %v294
    %v1118 = vunpack.c.h.b16 %v294
    %v1119 = vunpack.c.l.b16 %v295
    %v1120 = vunpack.c.h.b16 %v295
    %v1121 = vunpack.c.l.b16 %v296
    %v1122 = vunpack.c.h.b16 %v296
    %v1123 = vunpack.c.l.b16 %v297
    %v1124 = vunpack.c.h.b16 %v297
    %v1125 = vunpack.c.l.b16 %v298
    %v1126 = vunpack.c.h.b16 %v298
    %v1127 = vunpack.c.l.b16 %v299
    %v1128 = vunpack.c.h.b16 %v299
    %v1129 = vunpack.c.l.b16 %v300
    %v1130 = vunpack.c.h.b16 %v300
    %v1131 = vunpack.c.l.b16 %v301
    %v1132 = vunpack.c.h.b16 %v301
    %v1133 = vunpack.c.l.b16 %v302
    %v1134 = vunpack.c.h.b16 %v302
    %v1135 = vunpack.c.l.b16 %v303
    %v1136 = vunpack.c.h.b16 %v303
    %v1137 = vunpack.c.l.b16 %v304
    %v1138 = vunpack.c.h.b16 %v304
    %v1139 = vunpack.c.l.b16 %v305
    %v1140 = vunpack.c.h.b16 %v305
    %v1141 = vunpack.c.l.b16 %v306
    %v1142 = vunpack.c.h.b16 %v306
    %v1143 = vunpack.c.l.b16 %v307
    %v1144 = vunpack.c.h.b16 %v307
    %v1145 = vunpack.c.l.b16 %v308
    %v1146 = vunpack.c.h.b16 %v308
    %v1147 = vunpack.c.l.b16 %v309
    %v1148 = vunpack.c.h.b16 %v309
    %v1149 = vunpack.c.l.b16 %v310
    %v1150 = vunpack.c.h.b16 %v310
    %v1151 = vunpack.c.l.b16 %v311
    %v1152 = vunpack.c.h.b16 %v311
    %v1153 = vunpack.c.l.b16 %v312
    %v1154 = vunpack.c.h.b16 %v312
    %v1155 = vunpack.c.l.b16 %v313
    %v1156 = vunpack.c.h.b16 %v313
    %v1157 = vunpack.c.l.b16 %v314
    %v1158 = vunpack.c.h.b16 %v314
    %v1159 = vunpack.c.l.b16 %v315
    %v1160 = vunpack.c.h.b16 %v315
    %v1161 = vunpack.c.l.b16 %v316
    %v1162 = vunpack.c.h.b16 %v316
    %v1163 = vunpack.c.l.b16 %v317
    %v1164 = vunpack.c.h.b16 %v317
    %v1165 = vunpack.c.l.b16 %v318
    %v1166 = vunpack.c.h.b16 %v318
    %v1167 = vunpack.c.l.b16 %v319
    %v1168 = vunpack.c.h.b16 %v319
    %v1169 = vunpack.c.l.b16 %v320
    %v1170 = vunpack.c.h.b16 %v320
    %v1171 = vunpack.c.l.b16 %v321
    %v1172 = vunpack.c.h.b16 %v321
    %v1173 = vunpack.c.l.b16 %v322
    %v1174 = vunpack.c.h.b16 %v322
    %v1175 = vunpack.c.l.b16 %v323
    %v1176 = vunpack.c.h.b16 %v323
    %v1177 = vunpack.c.l.b16 %v324
    %v1178 = vunpack.c.h.b16 %v324
    %v1179 = vunpack.c.l.b16 %v325
    %v1180 = vunpack.c.h.b16 %v325
    %v1181 = vunpack.c.l.b16 %v326
    %v1182 = vunpack.c.h.b16 %v326
    %v1183 = vunpack.c.l.b16 %v327
    %v1184 = vunpack.c.h.b16 %v327
    %v1185 = vunpack.c.l.b16 %v328
    %v1186 = vunpack.c.h.b16 %v328
    %v1187 = vunpack.c.l.b16 %v329
    %v1188 = vunpack.c.h.b16 %v329
    %v1189 = vunpack.c.l.b16 %v330
    %v1190 = vunpack.c.h.b16 %v330
    %v1191 = vunpack.c.l.b16 %v331
    %v1192 = vunpack.c.h.b16 %v331
    %v1193 = vunpack.c.l.b16 %v332
    %v1194 = vunpack.c.h.b16 %v332
    %v1195 = vunpack.c.l.b16 %v333
    %v1196 = vunpack.c.h.b16 %v333
    %v1197 = vunpack.c.l.b16 %v334
    %v1198 = vunpack.c.h.b16 %v334
    %v1199 = vunpack.c.l.b16 %v335
    %v1200 = vunpack.c.h.b16 %v335
    %v1201 = vunpack.c.l.b16 %v336
    %v1202 = vunpack.c.h.b16 %v336
    %v1203 = vunpack.c.l.b16 %v337
    %v1204 = vunpack.c.h.b16 %v337
    %v1205 = vunpack.c.l.b16 %v338
    %v1206 = vunpack.c.h.b16 %v338
    %v1207 = vunpack.c.l.b16 %v339
    %v1208 = vunpack.c.h.b16 %v339
    %v1209 = vunpack.c.l.b16 %v340
    %v1210 = vunpack.c.h.b16 %v340
    %v1211 = vunpack.c.l.b16 %v341
    %v1212 = vunpack.c.h.b16 %v341
    %v1213 = vunpack.c.l.b16 %v342
    %v1214 = vunpack.c.h.b16 %v342
    %v1215 = vunpack.c.l.b16 %v343
    %v1216 = vunpack.c.h.b16 %v343
    %v1217 = vunpack.c.l.b16 %v344
    %v1218 = vunpack.c.h.b16 %v344
    %v1219 = vunpack.c.l.b16 %v345
    %v1220 = vunpack.c.h.b16 %v345
    %v1221 = vunpack.c.l.b16 %v346
    %v1222 = vunpack.c.h.b16 %v346
    %v1223 = vunpack.c.l.b16 %v347
    %v1224 = vunpack.c.h.b16 %v347
    %v1225 = vunpack.c.l.b16 %v348
    %v1226 = vunpack.c.h.b16 %v348
    %v1227 = vunpack.c.l.b16 %v349
    %v1228 = vunpack.c.h.b16 %v349
    %v1229 = vunpack.c.l.b16 %v350
    %v1230 = vunpack.c.h.b16 %v350
    %v1231 = vunpack.c.l.b16 %v351
    %v1232 = vunpack.c.h.b16 %v351
    %v1233 = vunpack.c.l.b16 %v352
    %v1234 = vunpack.c.h.b16 %v352
    %v1235 = vunpack.c.l.b16 %v353
    %v1236 = vunpack.c.h.b16 %v353
    %v1237 = vunpack.c.l.b16 %v354
    %v1238 = vunpack.c.h.b16 %v354
    %v1239 = vunpack.c.l.b16 %v355
    %v1240 = vunpack.c.h.b16 %v355
    %v1241 = vunpack.c.l.b16 %v356
    %v1242 = vunpack.c.h.b16 %v356
    %v1243 = vunpack.c.l.b16 %v357
    %v1244 = vunpack.c.h.b16 %v357
    %v1245 = vunpack.c.l.b16 %v358
    %v1246 = vunpack.c.h.b16 %v358
    %v1247 = vunpack.c.l.b16 %v359
    %v1248 = vunpack.c.h.b16 %v359
    %v1249 = vunpack.c.l.b16 %v360
    %v1250 = vunpack.c.h.b16 %v360
    %v1251 = vunpack.c.l.b16 %v361
    %v1252 = vunpack.c.h.b16 %v361
    %v1253 = vunpack.c.l.b16 %v362
    %v1254 = vunpack.c.h.b16 %v362
    %v1255 = vunpack.c.l.b16 %v363
    %v1256 = vunpack.c.h.b16 %v363
    %v1257 = vunpack.c.l.b16 %v364
    %v1258 = vunpack.c.h.b16 %v364
    %v1259 = vunpack.c.l.b16 %v365
    %v1260 = vunpack.c.h.b16 %v365
    %v1261 = vunpack.c.l.b16 %v366
    %v1262 = vunpack.c.h.b16 %v366
    %v1263 = vunpack.c.l.b16 %v367
    %v1264 = vunpack.c.h.b16 %v367
    %v1265 = vunpack.c.l.b16 %v368
    %v1266 = vunpack.c.h.b16 %v368
    %v1267 = vunpack.c.l.b16 %v369
    %v1268 = vunpack.c.h.b16 %v369
    %v1269 = vunpack.c.l.b16 %v370
    %v1270 = vunpack.c.h.b16 %v370
    %v1271 = vunpack.c.l.b16 %v371
    %v1272 = vunpack.c.h.b16 %v371
    %v1273 = vunpack.c.l.b16 %v372
    %v1274 = vunpack.c.h.b16 %v372
    %v1275 = vunpack.c.l.b16 %v373
    %v1276 = vunpack.c.h.b16 %v373
    %v1277 = vunpack.c.l.b16 %v374
    %v1278 = vunpack.c.h.b16 %v374
    %v1279 = vunpack.c.l.b16 %v375
    %v1280 = vunpack.c.h.b16 %v375
    %v1281 = vunpack.c.l.b16 %v376
    %v1282 = vunpack.c.h.b16 %v376
    %v1283 = vunpack.c.l.b16 %v377
    %v1284 = vunpack.c.h.b16 %v377
    %v1285 = vunpack.c.l.b16 %v378
    %v1286 = vunpack.c.h.b16 %v378
    %v1287 = vunpack.c.l.b16 %v379
    %v1288 = vunpack.c.h.b16 %v379
    %v1289 = vunpack.c.l.b16 %v380
    %v1290 = vunpack.c.h.b16 %v380
    %v1291 = vunpack.c.l.b16 %v381
    %v1292 = vunpack.c.h.b16 %v381
    %v1293 = vunpack.c.l.b16 %v382
    %v1294 = vunpack.c.h.b16 %v382
    %v1295 = vunpack.c.l.b16 %v383
    %v1296 = vunpack.c.h.b16 %v383
    %v1297 = vunpack.c.l.b16 %v384
    %v1298 = vunpack.c.h.b16 %v384
    %v1299 = vunpack.c.l.b16 %v385
    %v1300 = vunpack.c.h.b16 %v385
    %v1301 = vunpack.c.l.b16 %v386
    %v1302 = vunpack.c.h.b16 %v386
    %v1303 = vunpack.c.l.b16 %v387
    %v1304 = vunpack.c.h.b16 %v387
    %v1305 = vunpack.c.l.b16 %v388
    %v1306 = vunpack.c.h.b16 %v388
    %v1307 = vunpack.c.l.b16 %v389
    %v1308 = vunpack.c.h.b16 %v389
    %v1309 = vunpack.c.l.b16 %v390
    %v1310 = vunpack.c.h.b16 %v390
    %v1311 = vunpack.c.l.b16 %v391
    %v1312 = vunpack.c.h.b16 %v391
    %v1313 = vunpack.c.l.b16 %v392
    %v1314 = vunpack.c.h.b16 %v392
    %v1315 = vunpack.c.l.b16 %v393
    %v1316 = vunpack.c.h.b16 %v393
    %v1317 = vunpack.c.l.b16 %v394
    %v1318 = vunpack.c.h.b16 %v394
    %v1319 = vunpack.c.l.b16 %v395
    %v1320 = vunpack.c.h.b16 %v395
    %v1321 = vunpack.c.l.b16 %v396
    %v1322 = vunpack.c.h.b16 %v396
    %v1323 = vpack.c.b16 %v753, %v747
    %v1324 = vpack.c.b16 %v754, %v748
    %v1325 = vpack.c.b16 %v755, %v749
    %v1326 = vpack.c.b16 %v756, %v750
    %v1327 = vpack.c.b16 %v757, %v751
    %v1328 = vpack.c.b16 %v758, %v752
    %v1329 = vpack.c.b16 %v765, %v759
    %v1330 = vpack.c.b16 %v766, %v760
    %v1331 = vpack.c.b16 %v767, %v761
    %v1332 = vpack.c.b16 %v768, %v762
    %v1333 = vpack.c.b16 %v769, %v763
    %v1334 = vpack.c.b16 %v770, %v764
    %v1335 = vpack.c.b16 %v777, %v771
    %v1336 = vpack.c.b16 %v778, %v772
    %v1337 = vpack.c.b16 %v779, %v773
    %v1338 = vpack.c.b16 %v780, %v774
    %v1339 = vpack.c.b16 %v781, %v775
    %v1340 = vpack.c.b16 %v782, %v776
    %v1341 = vpack.c.b16 %v789, %v783
    %v1342 = vpack.c.b16 %v790, %v784
    %v1343 = vpack.c.b16 %v791, %v785
    %v1344 = vpack.c.b16 %v792, %v786
    %v1345 = vpack.c.b16 %v793, %v787
    %v1346 = vpack.c.b16 %v794, %v788
    %v1347 = vpack.c.b16 %v801, %v795
    %v1348 = vpack.c.b16 %v802, %v796
    %v1349 = vpack.c.b16 %v803, %v797
    %v1350 = vpack.c.b16 %v804, %v798
    %v1351 = vpack.c.b16 %v805, %v799
    %v1352 = vpack.c.b16 %v806, %v800
    %v1353 = vpack.c.b16 %v813, %v807
    %v1354 = vpack.c.b16 %v814, %v808
    %v1355 = vpack.c.b16 %v815, %v809
    %v1356 = vpack.c.b16 %v816, %v810
    %v1357 = vpack.c.b16 %v817, %v811
    %v1358 = vpack.c.b16 %v818, %v812
    %v1359 = vpack.c.b16 %v825, %v819
    %v1360 = vpack.c.b16 %v826, %v820
    %v1361 = vpack.c.b16 %v827, %v821
    %v1362 = vpack.c.b16 %v828, %v822
    %v1363 = vpack.c.b16 %v829, %v823
    %v1364 = vpack.c.b16 %v830, %v824
    %v1365 = vpack.c.b16 %v837, %v831
    %v1366 = vpack.c.b16 %v838, %v832
    %v1367 = vpack.c.b16 %v839, %v833
    %v1368 = vpack.c.b16 %v840, %v834
    %v1369 = vpack.c.b16 %v841, %v835
    %v1370 = vpack.c.b16 %v842, %v836
    %v1371 = vpack.c.b16 %v849, %v843
    %v1372 = vpack.c.b16 %v850, %v844
    %v1373 = vpack.c.b16 %v851, %v845
    %v1374 = vpack.c.b16 %v852, %v846
    %v1375 = vpack.c.b16 %v853, %v847
    %v1376 = vpack.c.b16 %v854, %v848
    %v1377 = vpack.c.b16 %v861, %v855
    %v1378 = vpack.c.b16 %v862, %v856
    %v1379 = vpack.c.b16 %v863, %v857
    %v1380 = vpack.c.b16 %v864, %v858
    %v1381 = vpack.c.b16 %v865, %v859
    %v1382 = vpack.c.b16 %v866, %v860
    %v1383 = vpack.c.b16 %v873, %v867
    %v1384 = vpack.c.b16 %v874, %v868
    %v1385 = vpack.c.b16 %v875, %v869
    %v1386 = vpack.c.b16 %v876, %v870
    %v1387 = vpack.c.b16 %v877, %v871
    %v1388 = vpack.c.b16 %v878, %v872
    %v1389 = vpack.c.b16 %v885, %v879
    %v1390 = vpack.c.b16 %v886, %v880
    %v1391 = vpack.c.b16 %v887, %v881
    %v1392 = vpack.c.b16 %v888, %v882
    %v1393 = vpack.c.b16 %v889, %v883
    %v1394 = vpack.c.b16 %v890, %v884
    %v1395 = vpack.c.b16 %v897, %v891
    %v1396 = vpack.c.b16 %v898, %v892
    %v1397 = vpack.c.b16 %v899, %v893
    %v1398 = vpack.c.b16 %v900, %v894
    %v1399 = vpack.c.b16 %v901, %v895
    %v1400 = vpack.c.b16 %v902, %v896
    %v1401 = vpack.c.b16 %v909, %v903
    %v1402 = vpack.c.b16 %v910, %v904
    %v1403 = vpack.c.b16 %v911, %v905
    %v1404 = vpack.c.b16 %v912, %v906
    %v1405 = vpack.c.b16 %v913, %v907
    %v1406 = vpack.c.b16 %v914, %v908
    %v1407 = vpack.c.b16 %v921, %v915
    %v1408 = vpack.c.b16 %v922, %v916
    %v1409 = vpack.c.b16 %v923, %v917
    %v1410 = vpack.c.b16 %v924, %v918
    %v1411 = vpack.c.b16 %v925, %v919
    %v1412 = vpack.c.b16 %v926, %v920
    %v1413 = vpack.c.b16 %v933, %v927
    %v1414 = vpack.c.b16 %v934, %v928
    %v1415 = vpack.c.b16 %v935, %v929
    %v1416 = vpack.c.b16 %v936, %v930
    %v1417 = vpack.c.b16 %v937, %v931
    %v1418 = vpack.c.b16 %v938, %v932
    %v1419 = vpack.c.b16 %v945, %v939
    %v1420 = vpack.c.b16 %v946, %v940
    %v1421 = vpack.c.b16 %v947, %v941
    %v1422 = vpack.c.b16 %v948, %v942
    %v1423 = vpack.c.b16 %v949, %v943
    %v1424 = vpack.c.b16 %v950, %v944
    %v1425 = vpack.c.b16 %v957, %v951
    %v1426 = vpack.c.b16 %v958, %v952
    %v1427 = vpack.c.b16 %v959, %v953
    %v1428 = vpack.c.b16 %v960, %v954
    %v1429 = vpack.c.b16 %v961, %v955
    %v1430 = vpack.c.b16 %v962, %v956
    %v1431 = vpack.c.b16 %v969, %v963
    %v1432 = vpack.c.b16 %v970, %v964
    %v1433 = vpack.c.b16 %v971, %v965
    %v1434 = vpack.c.b16 %v972, %v966
    %v1435 = vpack.c.b16 %v973, %v967
    %v1436 = vpack.c.b16 %v974, %v968
    %v1437 = vpack.c.b16 %v981, %v975
    %v1438 = vpack.c.b16 %v982, %v976
    %v1439 = vpack.c.b16 %v983, %v977
    %v1440 = vpack.c.b16 %v984, %v978
    %v1441 = vpack.c.b16 %v985, %v979
    %v1442 = vpack.c.b16 %v986, %v980
    %v1443 = vpack.c.b16 %v993, %v987
    %v1444 = vpack.c.b16 %v994, %v988
    %v1445 = vpack.c.b16 %v995, %v989
    %v1446 = vpack.c.b16 %v996, %v990
    %v1447 = vpack.c.b16 %v997, %v991
    %v1448 = vpack.c.b16 %v998, %v992
    %v1449 = vpack.c.b16 %v1005, %v999
    %v1450 = vpack.c.b16 %v1006, %v1000
    %v1451 = vpack.c.b16 %v1007, %v1001
    %v1452 = vpack.c.b16 %v1008, %v1002
    %v1453 = vpack.c.b16 %v1009, %v1003
    %v1454 = vpack.c.b16 %v1010, %v1004
    %v1455 = vpack.c.b16 %v1017, %v1011
    %v1456 = vpack.c.b16 %v1018, %v1012
    %v1457 = vpack.c.b16 %v1019, %v1013
    %v1458 = vpack.c.b16 %v1020, %v1014
    %v1459 = vpack.c.b16 %v1021, %v1015
    %v1460 = vpack.c.b16 %v1022, %v1016
    %v1461 = vpack.c.b16 %v1029, %v1023
    %v1462 = vpack.c.b16 %v1030, %v1024
    %v1463 = vpack.c.b16 %v1031, %v1025
    %v1464 = vpack.c.b16 %v1032, %v1026
    %v1465 = vpack.c.b16 %v1033, %v1027
    %v1466 = vpack.c.b16 %v1034, %v1028
    %v1467 = vpack.c.b16 %v1041, %v1035
    %v1468 = vpack.c.b16 %v1042, %v1036
    %v1469 = vpack.c.b16 %v1043, %v1037
    %v1470 = vpack.c.b16 %v1044, %v1038
    %v1471 = vpack.c.b16 %v1045, %v1039
    %v1472 = vpack.c.b16 %v1046, %v1040
    %v1473 = vpack.c.b16 %v1053, %v1047
    %v1474 = vpack.c.b16 %v1054, %v1048
    %v1475 = vpack.c.b16 %v1055, %v1049
    %v1476 = vpack.c.b16 %v1056, %v1050
    %v1477 = vpack.c.b16 %v1057, %v1051
    %v1478 = vpack.c.b16 %v1058, %v1052
    %v1479 = vpack.c.b16 %v1065, %v1059
    %v1480 = vpack.c.b16 %v1066, %v1060
    %v1481 = vpack.c.b16 %v1067, %v1061
    %v1482 = vpack.c.b16 %v1068, %v1062
    %v1483 = vpack.c.b16 %v1069, %v1063
    %v1484 = vpack.c.b16 %v1070, %v1064
    %v1485 = vpack.c.b16 %v1077, %v1071
    %v1486 = vpack.c.b16 %v1078, %v1072
    %v1487 = vpack.c.b16 %v1079, %v1073
    %v1488 = vpack.c.b16 %v1080, %v1074
    %v1489 = vpack.c.b16 %v1081, %v1075
    %v1490 = vpack.c.b16 %v1082, %v1076
    %v1491 = vpack.c.b16 %v1089, %v1083
    %v1492 = vpack.c.b16 %v1090, %v1084
    %v1493 = vpack.c.b16 %v1091, %v1085
    %v1494 = vpack.c.b16 %v1092, %v1086
    %v1495 = vpack.c.b16 %v1093, %v1087
    %v1496 = vpack.c.b16 %v1094, %v1088
    %v1497 = vpack.c.b16 %v1101, %v1095
    %v1498 = vpack.c.b16 %v1102, %v1096
    %v1499 = vpack.c.b16 %v1103, %v1097
    %v1500 = vpack.c.b16 %v1104, %v1098
    %v1501 = vpack.c.b16 %v1105, %v1099
    %v1502 = vpack.c.b16 %v1106, %v1100
    %v1503 = vpack.c.b16 %v1113, %v1107
    %v1504 = vpack.c.b16 %v1114, %v1108
    %v1505 = vpack.c.b16 %v1115, %v1109
    %v1506 = vpack.c.b16 %v1116, %v1110
    %v1507 = vpack.c.b16 %v1117, %v1111
    %v1508 = vpack.c.b16 %v1118, %v1112
    %v1509 = vpack.c.b16 %v1125, %v1119
    %v1510 = vpack.c.b16 %v1126, %v1120
    %v1511 = vpack.c.b16 %v1127, %v1121
    %v1512 = vpack.c.b16 %v1128, %v1122
    %v1513 = vpack.c.b16 %v1129, %v1123
    %v1514 = vpack.c.b16 %v1130, %v1124
    %v1515 = vpack.c.b16 %v1137, %v1131
    %v1516 = vpack.c.b16 %v1138, %v1132
    %v1517 = vpack.c.b16 %v1139, %v1133
    %v1518 = vpack.c.b16 %v1140, %v1134
    %v1519 = vpack.c.b16 %v1141, %v1135
    %v1520 = vpack.c.b16 %v1142, %v1136
    %v1521 = vpack.c.b16 %v1149, %v1143
    %v1522 = vpack.c.b16 %v1150, %v1144
    %v1523 = vpack.c.b16 %v1151, %v1145
    %v1524 = vpack.c.b16 %v1152, %v1146
    %v1525 = vpack.c.b16 %v1153, %v1147
    %v1526 = vpack.c.b16 %v1154, %v1148
    %v1527 = vpack.c.b16 %v1161, %v1155
    %v1528 = vpack.c.b16 %v1162, %v1156
    %v1529 = vpack.c.b16 %v1163, %v1157
    %v1530 = vpack.c.b16 %v1164, %v1158
    %v1531 = vpack.c.b16 %v1165, %v1159
    %v1532 = vpack.c.b16 %v1166, %v1160
    %v1533 = vpack.c.b16 %v1173, %v1167
    %v1534 = vpack.c.b16 %v1174, %v1168
    %v1535 = vpack.c.b16 %v1175, %v1169
    %v1536 = vpack.c.b16 %v1176, %v1170
    %v1537 = vpack.c.b16 %v1177, %v1171
    %v1538 = vpack.c.b16 %v1178, %v1172
    %v1539 = vpack.c.b16 %v1185, %v1179
    %v1540 = vpack.c.b16 %v1186, %v1180
    %v1541 = vpack.c.b16 %v1187, %v1181
    %v1542 = vpack.c.b16 %v1188, %v1182
    %v1543 = vpack.c.b16 %v1189, %v1183
    %v1544 = vpack.c.b16 %v1190, %v1184
    %v1545 = vpack.c.b16 %v1197, %v1191
    %v1546 = vpack.c.b16 %v1198, %v1192
    %v1547 = vpack.c.b16 %v1199, %v1193
    %v1548 = vpack.c.b16 %v1200, %v1194
    %v1549 = vpack.c.b16 %v1201, %v1195
    %v1550 = vpack.c.b16 %v1202, %v1196
    %v1551 = vpack.c.b16 %v1209, %v1203
    %v1552 = vpack.c.b16 %v1210, %v1204
    %v1553 = vpack.c.b16 %v1211, %v1205
    %v1554 = vpack.c.b16 %v1212, %v1206
    %v1555 = vpack.c.b16 %v1213, %v1207
    %v1556 = vpack.c.b16 %v1214, %v1208
    %v1557 = vpack.c.b16 %v1221, %v1215
    %v1558 = vpack.c.b16 %v1222, %v1216
    %v1559 = vpack.c.b16 %v1223, %v1217
    %v1560 = vpack.c.b16 %v1224, %v1218
    %v1561 = vpack.c.b16 %v1225, %v1219
    %v1562 = vpack.c.b16 %v1226, %v1220
    %v1563 = vpack.c.b16 %v1233, %v1227
    %v1564 = vpack.c.b16 %v1234, %v1228
    %v1565 = vpack.c.b16 %v1235, %v1229
    %v1566 = vpack.c.b16 %v1236, %v1230
    %v1567 = vpack.c.b16 %v1237, %v1231
    %v1568 = vpack.c.b16 %v1238, %v1232
    %v1569 = vpack.c.b16 %v1245, %v1239
    %v1570 = vpack.c.b16 %v1246, %v1240
    %v1571 = vpack.c.b16 %v1247, %v1241
    %v1572 = vpack.c.b16 %v1248, %v1242
    %v1573 = vpack.c.b16 %v1249, %v1243
    %v1574 = vpack.c.b16 %v1250, %v1244
    %v1575 = vpack.c.b16 %v1257, %v1251
    %v1576 = vpack.c.b16 %v1258, %v1252
    %v1577 = vpack.c.b16 %v1259, %v1253
    %v1578 = vpack.c.b16 %v1260, %v1254
    %v1579 = vpack.c.b16 %v1261, %v1255
    %v1580 = vpack.c.b16 %v1262, %v1256
    %v1581 = vpack.c.b16 %v1269, %v1263
    %v1582 = vpack.c.b16 %v1270, %v1264
    %v1583 = vpack.c.b16 %v1271, %v1265
    %v1584 = vpack.c.b16 %v1272, %v1266
    %v1585 = vpack.c.b16 %v1273, %v1267
    %v1586 = vpack.c.b16 %v1274, %v1268
    %v1587 = vpack.c.b16 %v1281, %v1275
    %v1588 = vpack.c.b16 %v1282, %v1276
    %v1589 = vpack.c.b16 %v1283, %v1277
    %v1590 = vpack.c.b16 %v1284, %v1278
    %v1591 = vpack.c.b16 %v1285, %v1279
    %v1592 = vpack.c.b16 %v1286, %v1280
    %v1593 = vpack.c.b16 %v1293, %v1287
    %v1594 = vpack.c.b16 %v1294, %v1288
    %v1595 = vpack.c.b16 %v1295, %v1289
    %v1596 = vpack.c.b16 %v1296, %v1290
    %v1597 = vpack.c.b16 %v1297, %v1291
    %v1598 = vpack.c.b16 %v1298, %v1292
    %v1599 = vpack.c.b16 %v1305, %v1299
    %v1600 = vpack.c.b16 %v1306, %v1300
    %v1601 = vpack.c.b16 %v1307, %v1301
    %v1602 = vpack.c.b16 %v1308, %v1302
    %v1603 = vpack.c.b16 %v1309, %v1303
    %v1604 = vpack.c.b16 %v1310, %v1304
    %v1605 = vpack.c.b16 %v1317, %v1311
    %v1606 = vpack.c.b16 %v1318, %v1312
    %v1607 = vpack.c.b16 %v1319, %v1313
    %v1608 = vpack.c.b16 %v1320, %v1314
    %v1609 = vpack.c.b16 %v1321, %v1315
    %v1610 = vpack.c.b16 %v1322, %v1316
    %1899 = vmatprep.subr.bf16.mxu0 %v1324
    %1900 = vmatpush1.bf16.msra.mxu0 %v1323
    %1901 = vmatprep.subr.bf16.mxu0 %v1330
    %1902 = vmatpush1.bf16.msra.mxu0 %v1329
    %1903 = vmatprep.subr.bf16.mxu0 %v1336
    %1904 = vmatpush1.bf16.msra.mxu0 %v1335
    %1905 = vmatprep.subr.bf16.mxu0 %v1342
    %1906 = vmatpush1.bf16.msra.mxu0 %v1341
    %1907 = vmatprep.subr.bf16.mxu0 %v1348
    %1908 = vmatpush1.bf16.msra.mxu0 %v1347
    %1909 = vmatprep.subr.bf16.mxu0 %v1354
    %1910 = vmatpush1.bf16.msra.mxu0 %v1353
    %1911 = vmatprep.subr.bf16.mxu0 %v1360
    %1912 = vmatpush1.bf16.msra.mxu0 %v1359
    %1913 = vmatprep.subr.bf16.mxu0 %v1366
    %1914 = vmatpush1.bf16.msra.mxu0 %v1365
    %1915 = vmatprep.subr.bf16.mxu0 %v1372
    %1916 = vmatpush1.bf16.msra.mxu0 %v1371
    %1917 = vmatprep.subr.bf16.mxu0 %v1378
    %1918 = vmatpush1.bf16.msra.mxu0 %v1377
    %1919 = vmatprep.subr.bf16.mxu0 %v1384
    %1920 = vmatpush1.bf16.msra.mxu0 %v1383
    %1921 = vmatprep.subr.bf16.mxu0 %v1390
    %1922 = vmatpush1.bf16.msra.mxu0 %v1389
    %1923 = vmatprep.subr.bf16.mxu0 %v1396
    %1924 = vmatpush1.bf16.msra.mxu0 %v1395
    %1925 = vmatprep.subr.bf16.mxu0 %v1402
    %1926 = vmatpush1.bf16.msra.mxu0 %v1401
    %1927 = vmatprep.subr.bf16.mxu0 %v1408
    %1928 = vmatpush1.bf16.msra.mxu0 %v1407
    %1929 = vmatprep.subr.bf16.mxu0 %v1414
    %1930 = vmatpush1.bf16.msra.mxu0 %v1413
    %1931 = vmatprep.mubr.bf16.mxu0 %v448
    %1932 = vmatmul.mubr.bf16.gmra.mrb[0].mxu0 %v447
    %v1933 = vpop.f32.mrb[0].mxu0
    %v1934 = vadd.f32 %v402, %v1933
    %v1935 = vpop.f32.mrb[0].mxu0
    %v1936 = vadd.f32 %v406, %v1935
    %v1937 = vpop.f32.mrb[0].mxu0
    %v1938 = vadd.f32 %v402, %v1937
    %v1939 = vpop.f32.mrb[0].mxu0
    %v1940 = vadd.f32 %v406, %v1939
    %1941 = vdwg.mxu0
    %1942 = vmatprep.subr.bf16.mxu0 %v1420
    %1943 = vmatpush1.bf16.msra.mxu0 %v1419
    %1944 = vmatprep.subr.bf16.mxu0 %v1426
    %1945 = vmatpush1.bf16.msra.mxu0 %v1425
    %1946 = vmatprep.subr.bf16.mxu0 %v1432
    %1947 = vmatpush1.bf16.msra.mxu0 %v1431
    %1948 = vmatprep.subr.bf16.mxu0 %v1438
    %1949 = vmatpush1.bf16.msra.mxu0 %v1437
    %1950 = vmatprep.subr.bf16.mxu0 %v1444
    %1951 = vmatpush1.bf16.msra.mxu0 %v1443
    %1952 = vmatprep.subr.bf16.mxu0 %v1450
    %1953 = vmatpush1.bf16.msra.mxu0 %v1449
    %1954 = vmatprep.subr.bf16.mxu0 %v1456
    %1955 = vmatpush1.bf16.msra.mxu0 %v1455
    %1956 = vmatprep.subr.bf16.mxu0 %v1462
    %1957 = vmatpush1.bf16.msra.mxu0 %v1461
    %1958 = vmatprep.subr.bf16.mxu0 %v1468
    %1959 = vmatpush1.bf16.msra.mxu0 %v1467
    %1960 = vmatprep.subr.bf16.mxu0 %v1474
    %1961 = vmatpush1.bf16.msra.mxu0 %v1473
    %1962 = vmatprep.subr.bf16.mxu0 %v1480
    %1963 = vmatpush1.bf16.msra.mxu0 %v1479
    %1964 = vmatprep.subr.bf16.mxu0 %v1486
    %1965 = vmatpush1.bf16.msra.mxu0 %v1485
    %1966 = vmatprep.subr.bf16.mxu0 %v1492
    %1967 = vmatpush1.bf16.msra.mxu0 %v1491
    %1968 = vmatprep.subr.bf16.mxu0 %v1498
    %1969 = vmatpush1.bf16.msra.mxu0 %v1497
    %1970 = vmatprep.subr.bf16.mxu0 %v1504
    %1971 = vmatpush1.bf16.msra.mxu0 %v1503
    %1972 = vmatprep.subr.bf16.mxu0 %v1510
    %1973 = vmatpush1.bf16.msra.mxu0 %v1509
    %1974 = vmatprep.mubr.bf16.mxu0 %v450
    %1975 = vmatmul.mubr.bf16.gmra.mrb[0].mxu0 %v449
    %v1976 = vpop.f32.mrb[0].mxu0
    %v1977 = vadd.f32 %v1934, %v1976
    %v1978 = vpop.f32.mrb[0].mxu0
    %v1979 = vadd.f32 %v1936, %v1978
    %v1980 = vpop.f32.mrb[0].mxu0
    %v1981 = vadd.f32 %v1938, %v1980
    %v1982 = vpop.f32.mrb[0].mxu0
    %v1983 = vadd.f32 %v1940, %v1982
    %1984 = vdwg.mxu0
    %1985 = vmatprep.subr.bf16.mxu0 %v1516
    %1986 = vmatpush1.bf16.msra.mxu0 %v1515
    %1987 = vmatprep.subr.bf16.mxu0 %v1522
    %1988 = vmatpush1.bf16.msra.mxu0 %v1521
    %1989 = vmatprep.subr.bf16.mxu0 %v1528
    %1990 = vmatpush1.bf16.msra.mxu0 %v1527
    %1991 = vmatprep.subr.bf16.mxu0 %v1534
    %1992 = vmatpush1.bf16.msra.mxu0 %v1533
    %1993 = vmatprep.subr.bf16.mxu0 %v1540
    %1994 = vmatpush1.bf16.msra.mxu0 %v1539
    %1995 = vmatprep.subr.bf16.mxu0 %v1546
    %1996 = vmatpush1.bf16.msra.mxu0 %v1545
    %1997 = vmatprep.subr.bf16.mxu0 %v1552
    %1998 = vmatpush1.bf16.msra.mxu0 %v1551
    %1999 = vmatprep.subr.bf16.mxu0 %v1558
    %2000 = vmatpush1.bf16.msra.mxu0 %v1557
    %2001 = vmatprep.subr.bf16.mxu0 %v1564
    %2002 = vmatpush1.bf16.msra.mxu0 %v1563
    %2003 = vmatprep.subr.bf16.mxu0 %v1570
    %2004 = vmatpush1.bf16.msra.mxu0 %v1569
    %2005 = vmatprep.subr.bf16.mxu0 %v1576
    %2006 = vmatpush1.bf16.msra.mxu0 %v1575
    %2007 = vmatprep.subr.bf16.mxu0 %v1582
    %2008 = vmatpush1.bf16.msra.mxu0 %v1581
    %2009 = vmatprep.subr.bf16.mxu0 %v1588
    %2010 = vmatpush1.bf16.msra.mxu0 %v1587
    %2011 = vmatprep.subr.bf16.mxu0 %v1594
    %2012 = vmatpush1.bf16.msra.mxu0 %v1593
    %2013 = vmatprep.subr.bf16.mxu0 %v1600
    %2014 = vmatpush1.bf16.msra.mxu0 %v1599
    %2015 = vmatprep.subr.bf16.mxu0 %v1606
    %2016 = vmatpush1.bf16.msra.mxu0 %v1605
    %2017 = vmatprep.mubr.bf16.mxu0 %v452
    %2018 = vmatmul.mubr.bf16.gmra.mrb[0].mxu0 %v451
    %v2019 = vpop.f32.mrb[0].mxu0
    %v2020 = vadd.f32 %v1977, %v2019
    %v2021 = vpop.f32.mrb[0].mxu0
    %v2022 = vadd.f32 %v1979, %v2021
    %v2023 = vpop.f32.mrb[0].mxu0
    %v2024 = vadd.f32 %v1981, %v2023
    %v2025 = vpop.f32.mrb[0].mxu0
    %v2026 = vadd.f32 %v1983, %v2025
    %2027 = vdwg.mxu0
    %2028 = vmatprep.subr.bf16.mxu0 %v1326
    %2029 = vmatpush1.bf16.msra.mxu0 %v1325
    %2030 = vmatprep.subr.bf16.mxu0 %v1332
    %2031 = vmatpush1.bf16.msra.mxu0 %v1331
    %2032 = vmatprep.subr.bf16.mxu0 %v1338
    %2033 = vmatpush1.bf16.msra.mxu0 %v1337
    %2034 = vmatprep.subr.bf16.mxu0 %v1344
    %2035 = vmatpush1.bf16.msra.mxu0 %v1343
    %2036 = vmatprep.subr.bf16.mxu0 %v1350
    %2037 = vmatpush1.bf16.msra.mxu0 %v1349
    %2038 = vmatprep.subr.bf16.mxu0 %v1356
    %2039 = vmatpush1.bf16.msra.mxu0 %v1355
    %2040 = vmatprep.subr.bf16.mxu0 %v1362
    %2041 = vmatpush1.bf16.msra.mxu0 %v1361
    %2042 = vmatprep.subr.bf16.mxu0 %v1368
    %2043 = vmatpush1.bf16.msra.mxu0 %v1367
    %2044 = vmatprep.subr.bf16.mxu0 %v1374
    %2045 = vmatpush1.bf16.msra.mxu0 %v1373
    %2046 = vmatprep.subr.bf16.mxu0 %v1380
    %2047 = vmatpush1.bf16.msra.mxu0 %v1379
    %2048 = vmatprep.subr.bf16.mxu0 %v1386
    %2049 = vmatpush1.bf16.msra.mxu0 %v1385
    %2050 = vmatprep.subr.bf16.mxu0 %v1392
    %2051 = vmatpush1.bf16.msra.mxu0 %v1391
    %2052 = vmatprep.subr.bf16.mxu0 %v1398
    %2053 = vmatpush1.bf16.msra.mxu0 %v1397
    %2054 = vmatprep.subr.bf16.mxu0 %v1404
    %2055 = vmatpush1.bf16.msra.mxu0 %v1403
    %2056 = vmatprep.subr.bf16.mxu0 %v1410
    %2057 = vmatpush1.bf16.msra.mxu0 %v1409
    %2058 = vmatprep.subr.bf16.mxu0 %v1416
    %2059 = vmatpush1.bf16.msra.mxu0 %v1415
    %2060 = vmatprep.mubr.bf16.mxu0 %v448
    %2061 = vmatmul.mubr.bf16.gmra.mrb[0].mxu0 %v447
    %v2062 = vpop.f32.mrb[0].mxu0
    %v2063 = vadd.f32 %v410, %v2062
    %v2064 = vpop.f32.mrb[0].mxu0
    %v2065 = vadd.f32 %v414, %v2064
    %v2066 = vpop.f32.mrb[0].mxu0
    %v2067 = vadd.f32 %v410, %v2066
    %v2068 = vpop.f32.mrb[0].mxu0
    %v2069 = vadd.f32 %v414, %v2068
    %2070 = vdwg.mxu0
    %2071 = vmatprep.subr.bf16.mxu0 %v1422
    %2072 = vmatpush1.bf16.msra.mxu0 %v1421
    %2073 = vmatprep.subr.bf16.mxu0 %v1428
    %2074 = vmatpush1.bf16.msra.mxu0 %v1427
    %2075 = vmatprep.subr.bf16.mxu0 %v1434
    %2076 = vmatpush1.bf16.msra.mxu0 %v1433
    %2077 = vmatprep.subr.bf16.mxu0 %v1440
    %2078 = vmatpush1.bf16.msra.mxu0 %v1439
    %2079 = vmatprep.subr.bf16.mxu0 %v1446
    %2080 = vmatpush1.bf16.msra.mxu0 %v1445
    %2081 = vmatprep.subr.bf16.mxu0 %v1452
    %2082 = vmatpush1.bf16.msra.mxu0 %v1451
    %2083 = vmatprep.subr.bf16.mxu0 %v1458
    %2084 = vmatpush1.bf16.msra.mxu0 %v1457
    %2085 = vmatprep.subr.bf16.mxu0 %v1464
    %2086 = vmatpush1.bf16.msra.mxu0 %v1463
    %2087 = vmatprep.subr.bf16.mxu0 %v1470
    %2088 = vmatpush1.bf16.msra.mxu0 %v1469
    %2089 = vmatprep.subr.bf16.mxu0 %v1476
    %2090 = vmatpush1.bf16.msra.mxu0 %v1475
    %2091 = vmatprep.subr.bf16.mxu0 %v1482
    %2092 = vmatpush1.bf16.msra.mxu0 %v1481
    %2093 = vmatprep.subr.bf16.mxu0 %v1488
    %2094 = vmatpush1.bf16.msra.mxu0 %v1487
    %2095 = vmatprep.subr.bf16.mxu0 %v1494
    %2096 = vmatpush1.bf16.msra.mxu0 %v1493
    %2097 = vmatprep.subr.bf16.mxu0 %v1500
    %2098 = vmatpush1.bf16.msra.mxu0 %v1499
    %2099 = vmatprep.subr.bf16.mxu0 %v1506
    %2100 = vmatpush1.bf16.msra.mxu0 %v1505
    %2101 = vmatprep.subr.bf16.mxu0 %v1512
    %2102 = vmatpush1.bf16.msra.mxu0 %v1511
    %2103 = vmatprep.mubr.bf16.mxu0 %v450
    %2104 = vmatmul.mubr.bf16.gmra.mrb[0].mxu0 %v449
    %v2105 = vpop.f32.mrb[0].mxu0
    %v2106 = vadd.f32 %v2063, %v2105
    %v2107 = vpop.f32.mrb[0].mxu0
    %v2108 = vadd.f32 %v2065, %v2107
    %v2109 = vpop.f32.mrb[0].mxu0
    %v2110 = vadd.f32 %v2067, %v2109
    %v2111 = vpop.f32.mrb[0].mxu0
    %v2112 = vadd.f32 %v2069, %v2111
    %2113 = vdwg.mxu0
    %2114 = vmatprep.subr.bf16.mxu0 %v1518
    %2115 = vmatpush1.bf16.msra.mxu0 %v1517
    %2116 = vmatprep.subr.bf16.mxu0 %v1524
    %2117 = vmatpush1.bf16.msra.mxu0 %v1523
    %2118 = vmatprep.subr.bf16.mxu0 %v1530
    %2119 = vmatpush1.bf16.msra.mxu0 %v1529
    %2120 = vmatprep.subr.bf16.mxu0 %v1536
    %2121 = vmatpush1.bf16.msra.mxu0 %v1535
    %2122 = vmatprep.subr.bf16.mxu0 %v1542
    %2123 = vmatpush1.bf16.msra.mxu0 %v1541
    %2124 = vmatprep.subr.bf16.mxu0 %v1548
    %2125 = vmatpush1.bf16.msra.mxu0 %v1547
    %2126 = vmatprep.subr.bf16.mxu0 %v1554
    %2127 = vmatpush1.bf16.msra.mxu0 %v1553
    %2128 = vmatprep.subr.bf16.mxu0 %v1560
    %2129 = vmatpush1.bf16.msra.mxu0 %v1559
    %2130 = vmatprep.subr.bf16.mxu0 %v1566
    %2131 = vmatpush1.bf16.msra.mxu0 %v1565
    %2132 = vmatprep.subr.bf16.mxu0 %v1572
    %2133 = vmatpush1.bf16.msra.mxu0 %v1571
    %2134 = vmatprep.subr.bf16.mxu0 %v1578
    %2135 = vmatpush1.bf16.msra.mxu0 %v1577
    %2136 = vmatprep.subr.bf16.mxu0 %v1584
    %2137 = vmatpush1.bf16.msra.mxu0 %v1583
    %2138 = vmatprep.subr.bf16.mxu0 %v1590
    %2139 = vmatpush1.bf16.msra.mxu0 %v1589
    %2140 = vmatprep.subr.bf16.mxu0 %v1596
    %2141 = vmatpush1.bf16.msra.mxu0 %v1595
    %2142 = vmatprep.subr.bf16.mxu0 %v1602
    %2143 = vmatpush1.bf16.msra.mxu0 %v1601
    %2144 = vmatprep.subr.bf16.mxu0 %v1608
    %2145 = vmatpush1.bf16.msra.mxu0 %v1607
    %2146 = vmatprep.mubr.bf16.mxu0 %v452
    %2147 = vmatmul.mubr.bf16.gmra.mrb[0].mxu0 %v451
    %v2148 = vpop.f32.mrb[0].mxu0
    %v2149 = vadd.f32 %v2106, %v2148
    %v2150 = vpop.f32.mrb[0].mxu0
    %v2151 = vadd.f32 %v2108, %v2150
    %v2152 = vpop.f32.mrb[0].mxu0
    %v2153 = vadd.f32 %v2110, %v2152
    %v2154 = vpop.f32.mrb[0].mxu0
    %v2155 = vadd.f32 %v2112, %v2154
    %2156 = vdwg.mxu0
    %2157 = vmatprep.subr.bf16.mxu0 %v1328
    %2158 = vmatpush1.bf16.msra.mxu0 %v1327
    %2159 = vmatprep.subr.bf16.mxu0 %v1334
    %2160 = vmatpush1.bf16.msra.mxu0 %v1333
    %2161 = vmatprep.subr.bf16.mxu0 %v1340
    %2162 = vmatpush1.bf16.msra.mxu0 %v1339
    %2163 = vmatprep.subr.bf16.mxu0 %v1346
    %2164 = vmatpush1.bf16.msra.mxu0 %v1345
    %2165 = vmatprep.subr.bf16.mxu0 %v1352
    %2166 = vmatpush1.bf16.msra.mxu0 %v1351
    %2167 = vmatprep.subr.bf16.mxu0 %v1358
    %2168 = vmatpush1.bf16.msra.mxu0 %v1357
    %2169 = vmatprep.subr.bf16.mxu0 %v1364
    %2170 = vmatpush1.bf16.msra.mxu0 %v1363
    %2171 = vmatprep.subr.bf16.mxu0 %v1370
    %2172 = vmatpush1.bf16.msra.mxu0 %v1369
    %2173 = vmatprep.subr.bf16.mxu0 %v1376
    %2174 = vmatpush1.bf16.msra.mxu0 %v1375
    %2175 = vmatprep.subr.bf16.mxu0 %v1382
    %2176 = vmatpush1.bf16.msra.mxu0 %v1381
    %2177 = vmatprep.subr.bf16.mxu0 %v1388
    %2178 = vmatpush1.bf16.msra.mxu0 %v1387
    %2179 = vmatprep.subr.bf16.mxu0 %v1394
    %2180 = vmatpush1.bf16.msra.mxu0 %v1393
    %2181 = vmatprep.subr.bf16.mxu0 %v1400
    %2182 = vmatpush1.bf16.msra.mxu0 %v1399
    %2183 = vmatprep.subr.bf16.mxu0 %v1406
    %2184 = vmatpush1.bf16.msra.mxu0 %v1405
    %2185 = vmatprep.subr.bf16.mxu0 %v1412
    %2186 = vmatpush1.bf16.msra.mxu0 %v1411
    %2187 = vmatprep.subr.bf16.mxu0 %v1418
    %2188 = vmatpush1.bf16.msra.mxu0 %v1417
    %2189 = vmatprep.mubr.bf16.mxu0 %v448
    %2190 = vmatmul.mubr.bf16.gmra.mrb[0].mxu0 %v447
    %v2191 = vpop.f32.mrb[0].mxu0
    %v2192 = vadd.f32 %v418, %v2191
    %v2193 = vpop.f32.mrb[0].mxu0
    %v2194 = vadd.f32 %v422, %v2193
    %v2195 = vpop.f32.mrb[0].mxu0
    %v2196 = vadd.f32 %v418, %v2195
    %v2197 = vpop.f32.mrb[0].mxu0
    %v2198 = vadd.f32 %v422, %v2197
    %2199 = vdwg.mxu0
    %2200 = vmatprep.subr.bf16.mxu0 %v1424
    %2201 = vmatpush1.bf16.msra.mxu0 %v1423
    %2202 = vmatprep.subr.bf16.mxu0 %v1430
    %2203 = vmatpush1.bf16.msra.mxu0 %v1429
    %2204 = vmatprep.subr.bf16.mxu0 %v1436
    %2205 = vmatpush1.bf16.msra.mxu0 %v1435
    %2206 = vmatprep.subr.bf16.mxu0 %v1442
    %2207 = vmatpush1.bf16.msra.mxu0 %v1441
    %2208 = vmatprep.subr.bf16.mxu0 %v1448
    %2209 = vmatpush1.bf16.msra.mxu0 %v1447
    %2210 = vmatprep.subr.bf16.mxu0 %v1454
    %2211 = vmatpush1.bf16.msra.mxu0 %v1453
    %2212 = vmatprep.subr.bf16.mxu0 %v1460
    %2213 = vmatpush1.bf16.msra.mxu0 %v1459
    %2214 = vmatprep.subr.bf16.mxu0 %v1466
    %2215 = vmatpush1.bf16.msra.mxu0 %v1465
    %2216 = vmatprep.subr.bf16.mxu0 %v1472
    %2217 = vmatpush1.bf16.msra.mxu0 %v1471
    %2218 = vmatprep.subr.bf16.mxu0 %v1478
    %2219 = vmatpush1.bf16.msra.mxu0 %v1477
    %2220 = vmatprep.subr.bf16.mxu0 %v1484
    %2221 = vmatpush1.bf16.msra.mxu0 %v1483
    %2222 = vmatprep.subr.bf16.mxu0 %v1490
    %2223 = vmatpush1.bf16.msra.mxu0 %v1489
    %2224 = vmatprep.subr.bf16.mxu0 %v1496
    %2225 = vmatpush1.bf16.msra.mxu0 %v1495
    %2226 = vmatprep.subr.bf16.mxu0 %v1502
    %2227 = vmatpush1.bf16.msra.mxu0 %v1501
    %2228 = vmatprep.subr.bf16.mxu0 %v1508
    %2229 = vmatpush1.bf16.msra.mxu0 %v1507
    %2230 = vmatprep.subr.bf16.mxu0 %v1514
    %2231 = vmatpush1.bf16.msra.mxu0 %v1513
    %2232 = vmatprep.mubr.bf16.mxu0 %v450
    %2233 = vmatmul.mubr.bf16.gmra.mrb[0].mxu0 %v449
    %v2234 = vpop.f32.mrb[0].mxu0
    %v2235 = vadd.f32 %v2192, %v2234
    %v2236 = vpop.f32.mrb[0].mxu0
    %v2237 = vadd.f32 %v2194, %v2236
    %v2238 = vpop.f32.mrb[0].mxu0
    %v2239 = vadd.f32 %v2196, %v2238
    %v2240 = vpop.f32.mrb[0].mxu0
    %v2241 = vadd.f32 %v2198, %v2240
    %2242 = vdwg.mxu0
    %2243 = vmatprep.subr.bf16.mxu0 %v1520
    %2244 = vmatpush1.bf16.msra.mxu0 %v1519
    %2245 = vmatprep.subr.bf16.mxu0 %v1526
    %2246 = vmatpush1.bf16.msra.mxu0 %v1525
    %2247 = vmatprep.subr.bf16.mxu0 %v1532
    %2248 = vmatpush1.bf16.msra.mxu0 %v1531
    %2249 = vmatprep.subr.bf16.mxu0 %v1538
    %2250 = vmatpush1.bf16.msra.mxu0 %v1537
    %2251 = vmatprep.subr.bf16.mxu0 %v1544
    %2252 = vmatpush1.bf16.msra.mxu0 %v1543
    %2253 = vmatprep.subr.bf16.mxu0 %v1550
    %2254 = vmatpush1.bf16.msra.mxu0 %v1549
    %2255 = vmatprep.subr.bf16.mxu0 %v1556
    %2256 = vmatpush1.bf16.msra.mxu0 %v1555
    %2257 = vmatprep.subr.bf16.mxu0 %v1562
    %2258 = vmatpush1.bf16.msra.mxu0 %v1561
    %2259 = vmatprep.subr.bf16.mxu0 %v1568
    %2260 = vmatpush1.bf16.msra.mxu0 %v1567
    %2261 = vmatprep.subr.bf16.mxu0 %v1574
    %2262 = vmatpush1.bf16.msra.mxu0 %v1573
    %2263 = vmatprep.subr.bf16.mxu0 %v1580
    %2264 = vmatpush1.bf16.msra.mxu0 %v1579
    %2265 = vmatprep.subr.bf16.mxu0 %v1586
    %2266 = vmatpush1.bf16.msra.mxu0 %v1585
    %2267 = vmatprep.subr.bf16.mxu0 %v1592
    %2268 = vmatpush1.bf16.msra.mxu0 %v1591
    %2269 = vmatprep.subr.bf16.mxu0 %v1598
    %2270 = vmatpush1.bf16.msra.mxu0 %v1597
    %2271 = vmatprep.subr.bf16.mxu0 %v1604
    %2272 = vmatpush1.bf16.msra.mxu0 %v1603
    %2273 = vmatprep.subr.bf16.mxu0 %v1610
    %2274 = vmatpush1.bf16.msra.mxu0 %v1609
    %2275 = vmatprep.mubr.bf16.mxu0 %v452
    %2276 = vmatmul.mubr.bf16.gmra.mrb[0].mxu0 %v451
    %v2277 = vpop.f32.mrb[0].mxu0
    %v2278 = vadd.f32 %v2235, %v2277
    %v2279 = vpop.f32.mrb[0].mxu0
    %v2280 = vadd.f32 %v2237, %v2279
    %v2281 = vpop.f32.mrb[0].mxu0
    %v2282 = vadd.f32 %v2239, %v2281
    %v2283 = vpop.f32.mrb[0].mxu0
    %v2284 = vadd.f32 %v2241, %v2283
    %2285 = vdwg.mxu0
    %v2286 = vtanh.pop %v2020
    %v2287 = vtanh.pop %v2022
    %v2288 = vtanh.pop %v2149
    %v2289 = vtanh.pop %v2151
    %v2290 = vtanh.pop %v2278
    %v2291 = vtanh.pop %v2280
    %v2292 = vtanh.pop %v2024
    %v2293 = vtanh.pop %v2026
    %v2294 = vtanh.pop %v2153
    %v2295 = vtanh.pop %v2155
    %v2296 = vtanh.pop %v2282
    %v2297 = vtanh.pop %v2284
    %v2298 = vpack.c.bf16 %v2292, %v2286
    %v2299 = vpack.c.bf16 %v2293, %v2287
    %v2300 = vpack.c.bf16 %v2294, %v2288
    %v2301 = vpack.c.bf16 %v2295, %v2289
    %v2302 = vpack.c.bf16 %v2296, %v2290
    %v2303 = vpack.c.bf16 %v2297, %v2291
    %v2304 = vld [vmem:[#allocation6] sm:$0xff]
    %v2305 = vld [vmem:[#allocation6 + $0x8] sm:$0xff]
    %v2306 = vld [vmem:[#allocation6 + $0x10] sm:$0xff]
    %v2307 = vld [vmem:[#allocation6 + $0x18] sm:$0xff]
    %v2308 = vld [vmem:[#allocation6 + $0x20] sm:$0xff]
    %v2309 = vld [vmem:[#allocation6 + $0x28] sm:$0xff]
    %v2310 = vld [vmem:[#allocation6 + $0x30] sm:$0xff]
    %v2311 = vld [vmem:[#allocation6 + $0x38] sm:$0xff]
    %v2312 = vld [vmem:[#allocation6 + $0x40] sm:$0xff]
    %v2313 = vld [vmem:[#allocation6 + $0x48] sm:$0xff]
    %v2314 = vld [vmem:[#allocation6 + $0x50] sm:$0xff]
    %v2315 = vld [vmem:[#allocation6 + $0x58] sm:$0xff]
    %v2316 = vld [vmem:[#allocation6 + $0x60] sm:$0xff]
    %v2317 = vld [vmem:[#allocation6 + $0x68] sm:$0xff]
    %v2318 = vld [vmem:[#allocation6 + $0x70] sm:$0xff]
    %v2319 = vld [vmem:[#allocation6 + $0x78] sm:$0xff]
    %v2320 = vld [vmem:[#allocation6 + $0x80] sm:$0xff]
    %v2321 = vld [vmem:[#allocation6 + $0x88] sm:$0xff]
    %v2322 = vld [vmem:[#allocation6 + $0x90] sm:$0xff]
    %v2323 = vld [vmem:[#allocation6 + $0x98] sm:$0xff]
    %v2324 = vld [vmem:[#allocation6 + $0xa0] sm:$0xff]
    %v2325 = vld [vmem:[#allocation6 + $0xa8] sm:$0xff]
    %v2326 = vld [vmem:[#allocation6 + $0xb0] sm:$0xff]
    %v2327 = vld [vmem:[#allocation6 + $0xb8] sm:$0xff]
    %v2328 = vld [vmem:[#allocation6 + $0xc0] sm:$0xff]
    %v2329 = vld [vmem:[#allocation6 + $0xc8] sm:$0xff]
    %v2330 = vld [vmem:[#allocation6 + $0xd0] sm:$0xff]
    %v2331 = vld [vmem:[#allocation6 + $0xd8] sm:$0xff]
    %v2332 = vld [vmem:[#allocation6 + $0xe0] sm:$0xff]
    %v2333 = vld [vmem:[#allocation6 + $0xe8] sm:$0xff]
    %v2334 = vld [vmem:[#allocation6 + $0xf0] sm:$0xff]
    %v2335 = vld [vmem:[#allocation6 + $0xf8] sm:$0xff]
    %v2336 = vld [vmem:[#allocation6 + $0x100] sm:$0xff]
    %v2337 = vld [vmem:[#allocation6 + $0x108] sm:$0xff]
    %v2338 = vld [vmem:[#allocation6 + $0x110] sm:$0xff]
    %v2339 = vld [vmem:[#allocation6 + $0x118] sm:$0xff]
    %v2340 = vld [vmem:[#allocation6 + $0x120] sm:$0xff]
    %v2341 = vld [vmem:[#allocation6 + $0x128] sm:$0xff]
    %v2342 = vld [vmem:[#allocation6 + $0x130] sm:$0xff]
    %v2343 = vld [vmem:[#allocation6 + $0x138] sm:$0xff]
    %v2344 = vld [vmem:[#allocation6 + $0x140] sm:$0xff]
    %v2345 = vld [vmem:[#allocation6 + $0x148] sm:$0xff]
    %v2346 = vld [vmem:[#allocation6 + $0x150] sm:$0xff]
    %v2347 = vld [vmem:[#allocation6 + $0x158] sm:$0xff]
    %v2348 = vld [vmem:[#allocation6 + $0x160] sm:$0xff]
    %v2349 = vld [vmem:[#allocation6 + $0x168] sm:$0xff]
    %v2350 = vld [vmem:[#allocation6 + $0x170] sm:$0xff]
    %v2351 = vld [vmem:[#allocation6 + $0x178] sm:$0xff]
    %v2352 = vld [vmem:[#allocation6 + $0x180] sm:$0xff]
    %v2353 = vld [vmem:[#allocation6 + $0x188] sm:$0xff]
    %v2354 = vld [vmem:[#allocation6 + $0x190] sm:$0xff]
    %v2355 = vld [vmem:[#allocation6 + $0x198] sm:$0xff]
    %v2356 = vld [vmem:[#allocation6 + $0x1a0] sm:$0xff]
    %v2357 = vld [vmem:[#allocation6 + $0x1a8] sm:$0xff]
    %v2358 = vld [vmem:[#allocation6 + $0x1b0] sm:$0xff]
    %v2359 = vld [vmem:[#allocation6 + $0x1b8] sm:$0xff]
    %v2360 = vld [vmem:[#allocation6 + $0x1c0] sm:$0xff]
    %v2361 = vld [vmem:[#allocation6 + $0x1c8] sm:$0xff]
    %v2362 = vld [vmem:[#allocation6 + $0x1d0] sm:$0xff]
    %v2363 = vld [vmem:[#allocation6 + $0x1d8] sm:$0xff]
    %v2364 = vld [vmem:[#allocation6 + $0x1e0] sm:$0xff]
    %v2365 = vld [vmem:[#allocation6 + $0x1e8] sm:$0xff]
    %v2366 = vld [vmem:[#allocation6 + $0x1f0] sm:$0xff]
    %v2367 = vld [vmem:[#allocation6 + $0x1f8] sm:$0xff]
    %v2368 = vld [vmem:[#allocation6 + $0x200] sm:$0xff]
    %v2369 = vld [vmem:[#allocation6 + $0x208] sm:$0xff]
    %v2370 = vld [vmem:[#allocation6 + $0x210] sm:$0xff]
    %v2371 = vld [vmem:[#allocation6 + $0x218] sm:$0xff]
    %v2372 = vld [vmem:[#allocation6 + $0x220] sm:$0xff]
    %v2373 = vld [vmem:[#allocation6 + $0x228] sm:$0xff]
    %v2374 = vld [vmem:[#allocation6 + $0x230] sm:$0xff]
    %v2375 = vld [vmem:[#allocation6 + $0x238] sm:$0xff]
    %v2376 = vld [vmem:[#allocation6 + $0x240] sm:$0xff]
    %v2377 = vld [vmem:[#allocation6 + $0x248] sm:$0xff]
    %v2378 = vld [vmem:[#allocation6 + $0x250] sm:$0xff]
    %v2379 = vld [vmem:[#allocation6 + $0x258] sm:$0xff]
    %v2380 = vld [vmem:[#allocation6 + $0x260] sm:$0xff]
    %v2381 = vld [vmem:[#allocation6 + $0x268] sm:$0xff]
    %v2382 = vld [vmem:[#allocation6 + $0x270] sm:$0xff]
    %v2383 = vld [vmem:[#allocation6 + $0x278] sm:$0xff]
    %v2384 = vld [vmem:[#allocation6 + $0x280] sm:$0xff]
    %v2385 = vld [vmem:[#allocation6 + $0x288] sm:$0xff]
    %v2386 = vld [vmem:[#allocation6 + $0x290] sm:$0xff]
    %v2387 = vld [vmem:[#allocation6 + $0x298] sm:$0xff]
    %v2388 = vld [vmem:[#allocation6 + $0x2a0] sm:$0xff]
    %v2389 = vld [vmem:[#allocation6 + $0x2a8] sm:$0xff]
    %v2390 = vld [vmem:[#allocation6 + $0x2b0] sm:$0xff]
    %v2391 = vld [vmem:[#allocation6 + $0x2b8] sm:$0xff]
    %v2392 = vld [vmem:[#allocation6 + $0x2c0] sm:$0xff]
    %v2393 = vld [vmem:[#allocation6 + $0x2c8] sm:$0xff]
    %v2394 = vld [vmem:[#allocation6 + $0x2d0] sm:$0xff]
    %v2395 = vld [vmem:[#allocation6 + $0x2d8] sm:$0xff]
    %v2396 = vld [vmem:[#allocation6 + $0x2e0] sm:$0xff]
    %v2397 = vld [vmem:[#allocation6 + $0x2e8] sm:$0xff]
    %v2398 = vld [vmem:[#allocation6 + $0x2f0] sm:$0xff]
    %v2399 = vld [vmem:[#allocation6 + $0x2f8] sm:$0xff]
    %v2400 = vld [vmem:[#allocation6 + $0x300] sm:$0xff]
    %v2401 = vld [vmem:[#allocation6 + $0x308] sm:$0xff]
    %v2402 = vld [vmem:[#allocation6 + $0x310] sm:$0xff]
    %v2403 = vld [vmem:[#allocation6 + $0x318] sm:$0xff]
    %v2404 = vld [vmem:[#allocation6 + $0x320] sm:$0xff]
    %v2405 = vld [vmem:[#allocation6 + $0x328] sm:$0xff]
    %v2406 = vld [vmem:[#allocation6 + $0x330] sm:$0xff]
    %v2407 = vld [vmem:[#allocation6 + $0x338] sm:$0xff]
    %v2408 = vld [vmem:[#allocation6 + $0x340] sm:$0xff]
    %v2409 = vld [vmem:[#allocation6 + $0x348] sm:$0xff]
    %v2410 = vld [vmem:[#allocation6 + $0x350] sm:$0xff]
    %v2411 = vld [vmem:[#allocation6 + $0x358] sm:$0xff]
    %v2412 = vld [vmem:[#allocation6 + $0x360] sm:$0xff]
    %v2413 = vld [vmem:[#allocation6 + $0x368] sm:$0xff]
    %v2414 = vld [vmem:[#allocation6 + $0x370] sm:$0xff]
    %v2415 = vld [vmem:[#allocation6 + $0x378] sm:$0xff]
    %v2416 = vld [vmem:[#allocation6 + $0x380] sm:$0xff]
    %v2417 = vld [vmem:[#allocation6 + $0x388] sm:$0xff]
    %v2418 = vld [vmem:[#allocation6 + $0x390] sm:$0xff]
    %v2419 = vld [vmem:[#allocation6 + $0x398] sm:$0xff]
    %v2420 = vld [vmem:[#allocation6 + $0x3a0] sm:$0xff]
    %v2421 = vld [vmem:[#allocation6 + $0x3a8] sm:$0xff]
    %v2422 = vld [vmem:[#allocation6 + $0x3b0] sm:$0xff]
    %v2423 = vld [vmem:[#allocation6 + $0x3b8] sm:$0xff]
    %v2424 = vld [vmem:[#allocation6 + $0x3c0] sm:$0xff]
    %v2425 = vld [vmem:[#allocation6 + $0x3c8] sm:$0xff]
    %v2426 = vld [vmem:[#allocation6 + $0x3d0] sm:$0xff]
    %v2427 = vld [vmem:[#allocation6 + $0x3d8] sm:$0xff]
    %v2428 = vld [vmem:[#allocation6 + $0x3e0] sm:$0xff]
    %v2429 = vld [vmem:[#allocation6 + $0x3e8] sm:$0xff]
    %v2430 = vld [vmem:[#allocation6 + $0x3f0] sm:$0xff]
    %v2431 = vld [vmem:[#allocation6 + $0x3f8] sm:$0xff]
    %v2432 = vld [vmem:[#allocation6 + $0x400] sm:$0xff]
    %v2433 = vld [vmem:[#allocation6 + $0x408] sm:$0xff]
    %v2434 = vld [vmem:[#allocation6 + $0x410] sm:$0xff]
    %v2435 = vld [vmem:[#allocation6 + $0x418] sm:$0xff]
    %v2436 = vld [vmem:[#allocation6 + $0x420] sm:$0xff]
    %v2437 = vld [vmem:[#allocation6 + $0x428] sm:$0xff]
    %v2438 = vld [vmem:[#allocation6 + $0x430] sm:$0xff]
    %v2439 = vld [vmem:[#allocation6 + $0x438] sm:$0xff]
    %v2440 = vld [vmem:[#allocation6 + $0x440] sm:$0xff]
    %v2441 = vld [vmem:[#allocation6 + $0x448] sm:$0xff]
    %v2442 = vld [vmem:[#allocation6 + $0x450] sm:$0xff]
    %v2443 = vld [vmem:[#allocation6 + $0x458] sm:$0xff]
    %v2444 = vld [vmem:[#allocation6 + $0x460] sm:$0xff]
    %v2445 = vld [vmem:[#allocation6 + $0x468] sm:$0xff]
    %v2446 = vld [vmem:[#allocation6 + $0x470] sm:$0xff]
    %v2447 = vld [vmem:[#allocation6 + $0x478] sm:$0xff]
    %v2448 = vld [vmem:[#allocation6 + $0x480] sm:$0xff]
    %v2449 = vld [vmem:[#allocation6 + $0x488] sm:$0xff]
    %v2450 = vld [vmem:[#allocation6 + $0x490] sm:$0xff]
    %v2451 = vld [vmem:[#allocation6 + $0x498] sm:$0xff]
    %v2452 = vld [vmem:[#allocation6 + $0x4a0] sm:$0xff]
    %v2453 = vld [vmem:[#allocation6 + $0x4a8] sm:$0xff]
    %v2454 = vld [vmem:[#allocation6 + $0x4b0] sm:$0xff]
    %v2455 = vld [vmem:[#allocation6 + $0x4b8] sm:$0xff]
    %v2456 = vld [vmem:[#allocation6 + $0x4c0] sm:$0xff]
    %v2457 = vld [vmem:[#allocation6 + $0x4c8] sm:$0xff]
    %v2458 = vld [vmem:[#allocation6 + $0x4d0] sm:$0xff]
    %v2459 = vld [vmem:[#allocation6 + $0x4d8] sm:$0xff]
    %v2460 = vld [vmem:[#allocation6 + $0x4e0] sm:$0xff]
    %v2461 = vld [vmem:[#allocation6 + $0x4e8] sm:$0xff]
    %v2462 = vld [vmem:[#allocation6 + $0x4f0] sm:$0xff]
    %v2463 = vld [vmem:[#allocation6 + $0x4f8] sm:$0xff]
    %v2464 = vld [vmem:[#allocation6 + $0x500] sm:$0xff]
    %v2465 = vld [vmem:[#allocation6 + $0x508] sm:$0xff]
    %v2466 = vld [vmem:[#allocation6 + $0x510] sm:$0xff]
    %v2467 = vld [vmem:[#allocation6 + $0x518] sm:$0xff]
    %v2468 = vld [vmem:[#allocation6 + $0x520] sm:$0xff]
    %v2469 = vld [vmem:[#allocation6 + $0x528] sm:$0xff]
    %v2470 = vld [vmem:[#allocation6 + $0x530] sm:$0xff]
    %v2471 = vld [vmem:[#allocation6 + $0x538] sm:$0xff]
    %v2472 = vld [vmem:[#allocation6 + $0x540] sm:$0xff]
    %v2473 = vld [vmem:[#allocation6 + $0x548] sm:$0xff]
    %v2474 = vld [vmem:[#allocation6 + $0x550] sm:$0xff]
    %v2475 = vld [vmem:[#allocation6 + $0x558] sm:$0xff]
    %v2476 = vld [vmem:[#allocation6 + $0x560] sm:$0xff]
    %v2477 = vld [vmem:[#allocation6 + $0x568] sm:$0xff]
    %v2478 = vld [vmem:[#allocation6 + $0x570] sm:$0xff]
    %v2479 = vld [vmem:[#allocation6 + $0x578] sm:$0xff]
    %v2480 = vld [vmem:[#allocation6 + $0x580] sm:$0xff]
    %v2481 = vld [vmem:[#allocation6 + $0x588] sm:$0xff]
    %v2482 = vld [vmem:[#allocation6 + $0x590] sm:$0xff]
    %v2483 = vld [vmem:[#allocation6 + $0x598] sm:$0xff]
    %v2484 = vld [vmem:[#allocation6 + $0x5a0] sm:$0xff]
    %v2485 = vld [vmem:[#allocation6 + $0x5a8] sm:$0xff]
    %v2486 = vld [vmem:[#allocation6 + $0x5b0] sm:$0xff]
    %v2487 = vld [vmem:[#allocation6 + $0x5b8] sm:$0xff]
    %v2488 = vld [vmem:[#allocation6 + $0x5c0] sm:$0xff]
    %v2489 = vld [vmem:[#allocation6 + $0x5c8] sm:$0xff]
    %v2490 = vld [vmem:[#allocation6 + $0x5d0] sm:$0xff]
    %v2491 = vld [vmem:[#allocation6 + $0x5d8] sm:$0xff]
    %v2492 = vld [vmem:[#allocation6 + $0x5e0] sm:$0xff]
    %v2493 = vld [vmem:[#allocation6 + $0x5e8] sm:$0xff]
    %v2494 = vld [vmem:[#allocation6 + $0x5f0] sm:$0xff]
    %v2495 = vld [vmem:[#allocation6 + $0x5f8] sm:$0xff]
    %v2496 = vld [vmem:[#allocation7] sm:$0xf]
    %v2498 = vlaneseq
    %v2499 = vshrl.u32 %v2498, 7
    %v2500 = vsub.s32 0, %v2499
    %v2501 = vrot.slane %v2496, %v2500
    %v2502 = vlaneseq
    %v2503 = vshrl.u32 %v2502, 7
    %v2504 = vsub.s32 1, %v2503
    %v2505 = vrot.slane %v2496, %v2504
    %v2506 = vlaneseq
    %v2507 = vshrl.u32 %v2506, 7
    %v2508 = vsub.s32 2, %v2507
    %v2509 = vrot.slane %v2496, %v2508
    %v2510 = vlaneseq
    %v2511 = vshrl.u32 %v2510, 7
    %v2512 = vsub.s32 3, %v2511
    %v2513 = vrot.slane %v2496, %v2512
    %v2710 = vunpack.c.l.b16 %v2304
    %v2711 = vunpack.c.h.b16 %v2304
    %v2712 = vunpack.c.l.b16 %v2305
    %v2713 = vunpack.c.h.b16 %v2305
    %v2714 = vunpack.c.l.b16 %v2306
    %v2715 = vunpack.c.h.b16 %v2306
    %v2716 = vunpack.c.l.b16 %v2307
    %v2717 = vunpack.c.h.b16 %v2307
    %v2718 = vunpack.c.l.b16 %v2308
    %v2719 = vunpack.c.h.b16 %v2308
    %v2720 = vunpack.c.l.b16 %v2309
    %v2721 = vunpack.c.h.b16 %v2309
    %v2722 = vunpack.c.l.b16 %v2310
    %v2723 = vunpack.c.h.b16 %v2310
    %v2724 = vunpack.c.l.b16 %v2311
    %v2725 = vunpack.c.h.b16 %v2311
    %v2726 = vunpack.c.l.b16 %v2312
    %v2727 = vunpack.c.h.b16 %v2312
    %v2728 = vunpack.c.l.b16 %v2313
    %v2729 = vunpack.c.h.b16 %v2313
    %v2730 = vunpack.c.l.b16 %v2314
    %v2731 = vunpack.c.h.b16 %v2314
    %v2732 = vunpack.c.l.b16 %v2315
    %v2733 = vunpack.c.h.b16 %v2315
    %v2734 = vunpack.c.l.b16 %v2316
    %v2735 = vunpack.c.h.b16 %v2316
    %v2736 = vunpack.c.l.b16 %v2317
    %v2737 = vunpack.c.h.b16 %v2317
    %v2738 = vunpack.c.l.b16 %v2318
    %v2739 = vunpack.c.h.b16 %v2318
    %v2740 = vunpack.c.l.b16 %v2319
    %v2741 = vunpack.c.h.b16 %v2319
    %v2742 = vunpack.c.l.b16 %v2320
    %v2743 = vunpack.c.h.b16 %v2320
    %v2744 = vunpack.c.l.b16 %v2321
    %v2745 = vunpack.c.h.b16 %v2321
    %v2746 = vunpack.c.l.b16 %v2322
    %v2747 = vunpack.c.h.b16 %v2322
    %v2748 = vunpack.c.l.b16 %v2323
    %v2749 = vunpack.c.h.b16 %v2323
    %v2750 = vunpack.c.l.b16 %v2324
    %v2751 = vunpack.c.h.b16 %v2324
    %v2752 = vunpack.c.l.b16 %v2325
    %v2753 = vunpack.c.h.b16 %v2325
    %v2754 = vunpack.c.l.b16 %v2326
    %v2755 = vunpack.c.h.b16 %v2326
    %v2756 = vunpack.c.l.b16 %v2327
    %v2757 = vunpack.c.h.b16 %v2327
    %v2758 = vunpack.c.l.b16 %v2328
    %v2759 = vunpack.c.h.b16 %v2328
    %v2760 = vunpack.c.l.b16 %v2329
    %v2761 = vunpack.c.h.b16 %v2329
    %v2762 = vunpack.c.l.b16 %v2330
    %v2763 = vunpack.c.h.b16 %v2330
    %v2764 = vunpack.c.l.b16 %v2331
    %v2765 = vunpack.c.h.b16 %v2331
    %v2766 = vunpack.c.l.b16 %v2332
    %v2767 = vunpack.c.h.b16 %v2332
    %v2768 = vunpack.c.l.b16 %v2333
    %v2769 = vunpack.c.h.b16 %v2333
    %v2770 = vunpack.c.l.b16 %v2334
    %v2771 = vunpack.c.h.b16 %v2334
    %v2772 = vunpack.c.l.b16 %v2335
    %v2773 = vunpack.c.h.b16 %v2335
    %v2774 = vunpack.c.l.b16 %v2336
    %v2775 = vunpack.c.h.b16 %v2336
    %v2776 = vunpack.c.l.b16 %v2337
    %v2777 = vunpack.c.h.b16 %v2337
    %v2778 = vunpack.c.l.b16 %v2338
    %v2779 = vunpack.c.h.b16 %v2338
    %v2780 = vunpack.c.l.b16 %v2339
    %v2781 = vunpack.c.h.b16 %v2339
    %v2782 = vunpack.c.l.b16 %v2340
    %v2783 = vunpack.c.h.b16 %v2340
    %v2784 = vunpack.c.l.b16 %v2341
    %v2785 = vunpack.c.h.b16 %v2341
    %v2786 = vunpack.c.l.b16 %v2342
    %v2787 = vunpack.c.h.b16 %v2342
    %v2788 = vunpack.c.l.b16 %v2343
    %v2789 = vunpack.c.h.b16 %v2343
    %v2790 = vunpack.c.l.b16 %v2344
    %v2791 = vunpack.c.h.b16 %v2344
    %v2792 = vunpack.c.l.b16 %v2345
    %v2793 = vunpack.c.h.b16 %v2345
    %v2794 = vunpack.c.l.b16 %v2346
    %v2795 = vunpack.c.h.b16 %v2346
    %v2796 = vunpack.c.l.b16 %v2347
    %v2797 = vunpack.c.h.b16 %v2347
    %v2798 = vunpack.c.l.b16 %v2348
    %v2799 = vunpack.c.h.b16 %v2348
    %v2800 = vunpack.c.l.b16 %v2349
    %v2801 = vunpack.c.h.b16 %v2349
    %v2802 = vunpack.c.l.b16 %v2350
    %v2803 = vunpack.c.h.b16 %v2350
    %v2804 = vunpack.c.l.b16 %v2351
    %v2805 = vunpack.c.h.b16 %v2351
    %v2806 = vunpack.c.l.b16 %v2352
    %v2807 = vunpack.c.h.b16 %v2352
    %v2808 = vunpack.c.l.b16 %v2353
    %v2809 = vunpack.c.h.b16 %v2353
    %v2810 = vunpack.c.l.b16 %v2354
    %v2811 = vunpack.c.h.b16 %v2354
    %v2812 = vunpack.c.l.b16 %v2355
    %v2813 = vunpack.c.h.b16 %v2355
    %v2814 = vunpack.c.l.b16 %v2356
    %v2815 = vunpack.c.h.b16 %v2356
    %v2816 = vunpack.c.l.b16 %v2357
    %v2817 = vunpack.c.h.b16 %v2357
    %v2818 = vunpack.c.l.b16 %v2358
    %v2819 = vunpack.c.h.b16 %v2358
    %v2820 = vunpack.c.l.b16 %v2359
    %v2821 = vunpack.c.h.b16 %v2359
    %v2822 = vunpack.c.l.b16 %v2360
    %v2823 = vunpack.c.h.b16 %v2360
    %v2824 = vunpack.c.l.b16 %v2361
    %v2825 = vunpack.c.h.b16 %v2361
    %v2826 = vunpack.c.l.b16 %v2362
    %v2827 = vunpack.c.h.b16 %v2362
    %v2828 = vunpack.c.l.b16 %v2363
    %v2829 = vunpack.c.h.b16 %v2363
    %v2830 = vunpack.c.l.b16 %v2364
    %v2831 = vunpack.c.h.b16 %v2364
    %v2832 = vunpack.c.l.b16 %v2365
    %v2833 = vunpack.c.h.b16 %v2365
    %v2834 = vunpack.c.l.b16 %v2366
    %v2835 = vunpack.c.h.b16 %v2366
    %v2836 = vunpack.c.l.b16 %v2367
    %v2837 = vunpack.c.h.b16 %v2367
    %v2838 = vunpack.c.l.b16 %v2368
    %v2839 = vunpack.c.h.b16 %v2368
    %v2840 = vunpack.c.l.b16 %v2369
    %v2841 = vunpack.c.h.b16 %v2369
    %v2842 = vunpack.c.l.b16 %v2370
    %v2843 = vunpack.c.h.b16 %v2370
    %v2844 = vunpack.c.l.b16 %v2371
    %v2845 = vunpack.c.h.b16 %v2371
    %v2846 = vunpack.c.l.b16 %v2372
    %v2847 = vunpack.c.h.b16 %v2372
    %v2848 = vunpack.c.l.b16 %v2373
    %v2849 = vunpack.c.h.b16 %v2373
    %v2850 = vunpack.c.l.b16 %v2374
    %v2851 = vunpack.c.h.b16 %v2374
    %v2852 = vunpack.c.l.b16 %v2375
    %v2853 = vunpack.c.h.b16 %v2375
    %v2854 = vunpack.c.l.b16 %v2376
    %v2855 = vunpack.c.h.b16 %v2376
    %v2856 = vunpack.c.l.b16 %v2377
    %v2857 = vunpack.c.h.b16 %v2377
    %v2858 = vunpack.c.l.b16 %v2378
    %v2859 = vunpack.c.h.b16 %v2378
    %v2860 = vunpack.c.l.b16 %v2379
    %v2861 = vunpack.c.h.b16 %v2379
    %v2862 = vunpack.c.l.b16 %v2380
    %v2863 = vunpack.c.h.b16 %v2380
    %v2864 = vunpack.c.l.b16 %v2381
    %v2865 = vunpack.c.h.b16 %v2381
    %v2866 = vunpack.c.l.b16 %v2382
    %v2867 = vunpack.c.h.b16 %v2382
    %v2868 = vunpack.c.l.b16 %v2383
    %v2869 = vunpack.c.h.b16 %v2383
    %v2870 = vunpack.c.l.b16 %v2384
    %v2871 = vunpack.c.h.b16 %v2384
    %v2872 = vunpack.c.l.b16 %v2385
    %v2873 = vunpack.c.h.b16 %v2385
    %v2874 = vunpack.c.l.b16 %v2386
    %v2875 = vunpack.c.h.b16 %v2386
    %v2876 = vunpack.c.l.b16 %v2387
    %v2877 = vunpack.c.h.b16 %v2387
    %v2878 = vunpack.c.l.b16 %v2388
    %v2879 = vunpack.c.h.b16 %v2388
    %v2880 = vunpack.c.l.b16 %v2389
    %v2881 = vunpack.c.h.b16 %v2389
    %v2882 = vunpack.c.l.b16 %v2390
    %v2883 = vunpack.c.h.b16 %v2390
    %v2884 = vunpack.c.l.b16 %v2391
    %v2885 = vunpack.c.h.b16 %v2391
    %v2886 = vunpack.c.l.b16 %v2392
    %v2887 = vunpack.c.h.b16 %v2392
    %v2888 = vunpack.c.l.b16 %v2393
    %v2889 = vunpack.c.h.b16 %v2393
    %v2890 = vunpack.c.l.b16 %v2394
    %v2891 = vunpack.c.h.b16 %v2394
    %v2892 = vunpack.c.l.b16 %v2395
    %v2893 = vunpack.c.h.b16 %v2395
    %v2894 = vunpack.c.l.b16 %v2396
    %v2895 = vunpack.c.h.b16 %v2396
    %v2896 = vunpack.c.l.b16 %v2397
    %v2897 = vunpack.c.h.b16 %v2397
    %v2898 = vunpack.c.l.b16 %v2398
    %v2899 = vunpack.c.h.b16 %v2398
    %v2900 = vunpack.c.l.b16 %v2399
    %v2901 = vunpack.c.h.b16 %v2399
    %v2902 = vunpack.c.l.b16 %v2400
    %v2903 = vunpack.c.h.b16 %v2400
    %v2904 = vunpack.c.l.b16 %v2401
    %v2905 = vunpack.c.h.b16 %v2401
    %v2906 = vunpack.c.l.b16 %v2402
    %v2907 = vunpack.c.h.b16 %v2402
    %v2908 = vunpack.c.l.b16 %v2403
    %v2909 = vunpack.c.h.b16 %v2403
    %v2910 = vunpack.c.l.b16 %v2404
    %v2911 = vunpack.c.h.b16 %v2404
    %v2912 = vunpack.c.l.b16 %v2405
    %v2913 = vunpack.c.h.b16 %v2405
    %v2914 = vunpack.c.l.b16 %v2406
    %v2915 = vunpack.c.h.b16 %v2406
    %v2916 = vunpack.c.l.b16 %v2407
    %v2917 = vunpack.c.h.b16 %v2407
    %v2918 = vunpack.c.l.b16 %v2408
    %v2919 = vunpack.c.h.b16 %v2408
    %v2920 = vunpack.c.l.b16 %v2409
    %v2921 = vunpack.c.h.b16 %v2409
    %v2922 = vunpack.c.l.b16 %v2410
    %v2923 = vunpack.c.h.b16 %v2410
    %v2924 = vunpack.c.l.b16 %v2411
    %v2925 = vunpack.c.h.b16 %v2411
    %v2926 = vunpack.c.l.b16 %v2412
    %v2927 = vunpack.c.h.b16 %v2412
    %v2928 = vunpack.c.l.b16 %v2413
    %v2929 = vunpack.c.h.b16 %v2413
    %v2930 = vunpack.c.l.b16 %v2414
    %v2931 = vunpack.c.h.b16 %v2414
    %v2932 = vunpack.c.l.b16 %v2415
    %v2933 = vunpack.c.h.b16 %v2415
    %v2934 = vunpack.c.l.b16 %v2416
    %v2935 = vunpack.c.h.b16 %v2416
    %v2936 = vunpack.c.l.b16 %v2417
    %v2937 = vunpack.c.h.b16 %v2417
    %v2938 = vunpack.c.l.b16 %v2418
    %v2939 = vunpack.c.h.b16 %v2418
    %v2940 = vunpack.c.l.b16 %v2419
    %v2941 = vunpack.c.h.b16 %v2419
    %v2942 = vunpack.c.l.b16 %v2420
    %v2943 = vunpack.c.h.b16 %v2420
    %v2944 = vunpack.c.l.b16 %v2421
    %v2945 = vunpack.c.h.b16 %v2421
    %v2946 = vunpack.c.l.b16 %v2422
    %v2947 = vunpack.c.h.b16 %v2422
    %v2948 = vunpack.c.l.b16 %v2423
    %v2949 = vunpack.c.h.b16 %v2423
    %v2950 = vunpack.c.l.b16 %v2424
    %v2951 = vunpack.c.h.b16 %v2424
    %v2952 = vunpack.c.l.b16 %v2425
    %v2953 = vunpack.c.h.b16 %v2425
    %v2954 = vunpack.c.l.b16 %v2426
    %v2955 = vunpack.c.h.b16 %v2426
    %v2956 = vunpack.c.l.b16 %v2427
    %v2957 = vunpack.c.h.b16 %v2427
    %v2958 = vunpack.c.l.b16 %v2428
    %v2959 = vunpack.c.h.b16 %v2428
    %v2960 = vunpack.c.l.b16 %v2429
    %v2961 = vunpack.c.h.b16 %v2429
    %v2962 = vunpack.c.l.b16 %v2430
    %v2963 = vunpack.c.h.b16 %v2430
    %v2964 = vunpack.c.l.b16 %v2431
    %v2965 = vunpack.c.h.b16 %v2431
    %v2966 = vunpack.c.l.b16 %v2432
    %v2967 = vunpack.c.h.b16 %v2432
    %v2968 = vunpack.c.l.b16 %v2433
    %v2969 = vunpack.c.h.b16 %v2433
    %v2970 = vunpack.c.l.b16 %v2434
    %v2971 = vunpack.c.h.b16 %v2434
    %v2972 = vunpack.c.l.b16 %v2435
    %v2973 = vunpack.c.h.b16 %v2435
    %v2974 = vunpack.c.l.b16 %v2436
    %v2975 = vunpack.c.h.b16 %v2436
    %v2976 = vunpack.c.l.b16 %v2437
    %v2977 = vunpack.c.h.b16 %v2437
    %v2978 = vunpack.c.l.b16 %v2438
    %v2979 = vunpack.c.h.b16 %v2438
    %v2980 = vunpack.c.l.b16 %v2439
    %v2981 = vunpack.c.h.b16 %v2439
    %v2982 = vunpack.c.l.b16 %v2440
    %v2983 = vunpack.c.h.b16 %v2440
    %v2984 = vunpack.c.l.b16 %v2441
    %v2985 = vunpack.c.h.b16 %v2441
    %v2986 = vunpack.c.l.b16 %v2442
    %v2987 = vunpack.c.h.b16 %v2442
    %v2988 = vunpack.c.l.b16 %v2443
    %v2989 = vunpack.c.h.b16 %v2443
    %v2990 = vunpack.c.l.b16 %v2444
    %v2991 = vunpack.c.h.b16 %v2444
    %v2992 = vunpack.c.l.b16 %v2445
    %v2993 = vunpack.c.h.b16 %v2445
    %v2994 = vunpack.c.l.b16 %v2446
    %v2995 = vunpack.c.h.b16 %v2446
    %v2996 = vunpack.c.l.b16 %v2447
    %v2997 = vunpack.c.h.b16 %v2447
    %v2998 = vunpack.c.l.b16 %v2448
    %v2999 = vunpack.c.h.b16 %v2448
    %v3000 = vunpack.c.l.b16 %v2449
    %v3001 = vunpack.c.h.b16 %v2449
    %v3002 = vunpack.c.l.b16 %v2450
    %v3003 = vunpack.c.h.b16 %v2450
    %v3004 = vunpack.c.l.b16 %v2451
    %v3005 = vunpack.c.h.b16 %v2451
    %v3006 = vunpack.c.l.b16 %v2452
    %v3007 = vunpack.c.h.b16 %v2452
    %v3008 = vunpack.c.l.b16 %v2453
    %v3009 = vunpack.c.h.b16 %v2453
    %v3010 = vunpack.c.l.b16 %v2454
    %v3011 = vunpack.c.h.b16 %v2454
    %v3012 = vunpack.c.l.b16 %v2455
    %v3013 = vunpack.c.h.b16 %v2455
    %v3014 = vunpack.c.l.b16 %v2456
    %v3015 = vunpack.c.h.b16 %v2456
    %v3016 = vunpack.c.l.b16 %v2457
    %v3017 = vunpack.c.h.b16 %v2457
    %v3018 = vunpack.c.l.b16 %v2458
    %v3019 = vunpack.c.h.b16 %v2458
    %v3020 = vunpack.c.l.b16 %v2459
    %v3021 = vunpack.c.h.b16 %v2459
    %v3022 = vunpack.c.l.b16 %v2460
    %v3023 = vunpack.c.h.b16 %v2460
    %v3024 = vunpack.c.l.b16 %v2461
    %v3025 = vunpack.c.h.b16 %v2461
    %v3026 = vunpack.c.l.b16 %v2462
    %v3027 = vunpack.c.h.b16 %v2462
    %v3028 = vunpack.c.l.b16 %v2463
    %v3029 = vunpack.c.h.b16 %v2463
    %v3030 = vunpack.c.l.b16 %v2464
    %v3031 = vunpack.c.h.b16 %v2464
    %v3032 = vunpack.c.l.b16 %v2465
    %v3033 = vunpack.c.h.b16 %v2465
    %v3034 = vunpack.c.l.b16 %v2466
    %v3035 = vunpack.c.h.b16 %v2466
    %v3036 = vunpack.c.l.b16 %v2467
    %v3037 = vunpack.c.h.b16 %v2467
    %v3038 = vunpack.c.l.b16 %v2468
    %v3039 = vunpack.c.h.b16 %v2468
    %v3040 = vunpack.c.l.b16 %v2469
    %v3041 = vunpack.c.h.b16 %v2469
    %v3042 = vunpack.c.l.b16 %v2470
    %v3043 = vunpack.c.h.b16 %v2470
    %v3044 = vunpack.c.l.b16 %v2471
    %v3045 = vunpack.c.h.b16 %v2471
    %v3046 = vunpack.c.l.b16 %v2472
    %v3047 = vunpack.c.h.b16 %v2472
    %v3048 = vunpack.c.l.b16 %v2473
    %v3049 = vunpack.c.h.b16 %v2473
    %v3050 = vunpack.c.l.b16 %v2474
    %v3051 = vunpack.c.h.b16 %v2474
    %v3052 = vunpack.c.l.b16 %v2475
    %v3053 = vunpack.c.h.b16 %v2475
    %v3054 = vunpack.c.l.b16 %v2476
    %v3055 = vunpack.c.h.b16 %v2476
    %v3056 = vunpack.c.l.b16 %v2477
    %v3057 = vunpack.c.h.b16 %v2477
    %v3058 = vunpack.c.l.b16 %v2478
    %v3059 = vunpack.c.h.b16 %v2478
    %v3060 = vunpack.c.l.b16 %v2479
    %v3061 = vunpack.c.h.b16 %v2479
    %v3062 = vunpack.c.l.b16 %v2480
    %v3063 = vunpack.c.h.b16 %v2480
    %v3064 = vunpack.c.l.b16 %v2481
    %v3065 = vunpack.c.h.b16 %v2481
    %v3066 = vunpack.c.l.b16 %v2482
    %v3067 = vunpack.c.h.b16 %v2482
    %v3068 = vunpack.c.l.b16 %v2483
    %v3069 = vunpack.c.h.b16 %v2483
    %v3070 = vunpack.c.l.b16 %v2484
    %v3071 = vunpack.c.h.b16 %v2484
    %v3072 = vunpack.c.l.b16 %v2485
    %v3073 = vunpack.c.h.b16 %v2485
    %v3074 = vunpack.c.l.b16 %v2486
    %v3075 = vunpack.c.h.b16 %v2486
    %v3076 = vunpack.c.l.b16 %v2487
    %v3077 = vunpack.c.h.b16 %v2487
    %v3078 = vunpack.c.l.b16 %v2488
    %v3079 = vunpack.c.h.b16 %v2488
    %v3080 = vunpack.c.l.b16 %v2489
    %v3081 = vunpack.c.h.b16 %v2489
    %v3082 = vunpack.c.l.b16 %v2490
    %v3083 = vunpack.c.h.b16 %v2490
    %v3084 = vunpack.c.l.b16 %v2491
    %v3085 = vunpack.c.h.b16 %v2491
    %v3086 = vunpack.c.l.b16 %v2492
    %v3087 = vunpack.c.h.b16 %v2492
    %v3088 = vunpack.c.l.b16 %v2493
    %v3089 = vunpack.c.h.b16 %v2493
    %v3090 = vunpack.c.l.b16 %v2494
    %v3091 = vunpack.c.h.b16 %v2494
    %v3092 = vunpack.c.l.b16 %v2495
    %v3093 = vunpack.c.h.b16 %v2495
    %v3094 = vpack.c.b16 %v2714, %v2710
    %v3095 = vpack.c.b16 %v2715, %v2711
    %v3096 = vpack.c.b16 %v2716, %v2712
    %v3097 = vpack.c.b16 %v2717, %v2713
    %v3098 = vpack.c.b16 %v2722, %v2718
    %v3099 = vpack.c.b16 %v2723, %v2719
    %v3100 = vpack.c.b16 %v2724, %v2720
    %v3101 = vpack.c.b16 %v2725, %v2721
    %v3102 = vpack.c.b16 %v2730, %v2726
    %v3103 = vpack.c.b16 %v2731, %v2727
    %v3104 = vpack.c.b16 %v2732, %v2728
    %v3105 = vpack.c.b16 %v2733, %v2729
    %v3106 = vpack.c.b16 %v2738, %v2734
    %v3107 = vpack.c.b16 %v2739, %v2735
    %v3108 = vpack.c.b16 %v2740, %v2736
    %v3109 = vpack.c.b16 %v2741, %v2737
    %v3110 = vpack.c.b16 %v2746, %v2742
    %v3111 = vpack.c.b16 %v2747, %v2743
    %v3112 = vpack.c.b16 %v2748, %v2744
    %v3113 = vpack.c.b16 %v2749, %v2745
    %v3114 = vpack.c.b16 %v2754, %v2750
    %v3115 = vpack.c.b16 %v2755, %v2751
    %v3116 = vpack.c.b16 %v2756, %v2752
    %v3117 = vpack.c.b16 %v2757, %v2753
    %v3118 = vpack.c.b16 %v2762, %v2758
    %v3119 = vpack.c.b16 %v2763, %v2759
    %v3120 = vpack.c.b16 %v2764, %v2760
    %v3121 = vpack.c.b16 %v2765, %v2761
    %v3122 = vpack.c.b16 %v2770, %v2766
    %v3123 = vpack.c.b16 %v2771, %v2767
    %v3124 = vpack.c.b16 %v2772, %v2768
    %v3125 = vpack.c.b16 %v2773, %v2769
    %v3126 = vpack.c.b16 %v2778, %v2774
    %v3127 = vpack.c.b16 %v2779, %v2775
    %v3128 = vpack.c.b16 %v2780, %v2776
    %v3129 = vpack.c.b16 %v2781, %v2777
    %v3130 = vpack.c.b16 %v2786, %v2782
    %v3131 = vpack.c.b16 %v2787, %v2783
    %v3132 = vpack.c.b16 %v2788, %v2784
    %v3133 = vpack.c.b16 %v2789, %v2785
    %v3134 = vpack.c.b16 %v2794, %v2790
    %v3135 = vpack.c.b16 %v2795, %v2791
    %v3136 = vpack.c.b16 %v2796, %v2792
    %v3137 = vpack.c.b16 %v2797, %v2793
    %v3138 = vpack.c.b16 %v2802, %v2798
    %v3139 = vpack.c.b16 %v2803, %v2799
    %v3140 = vpack.c.b16 %v2804, %v2800
    %v3141 = vpack.c.b16 %v2805, %v2801
    %v3142 = vpack.c.b16 %v2810, %v2806
    %v3143 = vpack.c.b16 %v2811, %v2807
    %v3144 = vpack.c.b16 %v2812, %v2808
    %v3145 = vpack.c.b16 %v2813, %v2809
    %v3146 = vpack.c.b16 %v2818, %v2814
    %v3147 = vpack.c.b16 %v2819, %v2815
    %v3148 = vpack.c.b16 %v2820, %v2816
    %v3149 = vpack.c.b16 %v2821, %v2817
    %v3150 = vpack.c.b16 %v2826, %v2822
    %v3151 = vpack.c.b16 %v2827, %v2823
    %v3152 = vpack.c.b16 %v2828, %v2824
    %v3153 = vpack.c.b16 %v2829, %v2825
    %v3154 = vpack.c.b16 %v2834, %v2830
    %v3155 = vpack.c.b16 %v2835, %v2831
    %v3156 = vpack.c.b16 %v2836, %v2832
    %v3157 = vpack.c.b16 %v2837, %v2833
    %v3158 = vpack.c.b16 %v2842, %v2838
    %v3159 = vpack.c.b16 %v2843, %v2839
    %v3160 = vpack.c.b16 %v2844, %v2840
    %v3161 = vpack.c.b16 %v2845, %v2841
    %v3162 = vpack.c.b16 %v2850, %v2846
    %v3163 = vpack.c.b16 %v2851, %v2847
    %v3164 = vpack.c.b16 %v2852, %v2848
    %v3165 = vpack.c.b16 %v2853, %v2849
    %v3166 = vpack.c.b16 %v2858, %v2854
    %v3167 = vpack.c.b16 %v2859, %v2855
    %v3168 = vpack.c.b16 %v2860, %v2856
    %v3169 = vpack.c.b16 %v2861, %v2857
    %v3170 = vpack.c.b16 %v2866, %v2862
    %v3171 = vpack.c.b16 %v2867, %v2863
    %v3172 = vpack.c.b16 %v2868, %v2864
    %v3173 = vpack.c.b16 %v2869, %v2865
    %v3174 = vpack.c.b16 %v2874, %v2870
    %v3175 = vpack.c.b16 %v2875, %v2871
    %v3176 = vpack.c.b16 %v2876, %v2872
    %v3177 = vpack.c.b16 %v2877, %v2873
    %v3178 = vpack.c.b16 %v2882, %v2878
    %v3179 = vpack.c.b16 %v2883, %v2879
    %v3180 = vpack.c.b16 %v2884, %v2880
    %v3181 = vpack.c.b16 %v2885, %v2881
    %v3182 = vpack.c.b16 %v2890, %v2886
    %v3183 = vpack.c.b16 %v2891, %v2887
    %v3184 = vpack.c.b16 %v2892, %v2888
    %v3185 = vpack.c.b16 %v2893, %v2889
    %v3186 = vpack.c.b16 %v2898, %v2894
    %v3187 = vpack.c.b16 %v2899, %v2895
    %v3188 = vpack.c.b16 %v2900, %v2896
    %v3189 = vpack.c.b16 %v2901, %v2897
    %v3190 = vpack.c.b16 %v2906, %v2902
    %v3191 = vpack.c.b16 %v2907, %v2903
    %v3192 = vpack.c.b16 %v2908, %v2904
    %v3193 = vpack.c.b16 %v2909, %v2905
    %v3194 = vpack.c.b16 %v2914, %v2910
    %v3195 = vpack.c.b16 %v2915, %v2911
    %v3196 = vpack.c.b16 %v2916, %v2912
    %v3197 = vpack.c.b16 %v2917, %v2913
    %v3198 = vpack.c.b16 %v2922, %v2918
    %v3199 = vpack.c.b16 %v2923, %v2919
    %v3200 = vpack.c.b16 %v2924, %v2920
    %v3201 = vpack.c.b16 %v2925, %v2921
    %v3202 = vpack.c.b16 %v2930, %v2926
    %v3203 = vpack.c.b16 %v2931, %v2927
    %v3204 = vpack.c.b16 %v2932, %v2928
    %v3205 = vpack.c.b16 %v2933, %v2929
    %v3206 = vpack.c.b16 %v2938, %v2934
    %v3207 = vpack.c.b16 %v2939, %v2935
    %v3208 = vpack.c.b16 %v2940, %v2936
    %v3209 = vpack.c.b16 %v2941, %v2937
    %v3210 = vpack.c.b16 %v2946, %v2942
    %v3211 = vpack.c.b16 %v2947, %v2943
    %v3212 = vpack.c.b16 %v2948, %v2944
    %v3213 = vpack.c.b16 %v2949, %v2945
    %v3214 = vpack.c.b16 %v2954, %v2950
    %v3215 = vpack.c.b16 %v2955, %v2951
    %v3216 = vpack.c.b16 %v2956, %v2952
    %v3217 = vpack.c.b16 %v2957, %v2953
    %v3218 = vpack.c.b16 %v2962, %v2958
    %v3219 = vpack.c.b16 %v2963, %v2959
    %v3220 = vpack.c.b16 %v2964, %v2960
    %v3221 = vpack.c.b16 %v2965, %v2961
    %v3222 = vpack.c.b16 %v2970, %v2966
    %v3223 = vpack.c.b16 %v2971, %v2967
    %v3224 = vpack.c.b16 %v2972, %v2968
    %v3225 = vpack.c.b16 %v2973, %v2969
    %v3226 = vpack.c.b16 %v2978, %v2974
    %v3227 = vpack.c.b16 %v2979, %v2975
    %v3228 = vpack.c.b16 %v2980, %v2976
    %v3229 = vpack.c.b16 %v2981, %v2977
    %v3230 = vpack.c.b16 %v2986, %v2982
    %v3231 = vpack.c.b16 %v2987, %v2983
    %v3232 = vpack.c.b16 %v2988, %v2984
    %v3233 = vpack.c.b16 %v2989, %v2985
    %v3234 = vpack.c.b16 %v2994, %v2990
    %v3235 = vpack.c.b16 %v2995, %v2991
    %v3236 = vpack.c.b16 %v2996, %v2992
    %v3237 = vpack.c.b16 %v2997, %v2993
    %v3238 = vpack.c.b16 %v3002, %v2998
    %v3239 = vpack.c.b16 %v3003, %v2999
    %v3240 = vpack.c.b16 %v3004, %v3000
    %v3241 = vpack.c.b16 %v3005, %v3001
    %v3242 = vpack.c.b16 %v3010, %v3006
    %v3243 = vpack.c.b16 %v3011, %v3007
    %v3244 = vpack.c.b16 %v3012, %v3008
    %v3245 = vpack.c.b16 %v3013, %v3009
    %v3246 = vpack.c.b16 %v3018, %v3014
    %v3247 = vpack.c.b16 %v3019, %v3015
    %v3248 = vpack.c.b16 %v3020, %v3016
    %v3249 = vpack.c.b16 %v3021, %v3017
    %v3250 = vpack.c.b16 %v3026, %v3022
    %v3251 = vpack.c.b16 %v3027, %v3023
    %v3252 = vpack.c.b16 %v3028, %v3024
    %v3253 = vpack.c.b16 %v3029, %v3025
    %v3254 = vpack.c.b16 %v3034, %v3030
    %v3255 = vpack.c.b16 %v3035, %v3031
    %v3256 = vpack.c.b16 %v3036, %v3032
    %v3257 = vpack.c.b16 %v3037, %v3033
    %v3258 = vpack.c.b16 %v3042, %v3038
    %v3259 = vpack.c.b16 %v3043, %v3039
    %v3260 = vpack.c.b16 %v3044, %v3040
    %v3261 = vpack.c.b16 %v3045, %v3041
    %v3262 = vpack.c.b16 %v3050, %v3046
    %v3263 = vpack.c.b16 %v3051, %v3047
    %v3264 = vpack.c.b16 %v3052, %v3048
    %v3265 = vpack.c.b16 %v3053, %v3049
    %v3266 = vpack.c.b16 %v3058, %v3054
    %v3267 = vpack.c.b16 %v3059, %v3055
    %v3268 = vpack.c.b16 %v3060, %v3056
    %v3269 = vpack.c.b16 %v3061, %v3057
    %v3270 = vpack.c.b16 %v3066, %v3062
    %v3271 = vpack.c.b16 %v3067, %v3063
    %v3272 = vpack.c.b16 %v3068, %v3064
    %v3273 = vpack.c.b16 %v3069, %v3065
    %v3274 = vpack.c.b16 %v3074, %v3070
    %v3275 = vpack.c.b16 %v3075, %v3071
    %v3276 = vpack.c.b16 %v3076, %v3072
    %v3277 = vpack.c.b16 %v3077, %v3073
    %v3278 = vpack.c.b16 %v3082, %v3078
    %v3279 = vpack.c.b16 %v3083, %v3079
    %v3280 = vpack.c.b16 %v3084, %v3080
    %v3281 = vpack.c.b16 %v3085, %v3081
    %v3282 = vpack.c.b16 %v3090, %v3086
    %v3283 = vpack.c.b16 %v3091, %v3087
    %v3284 = vpack.c.b16 %v3092, %v3088
    %v3285 = vpack.c.b16 %v3093, %v3089
    %3478 = vmatprep.subr.bf16.mxu0 %v3095
    %3479 = vmatpush1.bf16.msra.mxu0 %v3094
    %3480 = vmatprep.subr.bf16.mxu0 %v3099
    %3481 = vmatpush1.bf16.msra.mxu0 %v3098
    %3482 = vmatprep.subr.bf16.mxu0 %v3103
    %3483 = vmatpush1.bf16.msra.mxu0 %v3102
    %3484 = vmatprep.subr.bf16.mxu0 %v3107
    %3485 = vmatpush1.bf16.msra.mxu0 %v3106
    %3486 = vmatprep.subr.bf16.mxu0 %v3111
    %3487 = vmatpush1.bf16.msra.mxu0 %v3110
    %3488 = vmatprep.subr.bf16.mxu0 %v3115
    %3489 = vmatpush1.bf16.msra.mxu0 %v3114
    %3490 = vmatprep.subr.bf16.mxu0 %v3119
    %3491 = vmatpush1.bf16.msra.mxu0 %v3118
    %3492 = vmatprep.subr.bf16.mxu0 %v3123
    %3493 = vmatpush1.bf16.msra.mxu0 %v3122
    %3494 = vmatprep.subr.bf16.mxu0 %v3127
    %3495 = vmatpush1.bf16.msra.mxu0 %v3126
    %3496 = vmatprep.subr.bf16.mxu0 %v3131
    %3497 = vmatpush1.bf16.msra.mxu0 %v3130
    %3498 = vmatprep.subr.bf16.mxu0 %v3135
    %3499 = vmatpush1.bf16.msra.mxu0 %v3134
    %3500 = vmatprep.subr.bf16.mxu0 %v3139
    %3501 = vmatpush1.bf16.msra.mxu0 %v3138
    %3502 = vmatprep.subr.bf16.mxu0 %v3143
    %3503 = vmatpush1.bf16.msra.mxu0 %v3142
    %3504 = vmatprep.subr.bf16.mxu0 %v3147
    %3505 = vmatpush1.bf16.msra.mxu0 %v3146
    %3506 = vmatprep.subr.bf16.mxu0 %v3151
    %3507 = vmatpush1.bf16.msra.mxu0 %v3150
    %3508 = vmatprep.subr.bf16.mxu0 %v3155
    %3509 = vmatpush1.bf16.msra.mxu0 %v3154
    %3510 = vmatprep.mubr.bf16.mxu0 %v2299
    %3511 = vmatmul.mubr.bf16.gmra.mrb[0].mxu0 %v2298
    %v3512 = vpop.f32.mrb[0].mxu0
    %v3513 = vadd.f32 %v2501, %v3512
    %v3514 = vpop.f32.mrb[0].mxu0
    %v3515 = vadd.f32 %v2505, %v3514
    %v3516 = vpop.f32.mrb[0].mxu0
    %v3517 = vadd.f32 %v2501, %v3516
    %v3518 = vpop.f32.mrb[0].mxu0
    %v3519 = vadd.f32 %v2505, %v3518
    %3520 = vdwg.mxu0
    %3521 = vmatprep.subr.bf16.mxu0 %v3159
    %3522 = vmatpush1.bf16.msra.mxu0 %v3158
    %3523 = vmatprep.subr.bf16.mxu0 %v3163
    %3524 = vmatpush1.bf16.msra.mxu0 %v3162
    %3525 = vmatprep.subr.bf16.mxu0 %v3167
    %3526 = vmatpush1.bf16.msra.mxu0 %v3166
    %3527 = vmatprep.subr.bf16.mxu0 %v3171
    %3528 = vmatpush1.bf16.msra.mxu0 %v3170
    %3529 = vmatprep.subr.bf16.mxu0 %v3175
    %3530 = vmatpush1.bf16.msra.mxu0 %v3174
    %3531 = vmatprep.subr.bf16.mxu0 %v3179
    %3532 = vmatpush1.bf16.msra.mxu0 %v3178
    %3533 = vmatprep.subr.bf16.mxu0 %v3183
    %3534 = vmatpush1.bf16.msra.mxu0 %v3182
    %3535 = vmatprep.subr.bf16.mxu0 %v3187
    %3536 = vmatpush1.bf16.msra.mxu0 %v3186
    %3537 = vmatprep.subr.bf16.mxu0 %v3191
    %3538 = vmatpush1.bf16.msra.mxu0 %v3190
    %3539 = vmatprep.subr.bf16.mxu0 %v3195
    %3540 = vmatpush1.bf16.msra.mxu0 %v3194
    %3541 = vmatprep.subr.bf16.mxu0 %v3199
    %3542 = vmatpush1.bf16.msra.mxu0 %v3198
    %3543 = vmatprep.subr.bf16.mxu0 %v3203
    %3544 = vmatpush1.bf16.msra.mxu0 %v3202
    %3545 = vmatprep.subr.bf16.mxu0 %v3207
    %3546 = vmatpush1.bf16.msra.mxu0 %v3206
    %3547 = vmatprep.subr.bf16.mxu0 %v3211
    %3548 = vmatpush1.bf16.msra.mxu0 %v3210
    %3549 = vmatprep.subr.bf16.mxu0 %v3215
    %3550 = vmatpush1.bf16.msra.mxu0 %v3214
    %3551 = vmatprep.subr.bf16.mxu0 %v3219
    %3552 = vmatpush1.bf16.msra.mxu0 %v3218
    %3553 = vmatprep.mubr.bf16.mxu0 %v2301
    %3554 = vmatmul.mubr.bf16.gmra.mrb[0].mxu0 %v2300
    %v3555 = vpop.f32.mrb[0].mxu0
    %v3556 = vadd.f32 %v3513, %v3555
    %v3557 = vpop.f32.mrb[0].mxu0
    %v3558 = vadd.f32 %v3515, %v3557
    %v3559 = vpop.f32.mrb[0].mxu0
    %v3560 = vadd.f32 %v3517, %v3559
    %v3561 = vpop.f32.mrb[0].mxu0
    %v3562 = vadd.f32 %v3519, %v3561
    %3563 = vdwg.mxu0
    %3564 = vmatprep.subr.bf16.mxu0 %v3223
    %3565 = vmatpush1.bf16.msra.mxu0 %v3222
    %3566 = vmatprep.subr.bf16.mxu0 %v3227
    %3567 = vmatpush1.bf16.msra.mxu0 %v3226
    %3568 = vmatprep.subr.bf16.mxu0 %v3231
    %3569 = vmatpush1.bf16.msra.mxu0 %v3230
    %3570 = vmatprep.subr.bf16.mxu0 %v3235
    %3571 = vmatpush1.bf16.msra.mxu0 %v3234
    %3572 = vmatprep.subr.bf16.mxu0 %v3239
    %3573 = vmatpush1.bf16.msra.mxu0 %v3238
    %3574 = vmatprep.subr.bf16.mxu0 %v3243
    %3575 = vmatpush1.bf16.msra.mxu0 %v3242
    %3576 = vmatprep.subr.bf16.mxu0 %v3247
    %3577 = vmatpush1.bf16.msra.mxu0 %v3246
    %3578 = vmatprep.subr.bf16.mxu0 %v3251
    %3579 = vmatpush1.bf16.msra.mxu0 %v3250
    %3580 = vmatprep.subr.bf16.mxu0 %v3255
    %3581 = vmatpush1.bf16.msra.mxu0 %v3254
    %3582 = vmatprep.subr.bf16.mxu0 %v3259
    %3583 = vmatpush1.bf16.msra.mxu0 %v3258
    %3584 = vmatprep.subr.bf16.mxu0 %v3263
    %3585 = vmatpush1.bf16.msra.mxu0 %v3262
    %3586 = vmatprep.subr.bf16.mxu0 %v3267
    %3587 = vmatpush1.bf16.msra.mxu0 %v3266
    %3588 = vmatprep.subr.bf16.mxu0 %v3271
    %3589 = vmatpush1.bf16.msra.mxu0 %v3270
    %3590 = vmatprep.subr.bf16.mxu0 %v3275
    %3591 = vmatpush1.bf16.msra.mxu0 %v3274
    %3592 = vmatprep.subr.bf16.mxu0 %v3279
    %3593 = vmatpush1.bf16.msra.mxu0 %v3278
    %3594 = vmatprep.subr.bf16.mxu0 %v3283
    %3595 = vmatpush1.bf16.msra.mxu0 %v3282
    %3596 = vmatprep.mubr.bf16.mxu0 %v2303
    %3597 = vmatmul.mubr.bf16.gmra.mrb[0].mxu0 %v2302
    %v3598 = vpop.f32.mrb[0].mxu0
    %v3599 = vadd.f32 %v3556, %v3598
    %v3600 = vpop.f32.mrb[0].mxu0
    %v3601 = vadd.f32 %v3558, %v3600
    %v3602 = vpop.f32.mrb[0].mxu0
    %v3603 = vadd.f32 %v3560, %v3602
    %v3604 = vpop.f32.mrb[0].mxu0
    %v3605 = vadd.f32 %v3562, %v3604
    %3606 = vdwg.mxu0
    %3607 = vmatprep.subr.bf16.mxu0 %v3097
    %3608 = vmatpush1.bf16.msra.mxu0 %v3096
    %3609 = vmatprep.subr.bf16.mxu0 %v3101
    %3610 = vmatpush1.bf16.msra.mxu0 %v3100
    %3611 = vmatprep.subr.bf16.mxu0 %v3105
    %3612 = vmatpush1.bf16.msra.mxu0 %v3104
    %3613 = vmatprep.subr.bf16.mxu0 %v3109
    %3614 = vmatpush1.bf16.msra.mxu0 %v3108
    %3615 = vmatprep.subr.bf16.mxu0 %v3113
    %3616 = vmatpush1.bf16.msra.mxu0 %v3112
    %3617 = vmatprep.subr.bf16.mxu0 %v3117
    %3618 = vmatpush1.bf16.msra.mxu0 %v3116
    %3619 = vmatprep.subr.bf16.mxu0 %v3121
    %3620 = vmatpush1.bf16.msra.mxu0 %v3120
    %3621 = vmatprep.subr.bf16.mxu0 %v3125
    %3622 = vmatpush1.bf16.msra.mxu0 %v3124
    %3623 = vmatprep.subr.bf16.mxu0 %v3129
    %3624 = vmatpush1.bf16.msra.mxu0 %v3128
    %3625 = vmatprep.subr.bf16.mxu0 %v3133
    %3626 = vmatpush1.bf16.msra.mxu0 %v3132
    %3627 = vmatprep.subr.bf16.mxu0 %v3137
    %3628 = vmatpush1.bf16.msra.mxu0 %v3136
    %3629 = vmatprep.subr.bf16.mxu0 %v3141
    %3630 = vmatpush1.bf16.msra.mxu0 %v3140
    %3631 = vmatprep.subr.bf16.mxu0 %v3145
    %3632 = vmatpush1.bf16.msra.mxu0 %v3144
    %3633 = vmatprep.subr.bf16.mxu0 %v3149
    %3634 = vmatpush1.bf16.msra.mxu0 %v3148
    %3635 = vmatprep.subr.bf16.mxu0 %v3153
    %3636 = vmatpush1.bf16.msra.mxu0 %v3152
    %3637 = vmatprep.subr.bf16.mxu0 %v3157
    %3638 = vmatpush1.bf16.msra.mxu0 %v3156
    %3639 = vmatprep.mubr.bf16.mxu0 %v2299
    %3640 = vmatmul.mubr.bf16.gmra.mrb[0].mxu0 %v2298
    %v3641 = vpop.f32.mrb[0].mxu0
    %v3642 = vadd.f32 %v2509, %v3641
    %v3643 = vpop.f32.mrb[0].mxu0
    %v3644 = vadd.f32 %v2513, %v3643
    %v3645 = vpop.f32.mrb[0].mxu0
    %v3646 = vadd.f32 %v2509, %v3645
    %v3647 = vpop.f32.mrb[0].mxu0
    %v3648 = vadd.f32 %v2513, %v3647
    %3649 = vdwg.mxu0
    %3650 = vmatprep.subr.bf16.mxu0 %v3161
    %3651 = vmatpush1.bf16.msra.mxu0 %v3160
    %3652 = vmatprep.subr.bf16.mxu0 %v3165
    %3653 = vmatpush1.bf16.msra.mxu0 %v3164
    %3654 = vmatprep.subr.bf16.mxu0 %v3169
    %3655 = vmatpush1.bf16.msra.mxu0 %v3168
    %3656 = vmatprep.subr.bf16.mxu0 %v3173
    %3657 = vmatpush1.bf16.msra.mxu0 %v3172
    %3658 = vmatprep.subr.bf16.mxu0 %v3177
    %3659 = vmatpush1.bf16.msra.mxu0 %v3176
    %3660 = vmatprep.subr.bf16.mxu0 %v3181
    %3661 = vmatpush1.bf16.msra.mxu0 %v3180
    %3662 = vmatprep.subr.bf16.mxu0 %v3185
    %3663 = vmatpush1.bf16.msra.mxu0 %v3184
    %3664 = vmatprep.subr.bf16.mxu0 %v3189
    %3665 = vmatpush1.bf16.msra.mxu0 %v3188
    %3666 = vmatprep.subr.bf16.mxu0 %v3193
    %3667 = vmatpush1.bf16.msra.mxu0 %v3192
    %3668 = vmatprep.subr.bf16.mxu0 %v3197
    %3669 = vmatpush1.bf16.msra.mxu0 %v3196
    %3670 = vmatprep.subr.bf16.mxu0 %v3201
    %3671 = vmatpush1.bf16.msra.mxu0 %v3200
    %3672 = vmatprep.subr.bf16.mxu0 %v3205
    %3673 = vmatpush1.bf16.msra.mxu0 %v3204
    %3674 = vmatprep.subr.bf16.mxu0 %v3209
    %3675 = vmatpush1.bf16.msra.mxu0 %v3208
    %3676 = vmatprep.subr.bf16.mxu0 %v3213
    %3677 = vmatpush1.bf16.msra.mxu0 %v3212
    %3678 = vmatprep.subr.bf16.mxu0 %v3217
    %3679 = vmatpush1.bf16.msra.mxu0 %v3216
    %3680 = vmatprep.subr.bf16.mxu0 %v3221
    %3681 = vmatpush1.bf16.msra.mxu0 %v3220
    %3682 = vmatprep.mubr.bf16.mxu0 %v2301
    %3683 = vmatmul.mubr.bf16.gmra.mrb[0].mxu0 %v2300
    %v3684 = vpop.f32.mrb[0].mxu0
    %v3685 = vadd.f32 %v3642, %v3684
    %v3686 = vpop.f32.mrb[0].mxu0
    %v3687 = vadd.f32 %v3644, %v3686
    %v3688 = vpop.f32.mrb[0].mxu0
    %v3689 = vadd.f32 %v3646, %v3688
    %v3690 = vpop.f32.mrb[0].mxu0
    %v3691 = vadd.f32 %v3648, %v3690
    %3692 = vdwg.mxu0
    %3693 = vmatprep.subr.bf16.mxu0 %v3225
    %3694 = vmatpush1.bf16.msra.mxu0 %v3224
    %3695 = vmatprep.subr.bf16.mxu0 %v3229
    %3696 = vmatpush1.bf16.msra.mxu0 %v3228
    %3697 = vmatprep.subr.bf16.mxu0 %v3233
    %3698 = vmatpush1.bf16.msra.mxu0 %v3232
    %3699 = vmatprep.subr.bf16.mxu0 %v3237
    %3700 = vmatpush1.bf16.msra.mxu0 %v3236
    %3701 = vmatprep.subr.bf16.mxu0 %v3241
    %3702 = vmatpush1.bf16.msra.mxu0 %v3240
    %3703 = vmatprep.subr.bf16.mxu0 %v3245
    %3704 = vmatpush1.bf16.msra.mxu0 %v3244
    %3705 = vmatprep.subr.bf16.mxu0 %v3249
    %3706 = vmatpush1.bf16.msra.mxu0 %v3248
    %3707 = vmatprep.subr.bf16.mxu0 %v3253
    %3708 = vmatpush1.bf16.msra.mxu0 %v3252
    %3709 = vmatprep.subr.bf16.mxu0 %v3257
    %3710 = vmatpush1.bf16.msra.mxu0 %v3256
    %3711 = vmatprep.subr.bf16.mxu0 %v3261
    %3712 = vmatpush1.bf16.msra.mxu0 %v3260
    %3713 = vmatprep.subr.bf16.mxu0 %v3265
    %3714 = vmatpush1.bf16.msra.mxu0 %v3264
    %3715 = vmatprep.subr.bf16.mxu0 %v3269
    %3716 = vmatpush1.bf16.msra.mxu0 %v3268
    %3717 = vmatprep.subr.bf16.mxu0 %v3273
    %3718 = vmatpush1.bf16.msra.mxu0 %v3272
    %3719 = vmatprep.subr.bf16.mxu0 %v3277
    %3720 = vmatpush1.bf16.msra.mxu0 %v3276
    %3721 = vmatprep.subr.bf16.mxu0 %v3281
    %3722 = vmatpush1.bf16.msra.mxu0 %v3280
    %3723 = vmatprep.subr.bf16.mxu0 %v3285
    %3724 = vmatpush1.bf16.msra.mxu0 %v3284
    %3725 = vmatprep.mubr.bf16.mxu0 %v2303
    %3726 = vmatmul.mubr.bf16.gmra.mrb[0].mxu0 %v2302
    %v3727 = vpop.f32.mrb[0].mxu0
    %v3728 = vadd.f32 %v3685, %v3727
    %v3729 = vpop.f32.mrb[0].mxu0
    %v3730 = vadd.f32 %v3687, %v3729
    %v3731 = vpop.f32.mrb[0].mxu0
    %v3732 = vadd.f32 %v3689, %v3731
    %v3733 = vpop.f32.mrb[0].mxu0
    %v3734 = vadd.f32 %v3691, %v3733
    %3735 = vdwg.mxu0
    %v3736 = vmax.f32 %v3599, 0.0
    %v3737 = vmax.f32 %v3601, 0.0
    %v3738 = vmax.f32 %v3728, 0.0
    %v3739 = vmax.f32 %v3730, 0.0
    %v3740 = vmax.f32 %v3603, 0.0
    %v3741 = vmax.f32 %v3605, 0.0
    %v3742 = vmax.f32 %v3732, 0.0
    %v3743 = vmax.f32 %v3734, 0.0
    %v3744 = vpack.c.bf16 %v3740, %v3736
    %v3745 = vpack.c.bf16 %v3741, %v3737
    %v3746 = vpack.c.bf16 %v3742, %v3738
    %v3747 = vpack.c.bf16 %v3743, %v3739
    %v3748 = vld [vmem:[#allocation9] sm:$0xf]
    %v3749 = vld [vmem:[#allocation9 + $0x4] sm:$0xf]
    %v3750 = vld [vmem:[#allocation9 + $0x8] sm:$0xf]
    %v3751 = vld [vmem:[#allocation9 + $0xc] sm:$0xf]
    %v3752 = vld [vmem:[#allocation9 + $0x10] sm:$0xf]
    %v3753 = vld [vmem:[#allocation9 + $0x14] sm:$0xf]
    %v3754 = vld [vmem:[#allocation9 + $0x18] sm:$0xf]
    %v3755 = vld [vmem:[#allocation9 + $0x1c] sm:$0xf]
    %v3756 = vld [vmem:[#allocation9 + $0x20] sm:$0xf]
    %v3757 = vld [vmem:[#allocation9 + $0x24] sm:$0xf]
    %v3758 = vld [vmem:[#allocation9 + $0x28] sm:$0xf]
    %v3759 = vld [vmem:[#allocation9 + $0x2c] sm:$0xf]
    %v3760 = vld [vmem:[#allocation9 + $0x30] sm:$0xf]
    %v3761 = vld [vmem:[#allocation9 + $0x34] sm:$0xf]
    %v3762 = vld [vmem:[#allocation9 + $0x38] sm:$0xf]
    %v3763 = vld [vmem:[#allocation9 + $0x3c] sm:$0xf]
    %v3764 = vld [vmem:[#allocation9 + $0x40] sm:$0xf]
    %v3765 = vld [vmem:[#allocation9 + $0x44] sm:$0xf]
    %v3766 = vld [vmem:[#allocation9 + $0x48] sm:$0xf]
    %v3767 = vld [vmem:[#allocation9 + $0x4c] sm:$0xf]
    %v3768 = vld [vmem:[#allocation9 + $0x50] sm:$0xf]
    %v3769 = vld [vmem:[#allocation9 + $0x54] sm:$0xf]
    %v3770 = vld [vmem:[#allocation9 + $0x58] sm:$0xf]
    %v3771 = vld [vmem:[#allocation9 + $0x5c] sm:$0xf]
    %v3772 = vld [vmem:[#allocation9 + $0x60] sm:$0xf]
    %v3773 = vld [vmem:[#allocation9 + $0x64] sm:$0xf]
    %v3774 = vld [vmem:[#allocation9 + $0x68] sm:$0xf]
    %v3775 = vld [vmem:[#allocation9 + $0x6c] sm:$0xf]
    %v3776 = vld [vmem:[#allocation9 + $0x70] sm:$0xf]
    %v3777 = vld [vmem:[#allocation9 + $0x74] sm:$0xf]
    %v3778 = vld [vmem:[#allocation9 + $0x78] sm:$0xf]
    %v3779 = vld [vmem:[#allocation9 + $0x7c] sm:$0xf]
    %v3780 = vld [vmem:[#allocation9 + $0x80] sm:$0xf]
    %v3781 = vld [vmem:[#allocation9 + $0x84] sm:$0xf]
    %v3782 = vld [vmem:[#allocation9 + $0x88] sm:$0xf]
    %v3783 = vld [vmem:[#allocation9 + $0x8c] sm:$0xf]
    %v3784 = vld [vmem:[#allocation9 + $0x90] sm:$0xf]
    %v3785 = vld [vmem:[#allocation9 + $0x94] sm:$0xf]
    %v3786 = vld [vmem:[#allocation9 + $0x98] sm:$0xf]
    %v3787 = vld [vmem:[#allocation9 + $0x9c] sm:$0xf]
    %v3788 = vld [vmem:[#allocation9 + $0xa0] sm:$0xf]
    %v3789 = vld [vmem:[#allocation9 + $0xa4] sm:$0xf]
    %v3790 = vld [vmem:[#allocation9 + $0xa8] sm:$0xf]
    %v3791 = vld [vmem:[#allocation9 + $0xac] sm:$0xf]
    %v3792 = vld [vmem:[#allocation9 + $0xb0] sm:$0xf]
    %v3793 = vld [vmem:[#allocation9 + $0xb4] sm:$0xf]
    %v3794 = vld [vmem:[#allocation9 + $0xb8] sm:$0xf]
    %v3795 = vld [vmem:[#allocation9 + $0xbc] sm:$0xf]
    %v3796 = vld [vmem:[#allocation9 + $0xc0] sm:$0xf]
    %v3797 = vld [vmem:[#allocation9 + $0xc4] sm:$0xf]
    %v3798 = vld [vmem:[#allocation9 + $0xc8] sm:$0xf]
    %v3799 = vld [vmem:[#allocation9 + $0xcc] sm:$0xf]
    %v3800 = vld [vmem:[#allocation9 + $0xd0] sm:$0xf]
    %v3801 = vld [vmem:[#allocation9 + $0xd4] sm:$0xf]
    %v3802 = vld [vmem:[#allocation9 + $0xd8] sm:$0xf]
    %v3803 = vld [vmem:[#allocation9 + $0xdc] sm:$0xf]
    %v3804 = vld [vmem:[#allocation9 + $0xe0] sm:$0xf]
    %v3805 = vld [vmem:[#allocation9 + $0xe4] sm:$0xf]
    %v3806 = vld [vmem:[#allocation9 + $0xe8] sm:$0xf]
    %v3807 = vld [vmem:[#allocation9 + $0xec] sm:$0xf]
    %v3808 = vld [vmem:[#allocation9 + $0xf0] sm:$0xf]
    %v3809 = vld [vmem:[#allocation9 + $0xf4] sm:$0xf]
    %v3810 = vld [vmem:[#allocation9 + $0xf8] sm:$0xf]
    %v3811 = vld [vmem:[#allocation9 + $0xfc] sm:$0xf]
    %v3812 = vld [vmem:[#allocation10] sm:$0x1]
    %v3814 = vlaneseq
    %v3815 = vshrl.u32 %v3814, 7
    %v3816 = vsub.s32 0, %v3815
    %v3817 = vrot.slane %v3812, %v3816
    %v3883 = vunpack.c.l.b16 %v3748
    %v3884 = vunpack.c.l.b16 %v3749
    %v3885 = vunpack.c.l.b16 %v3750
    %v3886 = vunpack.c.l.b16 %v3751
    %v3887 = vunpack.c.l.b16 %v3752
    %v3888 = vunpack.c.l.b16 %v3753
    %v3889 = vunpack.c.l.b16 %v3754
    %v3890 = vunpack.c.l.b16 %v3755
    %v3891 = vunpack.c.l.b16 %v3756
    %v3892 = vunpack.c.l.b16 %v3757
    %v3893 = vunpack.c.l.b16 %v3758
    %v3894 = vunpack.c.l.b16 %v3759
    %v3895 = vunpack.c.l.b16 %v3760
    %v3896 = vunpack.c.l.b16 %v3761
    %v3897 = vunpack.c.l.b16 %v3762
    %v3898 = vunpack.c.l.b16 %v3763
    %v3899 = vunpack.c.l.b16 %v3764
    %v3900 = vunpack.c.l.b16 %v3765
    %v3901 = vunpack.c.l.b16 %v3766
    %v3902 = vunpack.c.l.b16 %v3767
    %v3903 = vunpack.c.l.b16 %v3768
    %v3904 = vunpack.c.l.b16 %v3769
    %v3905 = vunpack.c.l.b16 %v3770
    %v3906 = vunpack.c.l.b16 %v3771
    %v3907 = vunpack.c.l.b16 %v3772
    %v3908 = vunpack.c.l.b16 %v3773
    %v3909 = vunpack.c.l.b16 %v3774
    %v3910 = vunpack.c.l.b16 %v3775
    %v3911 = vunpack.c.l.b16 %v3776
    %v3912 = vunpack.c.l.b16 %v3777
    %v3913 = vunpack.c.l.b16 %v3778
    %v3914 = vunpack.c.l.b16 %v3779
    %v3915 = vunpack.c.l.b16 %v3780
    %v3916 = vunpack.c.l.b16 %v3781
    %v3917 = vunpack.c.l.b16 %v3782
    %v3918 = vunpack.c.l.b16 %v3783
    %v3919 = vunpack.c.l.b16 %v3784
    %v3920 = vunpack.c.l.b16 %v3785
    %v3921 = vunpack.c.l.b16 %v3786
    %v3922 = vunpack.c.l.b16 %v3787
    %v3923 = vunpack.c.l.b16 %v3788
    %v3924 = vunpack.c.l.b16 %v3789
    %v3925 = vunpack.c.l.b16 %v3790
    %v3926 = vunpack.c.l.b16 %v3791
    %v3927 = vunpack.c.l.b16 %v3792
    %v3928 = vunpack.c.l.b16 %v3793
    %v3929 = vunpack.c.l.b16 %v3794
    %v3930 = vunpack.c.l.b16 %v3795
    %v3931 = vunpack.c.l.b16 %v3796
    %v3932 = vunpack.c.l.b16 %v3797
    %v3933 = vunpack.c.l.b16 %v3798
    %v3934 = vunpack.c.l.b16 %v3799
    %v3935 = vunpack.c.l.b16 %v3800
    %v3936 = vunpack.c.l.b16 %v3801
    %v3937 = vunpack.c.l.b16 %v3802
    %v3938 = vunpack.c.l.b16 %v3803
    %v3939 = vunpack.c.l.b16 %v3804
    %v3940 = vunpack.c.l.b16 %v3805
    %v3941 = vunpack.c.l.b16 %v3806
    %v3942 = vunpack.c.l.b16 %v3807
    %v3943 = vunpack.c.l.b16 %v3808
    %v3944 = vunpack.c.l.b16 %v3809
    %v3945 = vunpack.c.l.b16 %v3810
    %v3946 = vunpack.c.l.b16 %v3811
    %v3947 = vpack.c.b16 %v3884, %v3883
    %v3948 = vpack.c.b16 %v3886, %v3885
    %v3949 = vpack.c.b16 %v3888, %v3887
    %v3950 = vpack.c.b16 %v3890, %v3889
    %v3951 = vpack.c.b16 %v3892, %v3891
    %v3952 = vpack.c.b16 %v3894, %v3893
    %v3953 = vpack.c.b16 %v3896, %v3895
    %v3954 = vpack.c.b16 %v3898, %v3897
    %v3955 = vpack.c.b16 %v3900, %v3899
    %v3956 = vpack.c.b16 %v3902, %v3901
    %v3957 = vpack.c.b16 %v3904, %v3903
    %v3958 = vpack.c.b16 %v3906, %v3905
    %v3959 = vpack.c.b16 %v3908, %v3907
    %v3960 = vpack.c.b16 %v3910, %v3909
    %v3961 = vpack.c.b16 %v3912, %v3911
    %v3962 = vpack.c.b16 %v3914, %v3913
    %v3963 = vpack.c.b16 %v3916, %v3915
    %v3964 = vpack.c.b16 %v3918, %v3917
    %v3965 = vpack.c.b16 %v3920, %v3919
    %v3966 = vpack.c.b16 %v3922, %v3921
    %v3967 = vpack.c.b16 %v3924, %v3923
    %v3968 = vpack.c.b16 %v3926, %v3925
    %v3969 = vpack.c.b16 %v3928, %v3927
    %v3970 = vpack.c.b16 %v3930, %v3929
    %v3971 = vpack.c.b16 %v3932, %v3931
    %v3972 = vpack.c.b16 %v3934, %v3933
    %v3973 = vpack.c.b16 %v3936, %v3935
    %v3974 = vpack.c.b16 %v3938, %v3937
    %v3975 = vpack.c.b16 %v3940, %v3939
    %v3976 = vpack.c.b16 %v3942, %v3941
    %v3977 = vpack.c.b16 %v3944, %v3943
    %v3978 = vpack.c.b16 %v3946, %v3945
    %4011 = vmatprep.subr.bf16.mxu0 0
    %4012 = vmatpush1.bf16.msra.mxu0 %v3947
    %4013 = vmatprep.subr.bf16.mxu0 0
    %4014 = vmatpush1.bf16.msra.mxu0 %v3948
    %4015 = vmatprep.subr.bf16.mxu0 0
    %4016 = vmatpush1.bf16.msra.mxu0 %v3949
    %4017 = vmatprep.subr.bf16.mxu0 0
    %4018 = vmatpush1.bf16.msra.mxu0 %v3950
    %4019 = vmatprep.subr.bf16.mxu0 0
    %4020 = vmatpush1.bf16.msra.mxu0 %v3951
    %4021 = vmatprep.subr.bf16.mxu0 0
    %4022 = vmatpush1.bf16.msra.mxu0 %v3952
    %4023 = vmatprep.subr.bf16.mxu0 0
    %4024 = vmatpush1.bf16.msra.mxu0 %v3953
    %4025 = vmatprep.subr.bf16.mxu0 0
    %4026 = vmatpush1.bf16.msra.mxu0 %v3954
    %4027 = vmatprep.subr.bf16.mxu0 0
    %4028 = vmatpush1.bf16.msra.mxu0 %v3955
    %4029 = vmatprep.subr.bf16.mxu0 0
    %4030 = vmatpush1.bf16.msra.mxu0 %v3956
    %4031 = vmatprep.subr.bf16.mxu0 0
    %4032 = vmatpush1.bf16.msra.mxu0 %v3957
    %4033 = vmatprep.subr.bf16.mxu0 0
    %4034 = vmatpush1.bf16.msra.mxu0 %v3958
    %4035 = vmatprep.subr.bf16.mxu0 0
    %4036 = vmatpush1.bf16.msra.mxu0 %v3959
    %4037 = vmatprep.subr.bf16.mxu0 0
    %4038 = vmatpush1.bf16.msra.mxu0 %v3960
    %4039 = vmatprep.subr.bf16.mxu0 0
    %4040 = vmatpush1.bf16.msra.mxu0 %v3961
    %4041 = vmatprep.subr.bf16.mxu0 0
    %4042 = vmatpush1.bf16.msra.mxu0 %v3962
    %4043 = vmatprep.mubr.bf16.mxu0 %v3745
    %4044 = vmatmul.mubr.bf16.gmra.mrb[0].mxu0 %v3744
    %v4045 = vpop.f32.mrb[0].mxu0
    %v4046 = vadd.f32 %v3817, %v4045
    %v4047 = vpop.f32.mrb[0].mxu0
    %v4048 = vpop.f32.mrb[0].mxu0
    %v4049 = vadd.f32 %v3817, %v4048
    %v4050 = vpop.f32.mrb[0].mxu0
    %4051 = vdwg.mxu0
    %4052 = vmatprep.subr.bf16.mxu0 0
    %4053 = vmatpush1.bf16.msra.mxu0 %v3963
    %4054 = vmatprep.subr.bf16.mxu0 0
    %4055 = vmatpush1.bf16.msra.mxu0 %v3964
    %4056 = vmatprep.subr.bf16.mxu0 0
    %4057 = vmatpush1.bf16.msra.mxu0 %v3965
    %4058 = vmatprep.subr.bf16.mxu0 0
    %4059 = vmatpush1.bf16.msra.mxu0 %v3966
    %4060 = vmatprep.subr.bf16.mxu0 0
    %4061 = vmatpush1.bf16.msra.mxu0 %v3967
    %4062 = vmatprep.subr.bf16.mxu0 0
    %4063 = vmatpush1.bf16.msra.mxu0 %v3968
    %4064 = vmatprep.subr.bf16.mxu0 0
    %4065 = vmatpush1.bf16.msra.mxu0 %v3969
    %4066 = vmatprep.subr.bf16.mxu0 0
    %4067 = vmatpush1.bf16.msra.mxu0 %v3970
    %4068 = vmatprep.subr.bf16.mxu0 0
    %4069 = vmatpush1.bf16.msra.mxu0 %v3971
    %4070 = vmatprep.subr.bf16.mxu0 0
    %4071 = vmatpush1.bf16.msra.mxu0 %v3972
    %4072 = vmatprep.subr.bf16.mxu0 0
    %4073 = vmatpush1.bf16.msra.mxu0 %v3973
    %4074 = vmatprep.subr.bf16.mxu0 0
    %4075 = vmatpush1.bf16.msra.mxu0 %v3974
    %4076 = vmatprep.subr.bf16.mxu0 0
    %4077 = vmatpush1.bf16.msra.mxu0 %v3975
    %4078 = vmatprep.subr.bf16.mxu0 0
    %4079 = vmatpush1.bf16.msra.mxu0 %v3976
    %4080 = vmatprep.subr.bf16.mxu0 0
    %4081 = vmatpush1.bf16.msra.mxu0 %v3977
    %4082 = vmatprep.subr.bf16.mxu0 0
    %4083 = vmatpush1.bf16.msra.mxu0 %v3978
    %4084 = vmatprep.mubr.bf16.mxu0 %v3747
    %4085 = vmatmul.mubr.bf16.gmra.mrb[0].mxu0 %v3746
    %v4086 = vpop.f32.mrb[0].mxu0
    %v4087 = vadd.f32 %v4046, %v4086
    %v4088 = vpop.f32.mrb[0].mxu0
    %v4089 = vpop.f32.mrb[0].mxu0
    %v4090 = vadd.f32 %v4049, %v4089
    %v4091 = vpop.f32.mrb[0].mxu0
    %4092 = vdwg.mxu0
    %4093 = vmax.xlane.f32.xlu0 %v4087
    %v4094 = vpop.xlane.xlu0 %4093
    %4095 = vmax.xlane.f32.xlu0 %v4090
    %v4096 = vpop.xlane.xlu0 %4095
    %v4097 = vsub.f32 %v4087, %v4094
    %v4098 = vsub.f32 %v4090, %v4096
    %v4099 = vmul.f32 %v4097, 1.442695
    %v4100 = vpow.pop %v4099
    %v4101 = vmul.f32 %v4098, 1.442695
    %v4102 = vpow.pop %v4101
    %4103 = vadd.xlane.f32.xlu0 %v4100
    %v4104 = vpop.xlane.xlu0 %4103
    %4105 = vadd.xlane.f32.xlu0 %v4102
    %v4106 = vpop.xlane.xlu0 %4105
    %v4107 = vlog2.pop %v4104
    %v4108 = vmul.f32 %v4107, 0.6931472
    %v4109 = vlog2.pop %v4106
    %v4110 = vmul.f32 %v4109, 0.6931472
    %v4111 = vsub.f32 %v4097, %v4108
    %v4112 = vsub.f32 %v4098, %v4110
    %4113 = vst [vmem:[%s7] sm:$0xff] %v4111
    %4114 = vst [vmem:[%s7 + $0x8] sm:$0xff] %v4112
    // Predicated region
    $region54: #{bert_arch_forward.1} parent=1 // pred_check
      _
    $region55: #{bert_arch_forward.1} parent=1 // pred_check_branch
      %4116 = sbr.rel (0) target = $region57
    $region56: #{bert_arch_forward.1} parent=1 // pred_region
      _
    $region57: #{bert_arch_forward.1} parent=1 // pred_fallthru
      _
    // Predicated region
    $region58: #{bert_arch_forward.1} parent=1 // pred_check
      _
    $region59: #{bert_arch_forward.1} parent=1 // pred_check_branch
      %4118 = sbr.rel (0) target = $region61
    $region60: #{bert_arch_forward.1} parent=1 // pred_region
      _
    $region61: #{bert_arch_forward.1} parent=1 // pred_fallthru
      _
    %4119 = vsyncpa [#allocation3], 1
    %4120 = vsyncpa [#allocation5], 1
    %4121 = vsyncpa [#allocation8], 1
    %4122 = vsyncpa [#allocation11], 1

</llo_original>
